<compile_context>
chip_gen: v7x
topology: tpu7x:2x2x1
jax: 0.10.0
libtpu: 0.0.40
codegen_flags: <defaults>
</compile_context>

<pallas_src>
import jax
import jax.numpy as jnp
import numpy as np
from jax.experimental import pallas as pl
from jax.experimental.pallas import tpu as pltpu

STRIDE = 32          # output stride of 'layer4' (return_interm_layers=False -> strides=[32])
NUM_CHANNELS = 64    # TODO(synk): real ResNet50 layer4 has 2048 channels; scaled down for the small synthetic test.


def _round_up(x, m):
    return (x + m - 1) // m * m


# ---------------------------------------------------------------------------
# Kernel: one grid step = one (cout-tile j, batch n, output-row ho).
#   x_ref: (1, 1, STRIDE, Wo, STRIDE*C) bf16  -- one stride-32 row stripe (channels-last)
#   w_ref: (STRIDE, STRIDE*C, tn)       bf16  -- resident across the inner (n, ho) sweep
#   b_ref: (1, tn)                      f32   -- resident across the inner (n, ho) sweep
#   o_ref: (1, 1, Wo, tn)               f32
# The kh*kw*Cin contraction is computed as STRIDE small MXU matmuls accumulated
# in f32 registers; the patch matrix never exists in HBM.
# ---------------------------------------------------------------------------
def _conv_stripe_kernel(x_ref, w_ref, b_ref, o_ref):
    wo, tn = o_ref.shape[2], o_ref.shape[3]
    acc = jnp.zeros((wo, tn), jnp.float32)
    for kh in range(STRIDE):                       # static unroll: scheduler sees all 32 matmuls
        acc = acc + jnp.dot(x_ref[0, 0, kh], w_ref[kh],
                            preferred_element_type=jnp.float32)
    o_ref[0, 0] = (acc + b_ref[...]).astype(o_ref.dtype)


def backbone_body(x_nchw, w, b):
    """Synthetic stride-32 'layer4': conv(kernel=32, stride=32) + bias, NCHW in/out."""
    N, C, H, W = x_nchw.shape
    assert H % STRIDE == 0 and W % STRIDE == 0  # TODO(synk): real ResNet pads arbitrary sizes.
    Ho, Wo = H // STRIDE, W // STRIDE
    Cout = w.shape[0]
    KW = STRIDE * C              # per-kh contraction width (kw*Cin)
    K = STRIDE * KW              # full contraction width (kh*kw*Cin)
    M = N * Ho * Wo

    # One input-sized relayout: NCHW f32 -> NHWC bf16 (read 4B, write 2B per elem).
    # The 5-D view below is a pure row-major reshape (zero data movement):
    #   (N, H, W, C) -> (N, Ho, STRIDE, Wo, STRIDE*C)   indices (n, ho, kh, wo, kw*C + c)
    x_nhwc = jnp.transpose(x_nchw.astype(jnp.bfloat16), (0, 2, 3, 1))
    x5 = x_nhwc.reshape(N, Ho, STRIDE, Wo, KW)

    # Weight (Cout, Cin, kh, kw) -> (kh, kw*Cin, Cout) bf16, matching the x5 K ordering.
    w5 = jnp.transpose(w, (2, 3, 1, 0)).reshape(STRIDE, KW, Cout).astype(jnp.bfloat16)
    bias = b.reshape(1, Cout).astype(jnp.float32)

    # Pad Cout to >= 256 (full 256-wide MXU on v6e/v7x; 2x128 passes on v5e) and a
    # multiple of 128 (lane-dense, unmasked output stores). Padded cols are zero.
    Cn = max(256, _round_up(Cout, 128))
    if Cn != Cout:
        w5 = jnp.pad(w5, ((0, 0), (0, 0), (0, Cn - Cout)))
        bias = jnp.pad(bias, ((0, 0), (0, Cn - Cout)))

    # cout tile: largest of (512, 384, 256, 128) that divides Cn (128 always does).
    for tn in (512, 384, 256, 128):
        if Cn % tn == 0:
            break

    # Double-buffered VMEM footprint -> explicit scoped-VMEM limit (fits all gens,
    # re-derived for v7x's smaller 64 MiB physical VMEM).
    xb = STRIDE * Wo * KW * 2           # x stripe, bf16
    wb = STRIDE * KW * tn * 2           # weight tile, bf16
    ob = Wo * tn * 4                    # output block, f32
    bb = tn * 4                         # bias block, f32
    vmem_limit = int(min(32 << 20, max(16 << 20, 4 * (xb + wb + ob + bb))))

    # cout tiles OUTERMOST so the weight/bias blocks stay resident across the whole
    # (n, ho) sweep (no redundant weight re-fetch per row stripe).
    grid = (Cn // tn, N, Ho)

    cost = pl.CostEstimate(
        flops=2 * M * K * Cn,
        transcendentals=0,
        bytes_accessed=(Cn // tn) * M * K * 2 + K * Cn * 2 + Cn * 4 + M * Cn * 4,
    )

    out = pl.pallas_call(
        _conv_stripe_kernel,
        out_shape=jax.ShapeDtypeStruct((N, Ho, Wo, Cn), jnp.float32),
        grid_spec=pltpu.PrefetchScalarGridSpec(
            num_scalar_prefetch=0,
            grid=grid,
            in_specs=[
                # x row stripe: depends only on (n, ho) -> not re-fetched across cout tiles' inner steps
                pl.BlockSpec((1, 1, STRIDE, Wo, KW), lambda j, n, h: (n, h, 0, 0, 0)),
                # weight tile: depends only on j -> fetched once per cout tile
                pl.BlockSpec((STRIDE, KW, tn), lambda j, n, h: (0, 0, j)),
                # bias tile: depends only on j
                pl.BlockSpec((1, tn), lambda j, n, h: (0, j)),
            ],
            out_specs=pl.BlockSpec((1, 1, Wo, tn), lambda j, n, h: (n, h, 0, j)),
        ),
        compiler_params=pltpu.CompilerParams(
            dimension_semantics=("parallel", "parallel", "parallel"),
            vmem_limit_bytes=vmem_limit,
        ),
        cost_estimate=cost,
    )(x5, w5, bias)

    feats = out[:, :, :, :Cout]          # drop Cout padding
    # TODO(synk): keep NHWC / bf16 here if the consumer (DETR input_proj + flatten)
    # accepts it; NCHW f32 is kept to mirror the PyTorch backbone output exactly.
    return jnp.transpose(feats, (0, 3, 1, 2))


# ---------------------------------------------------------------------------
# Mask path: F.interpolate(mask[None].float(), size=(Ho, Wo), mode='nearest').bool()[0]
# Nearest-neighbor downsample is a pure strided gather (src idx = floor(i*in/out)),
# so it is plain JAX instead of a second Pallas kernel.
# ---------------------------------------------------------------------------
def interpolate_mask_nearest(mask_bool, Ho, Wo):
    N, H, W = mask_bool.shape
    idx_h = (jnp.arange(Ho) * H) // Ho
    idx_w = (jnp.arange(Wo) * W) // Wo
    return mask_bool[:, idx_h[:, None], idx_w[None, :]]


# ---------------------------------------------------------------------------
# BackboneBase.forward equivalent (NestedTensor path, return_interm_layers=False)
# ---------------------------------------------------------------------------
def backbone_forward(tensors, mask, params):
    """Returns {'0': (features_NCHW, mask_bool)} mirroring {name: NestedTensor(x, mask)}."""
    feats = backbone_body(tensors, params["w"], params["b"])
    _, _, Ho, Wo = feats.shape
    m = interpolate_mask_nearest(mask, Ho, Wo)
    return {"0": (feats, m)}


if __name__ == "__main__":
    key = jax.random.PRNGKey(0)
    k1, k2, k3 = jax.random.split(key, 3)

    N, Cin, H, W = 2, 3, 64, 64
    x = jax.random.normal(k1, (N, Cin, H, W), dtype=jnp.float32)

    # NestedTensor-style padding mask: True where padded
    valid_h = jnp.array([64, 48])
    valid_w = jnp.array([64, 40])
    hh = jnp.arange(H)[None, :, None]
    ww = jnp.arange(W)[None, None, :]
    mask = (hh >= valid_h[:, None, None]) | (ww >= valid_w[:, None, None])

    # deterministic synthetic "layer4" conv parameters
    w = 0.02 * jax.random.normal(k2, (NUM_CHANNELS, Cin, STRIDE, STRIDE), jnp.float32)
    b = 0.01 * jax.random.normal(k3, (NUM_CHANNELS,), jnp.float32)
    params = {"w": w, "b": b}

    out = jax.jit(backbone_forward)(x, mask, params)
    feats, m_out = out["0"]
    jax.block_until_ready((feats, m_out))

    # ---- plain-JAX reference checks ----
    Ho, Wo = H // STRIDE, W // STRIDE
    xr = jnp.transpose(x, (0, 2, 3, 1)).reshape(N, Ho, STRIDE, Wo, STRIDE, Cin)
    xr = jnp.transpose(xr, (0, 1, 3, 2, 4, 5)).reshape(-1, STRIDE * STRIDE * Cin)
    wr = jnp.transpose(w, (2, 3, 1, 0)).reshape(STRIDE * STRIDE * Cin, NUM_CHANNELS)

    # (a) exact-ish check against reference with the same bf16-rounded operands
    ref_bf = (xr.astype(jnp.bfloat16).astype(jnp.float32)
              @ wr.astype(jnp.bfloat16).astype(jnp.float32) + b[None])
    ref_bf = jnp.transpose(ref_bf.reshape(N, Ho, Wo, NUM_CHANNELS), (0, 3, 1, 2))
    # (b) loose check against full-f32 reference (bf16 operand rounding ~0.4%)
    ref_f32 = (xr @ wr + b[None])
    ref_f32 = jnp.transpose(ref_f32.reshape(N, Ho, Wo, NUM_CHANNELS), (0, 3, 1, 2))
    ref_mask = mask[:, ::STRIDE, ::STRIDE]

    assert feats.shape == (N, NUM_CHANNELS, Ho, Wo)
    assert m_out.shape == (N, Ho, Wo) and m_out.dtype == jnp.bool_
    assert np.allclose(np.asarray(feats), np.asarray(ref_bf), rtol=1e-3, atol=1e-3)
    assert np.allclose(np.asarray(feats), np.asarray(ref_f32), rtol=3e-2, atol=3e-2)
    assert np.array_equal(np.asarray(m_out), np.asarray(ref_mask))

    print("KERNEL_OK")
</pallas_src>

<mosaic_0001>
module attributes {stable_mosaic.version = 11 : i64} {
  func.func @_conv_stripe_kernel(%arg0: i32, %arg1: i32, %arg2: i32, %arg3: memref<1x1x32x2x96xbf16, #tpu.memory_space<vmem>>, %arg4: memref<32x96x256xbf16, #tpu.memory_space<vmem>>, %arg5: memref<1x256xf32, #tpu.memory_space<vmem>>, %arg6: memref<1x1x2x256xf32, #tpu.memory_space<vmem>>) attributes {dimension_semantics = [#tpu.dimension_semantics<parallel>, #tpu.dimension_semantics<parallel>, #tpu.dimension_semantics<parallel>], iteration_bounds = array<i64: 1, 2, 2>, scalar_prefetch = 0 : i64, scratch_operands = 0 : i64, tpu.core_type = #tpu.core_type<tc>, window_params = [{transform_indices = @transform_0, window_bounds = array<i64: 1, 1, 32, 2, 96>}, {transform_indices = @transform_1, window_bounds = array<i64: 32, 96, 256>}, {transform_indices = @transform_2, window_bounds = array<i64: 1, 256>}, {transform_indices = @transform_3, window_bounds = array<i64: 1, 1, 2, 256>}]} {
    %cst = arith.constant 0.000000e+00 : f32
    %0 = vector.broadcast %cst : f32 to vector<2x256xf32>
    %c0 = arith.constant 0 : index
    %c0_0 = arith.constant 0 : index
    %c0_1 = arith.constant 0 : index
    %c0_2 = arith.constant 0 : index
    %c0_3 = arith.constant 0 : index
    %1 = vector.load %arg3[%c0, %c0_0, %c0_1, %c0_2, %c0_3] : memref<1x1x32x2x96xbf16, #tpu.memory_space<vmem>>, vector<1x1x1x2x96xbf16>
    %2 = vector.shape_cast %1 : vector<1x1x1x2x96xbf16> to vector<2x96xbf16>
    %c0_4 = arith.constant 0 : index
    %c0_5 = arith.constant 0 : index
    %c0_6 = arith.constant 0 : index
    %3 = vector.load %arg4[%c0_4, %c0_5, %c0_6] : memref<32x96x256xbf16, #tpu.memory_space<vmem>>, vector<1x96x256xbf16>
    %4 = vector.shape_cast %3 : vector<1x96x256xbf16> to vector<96x256xbf16>
    %cst_7 = arith.constant dense<0.000000e+00> : vector<2x256xf32>
    %5 = tpu.matmul %2, %4, %cst_7 {dimension_numbers = #tpu.dot_dimension_numbers<[1], [0], [0], [1], [0, 0, 1, 1], [], []>} : vector<2x96xbf16>, vector<96x256xbf16>, vector<2x256xf32> -> vector<2x256xf32>
    %6 = arith.addf %0, %5 : vector<2x256xf32>
    %c0_8 = arith.constant 0 : index
    %c0_9 = arith.constant 0 : index
    %c1 = arith.constant 1 : index
    %c0_10 = arith.constant 0 : index
    %c0_11 = arith.constant 0 : index
    %7 = vector.load %arg3[%c0_8, %c0_9, %c1, %c0_10, %c0_11] : memref<1x1x32x2x96xbf16, #tpu.memory_space<vmem>>, vector<1x1x1x2x96xbf16>
    %8 = vector.shape_cast %7 : vector<1x1x1x2x96xbf16> to vector<2x96xbf16>
    %c1_12 = arith.constant 1 : index
    %c0_13 = arith.constant 0 : index
    %c0_14 = arith.constant 0 : index
    %9 = vector.load %arg4[%c1_12, %c0_13, %c0_14] : memref<32x96x256xbf16, #tpu.memory_space<vmem>>, vector<1x96x256xbf16>
    %10 = vector.shape_cast %9 : vector<1x96x256xbf16> to vector<96x256xbf16>
    %cst_15 = arith.constant dense<0.000000e+00> : vector<2x256xf32>
    %11 = tpu.matmul %8, %10, %cst_15 {dimension_numbers = #tpu.dot_dimension_numbers<[1], [0], [0], [1], [0, 0, 1, 1], [], []>} : vector<2x96xbf16>, vector<96x256xbf16>, vector<2x256xf32> -> vector<2x256xf32>
    %12 = arith.addf %6, %11 : vector<2x256xf32>
    %c0_16 = arith.constant 0 : index
    %c0_17 = arith.constant 0 : index
    %c2 = arith.constant 2 : index
    %c0_18 = arith.constant 0 : index
    %c0_19 = arith.constant 0 : index
    %13 = vector.load %arg3[%c0_16, %c0_17, %c2, %c0_18, %c0_19] : memref<1x1x32x2x96xbf16, #tpu.memory_space<vmem>>, vector<1x1x1x2x96xbf16>
    %14 = vector.shape_cast %13 : vector<1x1x1x2x96xbf16> to vector<2x96xbf16>
    %c2_20 = arith.constant 2 : index
    %c0_21 = arith.constant 0 : index
    %c0_22 = arith.constant 0 : index
    %15 = vector.load %arg4[%c2_20, %c0_21, %c0_22] : memref<32x96x256xbf16, #tpu.memory_space<vmem>>, vector<1x96x256xbf16>
    %16 = vector.shape_cast %15 : vector<1x96x256xbf16> to vector<96x256xbf16>
    %cst_23 = arith.constant dense<0.000000e+00> : vector<2x256xf32>
    %17 = tpu.matmul %14, %16, %cst_23 {dimension_numbers = #tpu.dot_dimension_numbers<[1], [0], [0], [1], [0, 0, 1, 1], [], []>} : vector<2x96xbf16>, vector<96x256xbf16>, vector<2x256xf32> -> vector<2x256xf32>
    %18 = arith.addf %12, %17 : vector<2x256xf32>
    %c0_24 = arith.constant 0 : index
    %c0_25 = arith.constant 0 : index
    %c3 = arith.constant 3 : index
    %c0_26 = arith.constant 0 : index
    %c0_27 = arith.constant 0 : index
    %19 = vector.load %arg3[%c0_24, %c0_25, %c3, %c0_26, %c0_27] : memref<1x1x32x2x96xbf16, #tpu.memory_space<vmem>>, vector<1x1x1x2x96xbf16>
    %20 = vector.shape_cast %19 : vector<1x1x1x2x96xbf16> to vector<2x96xbf16>
    %c3_28 = arith.constant 3 : index
    %c0_29 = arith.constant 0 : index
    %c0_30 = arith.constant 0 : index
    %21 = vector.load %arg4[%c3_28, %c0_29, %c0_30] : memref<32x96x256xbf16, #tpu.memory_space<vmem>>, vector<1x96x256xbf16>
    %22 = vector.shape_cast %21 : vector<1x96x256xbf16> to vector<96x256xbf16>
    %cst_31 = arith.constant dense<0.000000e+00> : vector<2x256xf32>
    %23 = tpu.matmul %20, %22, %cst_31 {dimension_numbers = #tpu.dot_dimension_numbers<[1], [0], [0], [1], [0, 0, 1, 1], [], []>} : vector<2x96xbf16>, vector<96x256xbf16>, vector<2x256xf32> -> vector<2x256xf32>
    %24 = arith.addf %18, %23 : vector<2x256xf32>
    %c0_32 = arith.constant 0 : index
    %c0_33 = arith.constant 0 : index
    %c4 = arith.constant 4 : index
    %c0_34 = arith.constant 0 : index
    %c0_35 = arith.constant 0 : index
    %25 = vector.load %arg3[%c0_32, %c0_33, %c4, %c0_34, %c0_35] : memref<1x1x32x2x96xbf16, #tpu.memory_space<vmem>>, vector<1x1x1x2x96xbf16>
    %26 = vector.shape_cast %25 : vector<1x1x1x2x96xbf16> to vector<2x96xbf16>
    %c4_36 = arith.constant 4 : index
    %c0_37 = arith.constant 0 : index
    %c0_38 = arith.constant 0 : index
    %27 = vector.load %arg4[%c4_36, %c0_37, %c0_38] : memref<32x96x256xbf16, #tpu.memory_space<vmem>>, vector<1x96x256xbf16>
    %28 = vector.shape_cast %27 : vector<1x96x256xbf16> to vector<96x256xbf16>
    %cst_39 = arith.constant dense<0.000000e+00> : vector<2x256xf32>
    %29 = tpu.matmul %26, %28, %cst_39 {dimension_numbers = #tpu.dot_dimension_numbers<[1], [0], [0], [1], [0, 0, 1, 1], [], []>} : vector<2x96xbf16>, vector<96x256xbf16>, vector<2x256xf32> -> vector<2x256xf32>
    %30 = arith.addf %24, %29 : vector<2x256xf32>
    %c0_40 = arith.constant 0 : index
    %c0_41 = arith.constant 0 : index
    %c5 = arith.constant 5 : index
    %c0_42 = arith.constant 0 : index
    %c0_43 = arith.constant 0 : index
    %31 = vector.load %arg3[%c0_40, %c0_41, %c5, %c0_42, %c0_43] : memref<1x1x32x2x96xbf16, #tpu.memory_space<vmem>>, vector<1x1x1x2x96xbf16>
    %32 = vector.shape_cast %31 : vector<1x1x1x2x96xbf16> to vector<2x96xbf16>
    %c5_44 = arith.constant 5 : index
    %c0_45 = arith.constant 0 : index
    %c0_46 = arith.constant 0 : index
    %33 = vector.load %arg4[%c5_44, %c0_45, %c0_46] : memref<32x96x256xbf16, #tpu.memory_space<vmem>>, vector<1x96x256xbf16>
    %34 = vector.shape_cast %33 : vector<1x96x256xbf16> to vector<96x256xbf16>
    %cst_47 = arith.constant dense<0.000000e+00> : vector<2x256xf32>
    %35 = tpu.matmul %32, %34, %cst_47 {dimension_numbers = #tpu.dot_dimension_numbers<[1], [0], [0], [1], [0, 0, 1, 1], [], []>} : vector<2x96xbf16>, vector<96x256xbf16>, vector<2x256xf32> -> vector<2x256xf32>
    %36 = arith.addf %30, %35 : vector<2x256xf32>
    %c0_48 = arith.constant 0 : index
    %c0_49 = arith.constant 0 : index
    %c6 = arith.constant 6 : index
    %c0_50 = arith.constant 0 : index
    %c0_51 = arith.constant 0 : index
    %37 = vector.load %arg3[%c0_48, %c0_49, %c6, %c0_50, %c0_51] : memref<1x1x32x2x96xbf16, #tpu.memory_space<vmem>>, vector<1x1x1x2x96xbf16>
    %38 = vector.shape_cast %37 : vector<1x1x1x2x96xbf16> to vector<2x96xbf16>
    %c6_52 = arith.constant 6 : index
    %c0_53 = arith.constant 0 : index
    %c0_54 = arith.constant 0 : index
    %39 = vector.load %arg4[%c6_52, %c0_53, %c0_54] : memref<32x96x256xbf16, #tpu.memory_space<vmem>>, vector<1x96x256xbf16>
    %40 = vector.shape_cast %39 : vector<1x96x256xbf16> to vector<96x256xbf16>
    %cst_55 = arith.constant dense<0.000000e+00> : vector<2x256xf32>
    %41 = tpu.matmul %38, %40, %cst_55 {dimension_numbers = #tpu.dot_dimension_numbers<[1], [0], [0], [1], [0, 0, 1, 1], [], []>} : vector<2x96xbf16>, vector<96x256xbf16>, vector<2x256xf32> -> vector<2x256xf32>
    %42 = arith.addf %36, %41 : vector<2x256xf32>
    %c0_56 = arith.constant 0 : index
    %c0_57 = arith.constant 0 : index
    %c7 = arith.constant 7 : index
    %c0_58 = arith.constant 0 : index
    %c0_59 = arith.constant 0 : index
    %43 = vector.load %arg3[%c0_56, %c0_57, %c7, %c0_58, %c0_59] : memref<1x1x32x2x96xbf16, #tpu.memory_space<vmem>>, vector<1x1x1x2x96xbf16>
    %44 = vector.shape_cast %43 : vector<1x1x1x2x96xbf16> to vector<2x96xbf16>
    %c7_60 = arith.constant 7 : index
    %c0_61 = arith.constant 0 : index
    %c0_62 = arith.constant 0 : index
    %45 = vector.load %arg4[%c7_60, %c0_61, %c0_62] : memref<32x96x256xbf16, #tpu.memory_space<vmem>>, vector<1x96x256xbf16>
    %46 = vector.shape_cast %45 : vector<1x96x256xbf16> to vector<96x256xbf16>
    %cst_63 = arith.constant dense<0.000000e+00> : vector<2x256xf32>
    %47 = tpu.matmul %44, %46, %cst_63 {dimension_numbers = #tpu.dot_dimension_numbers<[1], [0], [0], [1], [0, 0, 1, 1], [], []>} : vector<2x96xbf16>, vector<96x256xbf16>, vector<2x256xf32> -> vector<2x256xf32>
    %48 = arith.addf %42, %47 : vector<2x256xf32>
    %c0_64 = arith.constant 0 : index
    %c0_65 = arith.constant 0 : index
    %c8 = arith.constant 8 : index
    %c0_66 = arith.constant 0 : index
    %c0_67 = arith.constant 0 : index
    %49 = vector.load %arg3[%c0_64, %c0_65, %c8, %c0_66, %c0_67] : memref<1x1x32x2x96xbf16, #tpu.memory_space<vmem>>, vector<1x1x1x2x96xbf16>
    %50 = vector.shape_cast %49 : vector<1x1x1x2x96xbf16> to vector<2x96xbf16>
    %c8_68 = arith.constant 8 : index
    %c0_69 = arith.constant 0 : index
    %c0_70 = arith.constant 0 : index
    %51 = vector.load %arg4[%c8_68, %c0_69, %c0_70] : memref<32x96x256xbf16, #tpu.memory_space<vmem>>, vector<1x96x256xbf16>
    %52 = vector.shape_cast %51 : vector<1x96x256xbf16> to vector<96x256xbf16>
    %cst_71 = arith.constant dense<0.000000e+00> : vector<2x256xf32>
    %53 = tpu.matmul %50, %52, %cst_71 {dimension_numbers = #tpu.dot_dimension_numbers<[1], [0], [0], [1], [0, 0, 1, 1], [], []>} : vector<2x96xbf16>, vector<96x256xbf16>, vector<2x256xf32> -> vector<2x256xf32>
    %54 = arith.addf %48, %53 : vector<2x256xf32>
    %c0_72 = arith.constant 0 : index
    %c0_73 = arith.constant 0 : index
    %c9 = arith.constant 9 : index
    %c0_74 = arith.constant 0 : index
    %c0_75 = arith.constant 0 : index
    %55 = vector.load %arg3[%c0_72, %c0_73, %c9, %c0_74, %c0_75] : memref<1x1x32x2x96xbf16, #tpu.memory_space<vmem>>, vector<1x1x1x2x96xbf16>
    %56 = vector.shape_cast %55 : vector<1x1x1x2x96xbf16> to vector<2x96xbf16>
    %c9_76 = arith.constant 9 : index
    %c0_77 = arith.constant 0 : index
    %c0_78 = arith.constant 0 : index
    %57 = vector.load %arg4[%c9_76, %c0_77, %c0_78] : memref<32x96x256xbf16, #tpu.memory_space<vmem>>, vector<1x96x256xbf16>
    %58 = vector.shape_cast %57 : vector<1x96x256xbf16> to vector<96x256xbf16>
    %cst_79 = arith.constant dense<0.000000e+00> : vector<2x256xf32>
    %59 = tpu.matmul %56, %58, %cst_79 {dimension_numbers = #tpu.dot_dimension_numbers<[1], [0], [0], [1], [0, 0, 1, 1], [], []>} : vector<2x96xbf16>, vector<96x256xbf16>, vector<2x256xf32> -> vector<2x256xf32>
    %60 = arith.addf %54, %59 : vector<2x256xf32>
    %c0_80 = arith.constant 0 : index
    %c0_81 = arith.constant 0 : index
    %c10 = arith.constant 10 : index
    %c0_82 = arith.constant 0 : index
    %c0_83 = arith.constant 0 : index
    %61 = vector.load %arg3[%c0_80, %c0_81, %c10, %c0_82, %c0_83] : memref<1x1x32x2x96xbf16, #tpu.memory_space<vmem>>, vector<1x1x1x2x96xbf16>
    %62 = vector.shape_cast %61 : vector<1x1x1x2x96xbf16> to vector<2x96xbf16>
    %c10_84 = arith.constant 10 : index
    %c0_85 = arith.constant 0 : index
    %c0_86 = arith.constant 0 : index
    %63 = vector.load %arg4[%c10_84, %c0_85, %c0_86] : memref<32x96x256xbf16, #tpu.memory_space<vmem>>, vector<1x96x256xbf16>
    %64 = vector.shape_cast %63 : vector<1x96x256xbf16> to vector<96x256xbf16>
    %cst_87 = arith.constant dense<0.000000e+00> : vector<2x256xf32>
    %65 = tpu.matmul %62, %64, %cst_87 {dimension_numbers = #tpu.dot_dimension_numbers<[1], [0], [0], [1], [0, 0, 1, 1], [], []>} : vector<2x96xbf16>, vector<96x256xbf16>, vector<2x256xf32> -> vector<2x256xf32>
    %66 = arith.addf %60, %65 : vector<2x256xf32>
    %c0_88 = arith.constant 0 : index
    %c0_89 = arith.constant 0 : index
    %c11 = arith.constant 11 : index
    %c0_90 = arith.constant 0 : index
    %c0_91 = arith.constant 0 : index
    %67 = vector.load %arg3[%c0_88, %c0_89, %c11, %c0_90, %c0_91] : memref<1x1x32x2x96xbf16, #tpu.memory_space<vmem>>, vector<1x1x1x2x96xbf16>
    %68 = vector.shape_cast %67 : vector<1x1x1x2x96xbf16> to vector<2x96xbf16>
    %c11_92 = arith.constant 11 : index
    %c0_93 = arith.constant 0 : index
    %c0_94 = arith.constant 0 : index
    %69 = vector.load %arg4[%c11_92, %c0_93, %c0_94] : memref<32x96x256xbf16, #tpu.memory_space<vmem>>, vector<1x96x256xbf16>
    %70 = vector.shape_cast %69 : vector<1x96x256xbf16> to vector<96x256xbf16>
    %cst_95 = arith.constant dense<0.000000e+00> : vector<2x256xf32>
    %71 = tpu.matmul %68, %70, %cst_95 {dimension_numbers = #tpu.dot_dimension_numbers<[1], [0], [0], [1], [0, 0, 1, 1], [], []>} : vector<2x96xbf16>, vector<96x256xbf16>, vector<2x256xf32> -> vector<2x256xf32>
    %72 = arith.addf %66, %71 : vector<2x256xf32>
    %c0_96 = arith.constant 0 : index
    %c0_97 = arith.constant 0 : index
    %c12 = arith.constant 12 : index
    %c0_98 = arith.constant 0 : index
    %c0_99 = arith.constant 0 : index
    %73 = vector.load %arg3[%c0_96, %c0_97, %c12, %c0_98, %c0_99] : memref<1x1x32x2x96xbf16, #tpu.memory_space<vmem>>, vector<1x1x1x2x96xbf16>
    %74 = vector.shape_cast %73 : vector<1x1x1x2x96xbf16> to vector<2x96xbf16>
    %c12_100 = arith.constant 12 : index
    %c0_101 = arith.constant 0 : index
    %c0_102 = arith.constant 0 : index
    %75 = vector.load %arg4[%c12_100, %c0_101, %c0_102] : memref<32x96x256xbf16, #tpu.memory_space<vmem>>, vector<1x96x256xbf16>
    %76 = vector.shape_cast %75 : vector<1x96x256xbf16> to vector<96x256xbf16>
    %cst_103 = arith.constant dense<0.000000e+00> : vector<2x256xf32>
    %77 = tpu.matmul %74, %76, %cst_103 {dimension_numbers = #tpu.dot_dimension_numbers<[1], [0], [0], [1], [0, 0, 1, 1], [], []>} : vector<2x96xbf16>, vector<96x256xbf16>, vector<2x256xf32> -> vector<2x256xf32>
    %78 = arith.addf %72, %77 : vector<2x256xf32>
    %c0_104 = arith.constant 0 : index
    %c0_105 = arith.constant 0 : index
    %c13 = arith.constant 13 : index
    %c0_106 = arith.constant 0 : index
    %c0_107 = arith.constant 0 : index
    %79 = vector.load %arg3[%c0_104, %c0_105, %c13, %c0_106, %c0_107] : memref<1x1x32x2x96xbf16, #tpu.memory_space<vmem>>, vector<1x1x1x2x96xbf16>
    %80 = vector.shape_cast %79 : vector<1x1x1x2x96xbf16> to vector<2x96xbf16>
    %c13_108 = arith.constant 13 : index
    %c0_109 = arith.constant 0 : index
    %c0_110 = arith.constant 0 : index
    %81 = vector.load %arg4[%c13_108, %c0_109, %c0_110] : memref<32x96x256xbf16, #tpu.memory_space<vmem>>, vector<1x96x256xbf16>
    %82 = vector.shape_cast %81 : vector<1x96x256xbf16> to vector<96x256xbf16>
    %cst_111 = arith.constant dense<0.000000e+00> : vector<2x256xf32>
    %83 = tpu.matmul %80, %82, %cst_111 {dimension_numbers = #tpu.dot_dimension_numbers<[1], [0], [0], [1], [0, 0, 1, 1], [], []>} : vector<2x96xbf16>, vector<96x256xbf16>, vector<2x256xf32> -> vector<2x256xf32>
    %84 = arith.addf %78, %83 : vector<2x256xf32>
    %c0_112 = arith.constant 0 : index
    %c0_113 = arith.constant 0 : index
    %c14 = arith.constant 14 : index
    %c0_114 = arith.constant 0 : index
    %c0_115 = arith.constant 0 : index
    %85 = vector.load %arg3[%c0_112, %c0_113, %c14, %c0_114, %c0_115] : memref<1x1x32x2x96xbf16, #tpu.memory_space<vmem>>, vector<1x1x1x2x96xbf16>
    %86 = vector.shape_cast %85 : vector<1x1x1x2x96xbf16> to vector<2x96xbf16>
    %c14_116 = arith.constant 14 : index
    %c0_117 = arith.constant 0 : index
    %c0_118 = arith.constant 0 : index
    %87 = vector.load %arg4[%c14_116, %c0_117, %c0_118] : memref<32x96x256xbf16, #tpu.memory_space<vmem>>, vector<1x96x256xbf16>
    %88 = vector.shape_cast %87 : vector<1x96x256xbf16> to vector<96x256xbf16>
    %cst_119 = arith.constant dense<0.000000e+00> : vector<2x256xf32>
    %89 = tpu.matmul %86, %88, %cst_119 {dimension_numbers = #tpu.dot_dimension_numbers<[1], [0], [0], [1], [0, 0, 1, 1], [], []>} : vector<2x96xbf16>, vector<96x256xbf16>, vector<2x256xf32> -> vector<2x256xf32>
    %90 = arith.addf %84, %89 : vector<2x256xf32>
    %c0_120 = arith.constant 0 : index
    %c0_121 = arith.constant 0 : index
    %c15 = arith.constant 15 : index
    %c0_122 = arith.constant 0 : index
    %c0_123 = arith.constant 0 : index
    %91 = vector.load %arg3[%c0_120, %c0_121, %c15, %c0_122, %c0_123] : memref<1x1x32x2x96xbf16, #tpu.memory_space<vmem>>, vector<1x1x1x2x96xbf16>
    %92 = vector.shape_cast %91 : vector<1x1x1x2x96xbf16> to vector<2x96xbf16>
    %c15_124 = arith.constant 15 : index
    %c0_125 = arith.constant 0 : index
    %c0_126 = arith.constant 0 : index
    %93 = vector.load %arg4[%c15_124, %c0_125, %c0_126] : memref<32x96x256xbf16, #tpu.memory_space<vmem>>, vector<1x96x256xbf16>
    %94 = vector.shape_cast %93 : vector<1x96x256xbf16> to vector<96x256xbf16>
    %cst_127 = arith.constant dense<0.000000e+00> : vector<2x256xf32>
    %95 = tpu.matmul %92, %94, %cst_127 {dimension_numbers = #tpu.dot_dimension_numbers<[1], [0], [0], [1], [0, 0, 1, 1], [], []>} : vector<2x96xbf16>, vector<96x256xbf16>, vector<2x256xf32> -> vector<2x256xf32>
    %96 = arith.addf %90, %95 : vector<2x256xf32>
    %c0_128 = arith.constant 0 : index
    %c0_129 = arith.constant 0 : index
    %c16 = arith.constant 16 : index
    %c0_130 = arith.constant 0 : index
    %c0_131 = arith.constant 0 : index
    %97 = vector.load %arg3[%c0_128, %c0_129, %c16, %c0_130, %c0_131] : memref<1x1x32x2x96xbf16, #tpu.memory_space<vmem>>, vector<1x1x1x2x96xbf16>
    %98 = vector.shape_cast %97 : vector<1x1x1x2x96xbf16> to vector<2x96xbf16>
    %c16_132 = arith.constant 16 : index
    %c0_133 = arith.constant 0 : index
    %c0_134 = arith.constant 0 : index
    %99 = vector.load %arg4[%c16_132, %c0_133, %c0_134] : memref<32x96x256xbf16, #tpu.memory_space<vmem>>, vector<1x96x256xbf16>
    %100 = vector.shape_cast %99 : vector<1x96x256xbf16> to vector<96x256xbf16>
    %cst_135 = arith.constant dense<0.000000e+00> : vector<2x256xf32>
    %101 = tpu.matmul %98, %100, %cst_135 {dimension_numbers = #tpu.dot_dimension_numbers<[1], [0], [0], [1], [0, 0, 1, 1], [], []>} : vector<2x96xbf16>, vector<96x256xbf16>, vector<2x256xf32> -> vector<2x256xf32>
    %102 = arith.addf %96, %101 : vector<2x256xf32>
    %c0_136 = arith.constant 0 : index
    %c0_137 = arith.constant 0 : index
    %c17 = arith.constant 17 : index
    %c0_138 = arith.constant 0 : index
    %c0_139 = arith.constant 0 : index
    %103 = vector.load %arg3[%c0_136, %c0_137, %c17, %c0_138, %c0_139] : memref<1x1x32x2x96xbf16, #tpu.memory_space<vmem>>, vector<1x1x1x2x96xbf16>
    %104 = vector.shape_cast %103 : vector<1x1x1x2x96xbf16> to vector<2x96xbf16>
    %c17_140 = arith.constant 17 : index
    %c0_141 = arith.constant 0 : index
    %c0_142 = arith.constant 0 : index
    %105 = vector.load %arg4[%c17_140, %c0_141, %c0_142] : memref<32x96x256xbf16, #tpu.memory_space<vmem>>, vector<1x96x256xbf16>
    %106 = vector.shape_cast %105 : vector<1x96x256xbf16> to vector<96x256xbf16>
    %cst_143 = arith.constant dense<0.000000e+00> : vector<2x256xf32>
    %107 = tpu.matmul %104, %106, %cst_143 {dimension_numbers = #tpu.dot_dimension_numbers<[1], [0], [0], [1], [0, 0, 1, 1], [], []>} : vector<2x96xbf16>, vector<96x256xbf16>, vector<2x256xf32> -> vector<2x256xf32>
    %108 = arith.addf %102, %107 : vector<2x256xf32>
    %c0_144 = arith.constant 0 : index
    %c0_145 = arith.constant 0 : index
    %c18 = arith.constant 18 : index
    %c0_146 = arith.constant 0 : index
    %c0_147 = arith.constant 0 : index
    %109 = vector.load %arg3[%c0_144, %c0_145, %c18, %c0_146, %c0_147] : memref<1x1x32x2x96xbf16, #tpu.memory_space<vmem>>, vector<1x1x1x2x96xbf16>
    %110 = vector.shape_cast %109 : vector<1x1x1x2x96xbf16> to vector<2x96xbf16>
    %c18_148 = arith.constant 18 : index
    %c0_149 = arith.constant 0 : index
    %c0_150 = arith.constant 0 : index
    %111 = vector.load %arg4[%c18_148, %c0_149, %c0_150] : memref<32x96x256xbf16, #tpu.memory_space<vmem>>, vector<1x96x256xbf16>
    %112 = vector.shape_cast %111 : vector<1x96x256xbf16> to vector<96x256xbf16>
    %cst_151 = arith.constant dense<0.000000e+00> : vector<2x256xf32>
    %113 = tpu.matmul %110, %112, %cst_151 {dimension_numbers = #tpu.dot_dimension_numbers<[1], [0], [0], [1], [0, 0, 1, 1], [], []>} : vector<2x96xbf16>, vector<96x256xbf16>, vector<2x256xf32> -> vector<2x256xf32>
    %114 = arith.addf %108, %113 : vector<2x256xf32>
    %c0_152 = arith.constant 0 : index
    %c0_153 = arith.constant 0 : index
    %c19 = arith.constant 19 : index
    %c0_154 = arith.constant 0 : index
    %c0_155 = arith.constant 0 : index
    %115 = vector.load %arg3[%c0_152, %c0_153, %c19, %c0_154, %c0_155] : memref<1x1x32x2x96xbf16, #tpu.memory_space<vmem>>, vector<1x1x1x2x96xbf16>
    %116 = vector.shape_cast %115 : vector<1x1x1x2x96xbf16> to vector<2x96xbf16>
    %c19_156 = arith.constant 19 : index
    %c0_157 = arith.constant 0 : index
    %c0_158 = arith.constant 0 : index
    %117 = vector.load %arg4[%c19_156, %c0_157, %c0_158] : memref<32x96x256xbf16, #tpu.memory_space<vmem>>, vector<1x96x256xbf16>
    %118 = vector.shape_cast %117 : vector<1x96x256xbf16> to vector<96x256xbf16>
    %cst_159 = arith.constant dense<0.000000e+00> : vector<2x256xf32>
    %119 = tpu.matmul %116, %118, %cst_159 {dimension_numbers = #tpu.dot_dimension_numbers<[1], [0], [0], [1], [0, 0, 1, 1], [], []>} : vector<2x96xbf16>, vector<96x256xbf16>, vector<2x256xf32> -> vector<2x256xf32>
    %120 = arith.addf %114, %119 : vector<2x256xf32>
    %c0_160 = arith.constant 0 : index
    %c0_161 = arith.constant 0 : index
    %c20 = arith.constant 20 : index
    %c0_162 = arith.constant 0 : index
    %c0_163 = arith.constant 0 : index
    %121 = vector.load %arg3[%c0_160, %c0_161, %c20, %c0_162, %c0_163] : memref<1x1x32x2x96xbf16, #tpu.memory_space<vmem>>, vector<1x1x1x2x96xbf16>
    %122 = vector.shape_cast %121 : vector<1x1x1x2x96xbf16> to vector<2x96xbf16>
    %c20_164 = arith.constant 20 : index
    %c0_165 = arith.constant 0 : index
    %c0_166 = arith.constant 0 : index
    %123 = vector.load %arg4[%c20_164, %c0_165, %c0_166] : memref<32x96x256xbf16, #tpu.memory_space<vmem>>, vector<1x96x256xbf16>
    %124 = vector.shape_cast %123 : vector<1x96x256xbf16> to vector<96x256xbf16>
    %cst_167 = arith.constant dense<0.000000e+00> : vector<2x256xf32>
    %125 = tpu.matmul %122, %124, %cst_167 {dimension_numbers = #tpu.dot_dimension_numbers<[1], [0], [0], [1], [0, 0, 1, 1], [], []>} : vector<2x96xbf16>, vector<96x256xbf16>, vector<2x256xf32> -> vector<2x256xf32>
    %126 = arith.addf %120, %125 : vector<2x256xf32>
    %c0_168 = arith.constant 0 : index
    %c0_169 = arith.constant 0 : index
    %c21 = arith.constant 21 : index
    %c0_170 = arith.constant 0 : index
    %c0_171 = arith.constant 0 : index
    %127 = vector.load %arg3[%c0_168, %c0_169, %c21, %c0_170, %c0_171] : memref<1x1x32x2x96xbf16, #tpu.memory_space<vmem>>, vector<1x1x1x2x96xbf16>
    %128 = vector.shape_cast %127 : vector<1x1x1x2x96xbf16> to vector<2x96xbf16>
    %c21_172 = arith.constant 21 : index
    %c0_173 = arith.constant 0 : index
    %c0_174 = arith.constant 0 : index
    %129 = vector.load %arg4[%c21_172, %c0_173, %c0_174] : memref<32x96x256xbf16, #tpu.memory_space<vmem>>, vector<1x96x256xbf16>
    %130 = vector.shape_cast %129 : vector<1x96x256xbf16> to vector<96x256xbf16>
    %cst_175 = arith.constant dense<0.000000e+00> : vector<2x256xf32>
    %131 = tpu.matmul %128, %130, %cst_175 {dimension_numbers = #tpu.dot_dimension_numbers<[1], [0], [0], [1], [0, 0, 1, 1], [], []>} : vector<2x96xbf16>, vector<96x256xbf16>, vector<2x256xf32> -> vector<2x256xf32>
    %132 = arith.addf %126, %131 : vector<2x256xf32>
    %c0_176 = arith.constant 0 : index
    %c0_177 = arith.constant 0 : index
    %c22 = arith.constant 22 : index
    %c0_178 = arith.constant 0 : index
    %c0_179 = arith.constant 0 : index
    %133 = vector.load %arg3[%c0_176, %c0_177, %c22, %c0_178, %c0_179] : memref<1x1x32x2x96xbf16, #tpu.memory_space<vmem>>, vector<1x1x1x2x96xbf16>
    %134 = vector.shape_cast %133 : vector<1x1x1x2x96xbf16> to vector<2x96xbf16>
    %c22_180 = arith.constant 22 : index
    %c0_181 = arith.constant 0 : index
    %c0_182 = arith.constant 0 : index
    %135 = vector.load %arg4[%c22_180, %c0_181, %c0_182] : memref<32x96x256xbf16, #tpu.memory_space<vmem>>, vector<1x96x256xbf16>
    %136 = vector.shape_cast %135 : vector<1x96x256xbf16> to vector<96x256xbf16>
    %cst_183 = arith.constant dense<0.000000e+00> : vector<2x256xf32>
    %137 = tpu.matmul %134, %136, %cst_183 {dimension_numbers = #tpu.dot_dimension_numbers<[1], [0], [0], [1], [0, 0, 1, 1], [], []>} : vector<2x96xbf16>, vector<96x256xbf16>, vector<2x256xf32> -> vector<2x256xf32>
    %138 = arith.addf %132, %137 : vector<2x256xf32>
    %c0_184 = arith.constant 0 : index
    %c0_185 = arith.constant 0 : index
    %c23 = arith.constant 23 : index
    %c0_186 = arith.constant 0 : index
    %c0_187 = arith.constant 0 : index
    %139 = vector.load %arg3[%c0_184, %c0_185, %c23, %c0_186, %c0_187] : memref<1x1x32x2x96xbf16, #tpu.memory_space<vmem>>, vector<1x1x1x2x96xbf16>
    %140 = vector.shape_cast %139 : vector<1x1x1x2x96xbf16> to vector<2x96xbf16>
    %c23_188 = arith.constant 23 : index
    %c0_189 = arith.constant 0 : index
    %c0_190 = arith.constant 0 : index
    %141 = vector.load %arg4[%c23_188, %c0_189, %c0_190] : memref<32x96x256xbf16, #tpu.memory_space<vmem>>, vector<1x96x256xbf16>
    %142 = vector.shape_cast %141 : vector<1x96x256xbf16> to vector<96x256xbf16>
    %cst_191 = arith.constant dense<0.000000e+00> : vector<2x256xf32>
    %143 = tpu.matmul %140, %142, %cst_191 {dimension_numbers = #tpu.dot_dimension_numbers<[1], [0], [0], [1], [0, 0, 1, 1], [], []>} : vector<2x96xbf16>, vector<96x256xbf16>, vector<2x256xf32> -> vector<2x256xf32>
    %144 = arith.addf %138, %143 : vector<2x256xf32>
    %c0_192 = arith.constant 0 : index
    %c0_193 = arith.constant 0 : index
    %c24 = arith.constant 24 : index
    %c0_194 = arith.constant 0 : index
    %c0_195 = arith.constant 0 : index
    %145 = vector.load %arg3[%c0_192, %c0_193, %c24, %c0_194, %c0_195] : memref<1x1x32x2x96xbf16, #tpu.memory_space<vmem>>, vector<1x1x1x2x96xbf16>
    %146 = vector.shape_cast %145 : vector<1x1x1x2x96xbf16> to vector<2x96xbf16>
    %c24_196 = arith.constant 24 : index
    %c0_197 = arith.constant 0 : index
    %c0_198 = arith.constant 0 : index
    %147 = vector.load %arg4[%c24_196, %c0_197, %c0_198] : memref<32x96x256xbf16, #tpu.memory_space<vmem>>, vector<1x96x256xbf16>
    %148 = vector.shape_cast %147 : vector<1x96x256xbf16> to vector<96x256xbf16>
    %cst_199 = arith.constant dense<0.000000e+00> : vector<2x256xf32>
    %149 = tpu.matmul %146, %148, %cst_199 {dimension_numbers = #tpu.dot_dimension_numbers<[1], [0], [0], [1], [0, 0, 1, 1], [], []>} : vector<2x96xbf16>, vector<96x256xbf16>, vector<2x256xf32> -> vector<2x256xf32>
    %150 = arith.addf %144, %149 : vector<2x256xf32>
    %c0_200 = arith.constant 0 : index
    %c0_201 = arith.constant 0 : index
    %c25 = arith.constant 25 : index
    %c0_202 = arith.constant 0 : index
    %c0_203 = arith.constant 0 : index
    %151 = vector.load %arg3[%c0_200, %c0_201, %c25, %c0_202, %c0_203] : memref<1x1x32x2x96xbf16, #tpu.memory_space<vmem>>, vector<1x1x1x2x96xbf16>
    %152 = vector.shape_cast %151 : vector<1x1x1x2x96xbf16> to vector<2x96xbf16>
    %c25_204 = arith.constant 25 : index
    %c0_205 = arith.constant 0 : index
    %c0_206 = arith.constant 0 : index
    %153 = vector.load %arg4[%c25_204, %c0_205, %c0_206] : memref<32x96x256xbf16, #tpu.memory_space<vmem>>, vector<1x96x256xbf16>
    %154 = vector.shape_cast %153 : vector<1x96x256xbf16> to vector<96x256xbf16>
    %cst_207 = arith.constant dense<0.000000e+00> : vector<2x256xf32>
    %155 = tpu.matmul %152, %154, %cst_207 {dimension_numbers = #tpu.dot_dimension_numbers<[1], [0], [0], [1], [0, 0, 1, 1], [], []>} : vector<2x96xbf16>, vector<96x256xbf16>, vector<2x256xf32> -> vector<2x256xf32>
    %156 = arith.addf %150, %155 : vector<2x256xf32>
    %c0_208 = arith.constant 0 : index
    %c0_209 = arith.constant 0 : index
    %c26 = arith.constant 26 : index
    %c0_210 = arith.constant 0 : index
    %c0_211 = arith.constant 0 : index
    %157 = vector.load %arg3[%c0_208, %c0_209, %c26, %c0_210, %c0_211] : memref<1x1x32x2x96xbf16, #tpu.memory_space<vmem>>, vector<1x1x1x2x96xbf16>
    %158 = vector.shape_cast %157 : vector<1x1x1x2x96xbf16> to vector<2x96xbf16>
    %c26_212 = arith.constant 26 : index
    %c0_213 = arith.constant 0 : index
    %c0_214 = arith.constant 0 : index
    %159 = vector.load %arg4[%c26_212, %c0_213, %c0_214] : memref<32x96x256xbf16, #tpu.memory_space<vmem>>, vector<1x96x256xbf16>
    %160 = vector.shape_cast %159 : vector<1x96x256xbf16> to vector<96x256xbf16>
    %cst_215 = arith.constant dense<0.000000e+00> : vector<2x256xf32>
    %161 = tpu.matmul %158, %160, %cst_215 {dimension_numbers = #tpu.dot_dimension_numbers<[1], [0], [0], [1], [0, 0, 1, 1], [], []>} : vector<2x96xbf16>, vector<96x256xbf16>, vector<2x256xf32> -> vector<2x256xf32>
    %162 = arith.addf %156, %161 : vector<2x256xf32>
    %c0_216 = arith.constant 0 : index
    %c0_217 = arith.constant 0 : index
    %c27 = arith.constant 27 : index
    %c0_218 = arith.constant 0 : index
    %c0_219 = arith.constant 0 : index
    %163 = vector.load %arg3[%c0_216, %c0_217, %c27, %c0_218, %c0_219] : memref<1x1x32x2x96xbf16, #tpu.memory_space<vmem>>, vector<1x1x1x2x96xbf16>
    %164 = vector.shape_cast %163 : vector<1x1x1x2x96xbf16> to vector<2x96xbf16>
    %c27_220 = arith.constant 27 : index
    %c0_221 = arith.constant 0 : index
    %c0_222 = arith.constant 0 : index
    %165 = vector.load %arg4[%c27_220, %c0_221, %c0_222] : memref<32x96x256xbf16, #tpu.memory_space<vmem>>, vector<1x96x256xbf16>
    %166 = vector.shape_cast %165 : vector<1x96x256xbf16> to vector<96x256xbf16>
    %cst_223 = arith.constant dense<0.000000e+00> : vector<2x256xf32>
    %167 = tpu.matmul %164, %166, %cst_223 {dimension_numbers = #tpu.dot_dimension_numbers<[1], [0], [0], [1], [0, 0, 1, 1], [], []>} : vector<2x96xbf16>, vector<96x256xbf16>, vector<2x256xf32> -> vector<2x256xf32>
    %168 = arith.addf %162, %167 : vector<2x256xf32>
    %c0_224 = arith.constant 0 : index
    %c0_225 = arith.constant 0 : index
    %c28 = arith.constant 28 : index
    %c0_226 = arith.constant 0 : index
    %c0_227 = arith.constant 0 : index
    %169 = vector.load %arg3[%c0_224, %c0_225, %c28, %c0_226, %c0_227] : memref<1x1x32x2x96xbf16, #tpu.memory_space<vmem>>, vector<1x1x1x2x96xbf16>
    %170 = vector.shape_cast %169 : vector<1x1x1x2x96xbf16> to vector<2x96xbf16>
    %c28_228 = arith.constant 28 : index
    %c0_229 = arith.constant 0 : index
    %c0_230 = arith.constant 0 : index
    %171 = vector.load %arg4[%c28_228, %c0_229, %c0_230] : memref<32x96x256xbf16, #tpu.memory_space<vmem>>, vector<1x96x256xbf16>
    %172 = vector.shape_cast %171 : vector<1x96x256xbf16> to vector<96x256xbf16>
    %cst_231 = arith.constant dense<0.000000e+00> : vector<2x256xf32>
    %173 = tpu.matmul %170, %172, %cst_231 {dimension_numbers = #tpu.dot_dimension_numbers<[1], [0], [0], [1], [0, 0, 1, 1], [], []>} : vector<2x96xbf16>, vector<96x256xbf16>, vector<2x256xf32> -> vector<2x256xf32>
    %174 = arith.addf %168, %173 : vector<2x256xf32>
    %c0_232 = arith.constant 0 : index
    %c0_233 = arith.constant 0 : index
    %c29 = arith.constant 29 : index
    %c0_234 = arith.constant 0 : index
    %c0_235 = arith.constant 0 : index
    %175 = vector.load %arg3[%c0_232, %c0_233, %c29, %c0_234, %c0_235] : memref<1x1x32x2x96xbf16, #tpu.memory_space<vmem>>, vector<1x1x1x2x96xbf16>
    %176 = vector.shape_cast %175 : vector<1x1x1x2x96xbf16> to vector<2x96xbf16>
    %c29_236 = arith.constant 29 : index
    %c0_237 = arith.constant 0 : index
    %c0_238 = arith.constant 0 : index
    %177 = vector.load %arg4[%c29_236, %c0_237, %c0_238] : memref<32x96x256xbf16, #tpu.memory_space<vmem>>, vector<1x96x256xbf16>
    %178 = vector.shape_cast %177 : vector<1x96x256xbf16> to vector<96x256xbf16>
    %cst_239 = arith.constant dense<0.000000e+00> : vector<2x256xf32>
    %179 = tpu.matmul %176, %178, %cst_239 {dimension_numbers = #tpu.dot_dimension_numbers<[1], [0], [0], [1], [0, 0, 1, 1], [], []>} : vector<2x96xbf16>, vector<96x256xbf16>, vector<2x256xf32> -> vector<2x256xf32>
    %180 = arith.addf %174, %179 : vector<2x256xf32>
    %c0_240 = arith.constant 0 : index
    %c0_241 = arith.constant 0 : index
    %c30 = arith.constant 30 : index
    %c0_242 = arith.constant 0 : index
    %c0_243 = arith.constant 0 : index
    %181 = vector.load %arg3[%c0_240, %c0_241, %c30, %c0_242, %c0_243] : memref<1x1x32x2x96xbf16, #tpu.memory_space<vmem>>, vector<1x1x1x2x96xbf16>
    %182 = vector.shape_cast %181 : vector<1x1x1x2x96xbf16> to vector<2x96xbf16>
    %c30_244 = arith.constant 30 : index
    %c0_245 = arith.constant 0 : index
    %c0_246 = arith.constant 0 : index
    %183 = vector.load %arg4[%c30_244, %c0_245, %c0_246] : memref<32x96x256xbf16, #tpu.memory_space<vmem>>, vector<1x96x256xbf16>
    %184 = vector.shape_cast %183 : vector<1x96x256xbf16> to vector<96x256xbf16>
    %cst_247 = arith.constant dense<0.000000e+00> : vector<2x256xf32>
    %185 = tpu.matmul %182, %184, %cst_247 {dimension_numbers = #tpu.dot_dimension_numbers<[1], [0], [0], [1], [0, 0, 1, 1], [], []>} : vector<2x96xbf16>, vector<96x256xbf16>, vector<2x256xf32> -> vector<2x256xf32>
    %186 = arith.addf %180, %185 : vector<2x256xf32>
    %c0_248 = arith.constant 0 : index
    %c0_249 = arith.constant 0 : index
    %c31 = arith.constant 31 : index
    %c0_250 = arith.constant 0 : index
    %c0_251 = arith.constant 0 : index
    %187 = vector.load %arg3[%c0_248, %c0_249, %c31, %c0_250, %c0_251] : memref<1x1x32x2x96xbf16, #tpu.memory_space<vmem>>, vector<1x1x1x2x96xbf16>
    %188 = vector.shape_cast %187 : vector<1x1x1x2x96xbf16> to vector<2x96xbf16>
    %c31_252 = arith.constant 31 : index
    %c0_253 = arith.constant 0 : index
    %c0_254 = arith.constant 0 : index
    %189 = vector.load %arg4[%c31_252, %c0_253, %c0_254] : memref<32x96x256xbf16, #tpu.memory_space<vmem>>, vector<1x96x256xbf16>
    %190 = vector.shape_cast %189 : vector<1x96x256xbf16> to vector<96x256xbf16>
    %cst_255 = arith.constant dense<0.000000e+00> : vector<2x256xf32>
    %191 = tpu.matmul %188, %190, %cst_255 {dimension_numbers = #tpu.dot_dimension_numbers<[1], [0], [0], [1], [0, 0, 1, 1], [], []>} : vector<2x96xbf16>, vector<96x256xbf16>, vector<2x256xf32> -> vector<2x256xf32>
    %192 = arith.addf %186, %191 : vector<2x256xf32>
    %c0_256 = arith.constant 0 : index
    %c0_257 = arith.constant 0 : index
    %193 = vector.load %arg5[%c0_256, %c0_257] : memref<1x256xf32, #tpu.memory_space<vmem>>, vector<1x256xf32>
    %194 = vector.broadcast %193 : vector<1x256xf32> to vector<2x256xf32>
    %195 = arith.addf %192, %194 : vector<2x256xf32>
    %c0_258 = arith.constant 0 : index
    %c0_259 = arith.constant 0 : index
    %c0_260 = arith.constant 0 : index
    %c0_261 = arith.constant 0 : index
    %196 = vector.load %arg6[%c0_258, %c0_259, %c0_260, %c0_261] : memref<1x1x2x256xf32, #tpu.memory_space<vmem>>, vector<1x1x2x256xf32>
    %197 = vector.shape_cast %196 : vector<1x1x2x256xf32> to vector<2x256xf32>
    %198 = vector.shape_cast %195 : vector<2x256xf32> to vector<1x1x2x256xf32>
    tpu.vector_store %arg6[%c0_258, %c0_259, %c0_260, %c0_261], %198 {strides = array<i32>} : memref<1x1x2x256xf32, #tpu.memory_space<vmem>>, vector<1x1x2x256xf32>,
    return
  }
  func.func @transform_0(%arg0: i32, %arg1: i32, %arg2: i32) -> (i32, i32, i32, i32, i32) {
    %c0_i32 = arith.constant 0 : i32
    %c0_i32_0 = arith.constant 0 : i32
    %c0_i32_1 = arith.constant 0 : i32
    %c0_i32_2 = arith.constant 0 : i32
    return %arg1, %arg2, %c0_i32, %c0_i32_0, %c0_i32_1 : i32, i32, i32, i32, i32
  }
  func.func @transform_1(%arg0: i32, %arg1: i32, %arg2: i32) -> (i32, i32, i32) {
    %c0_i32 = arith.constant 0 : i32
    %c0_i32_0 = arith.constant 0 : i32
    %c0_i32_1 = arith.constant 0 : i32
    return %c0_i32, %c0_i32_0, %arg0 : i32, i32, i32
  }
  func.func @transform_2(%arg0: i32, %arg1: i32, %arg2: i32) -> (i32, i32) {
    %c0_i32 = arith.constant 0 : i32
    %c0_i32_0 = arith.constant 0 : i32
    return %c0_i32, %arg0 : i32, i32
  }
  func.func @transform_3(%arg0: i32, %arg1: i32, %arg2: i32) -> (i32, i32, i32, i32) {
    %c0_i32 = arith.constant 0 : i32
    %c0_i32_0 = arith.constant 0 : i32
    return %arg1, %arg2, %c0_i32, %arg0 : i32, i32, i32, i32
  }
}

</mosaic_0001>

<llo_original>
// kernel: backbone_forward.1
$region0: #{backbone_forward.1}
  #allocation0 [shape = 'u32[]', space=smem, size = 0x4, offset = 0x4, fixed_abs, tag = 'smem constant byte address 0x4 - core index']
  #allocation1 [shape = 'u32[144,128]{1,0:T(1,128)}', space=vmem, size = 0x12000, scoped, tag = 'internal scratch']
  %s0 = inlined_call_operand.vmem [shape: bf16[2,2,32,2,96], index: 0, kind: input, shape index: {}]
  %s1 = inlined_call_operand.vmem [shape: bf16[32,96,256], index: 1, kind: input, shape index: {}]
  %s2 = inlined_call_operand.vmem [shape: f32[1,256], index: 2, kind: input, shape index: {}]
  %s3 = inlined_call_operand.vmem [shape: f32[2,2,2,256], index: 3, kind: output, shape index: {}]
  %s4 = sld [smem:[#allocation0]]
  $region45: #{backbone_forward.1} parent=0
    _
  %s6 = ssub.s32 1, %s4
  %s7 = scalar_select 0, %s6, %s4
  loop: start=0, step=1, limit=6
  $region2: #{backbone_forward.1} parent=0 // loop_pre_header
    _
  $region3: #{backbone_forward.1} parent=0 // loop_header
    %s9 = sphi 0, %s13
    %p10 = scmp.ge.s32.totalorder %s9, 6
    %s16 = sphi 0, %s35
    %s17 = sphi 0, %s31
    %s18 = sphi 0, %s27
    %s19 = sphi 0, %s16
    %s20 = sphi 0, %s17
    %s21 = sphi 0, %s18
    %s22 = sphi 0, %s19
    %s23 = sphi 0, %s20
    %s24 = sphi 0, %s21
    %s40 = sphi 0, %s42
    %s43 = sphi 0, %s40
    %s44 = sphi 0, %s43
    %s60 = sphi 0, %s44
    %s66 = sphi 0, %s68
    %s69 = sphi 0, %s66
    %s70 = sphi 0, %s69
    %s86 = sphi 0, %s70
    %s92 = sphi 0, %s94
    %s95 = sphi 0, %s92
    %s96 = sphi 0, %s95
    %s112 = sphi 0, %s96
    %s122 = sphi 0, %s124
    %s125 = sphi 0, %s122
    %s126 = sphi 0, %s125
    %s142 = sphi 0, %s126
  $region4: #{backbone_forward.1} parent=0 // loop_header_branch
    %12 = sbr.rel (%p10) target = $region8
  $region5: #{backbone_forward.1} parent=0 // loop_body
    %s14 = ssub.s32 %s9, 1
    %s15 = ssub.s32 %s9, 2
    %s25 = sadd.s32 1, %s18
    %p26 = scmp.ge.s32.totalorder %s25, 2
    %s27 = scalar_select %p26, 0, %s25
    %s28 = sadd.s32 1, %s17
    %s29 = scalar_select %p26, %s28, %s17
    %p30 = scmp.ge.s32.totalorder %s29, 2
    %s31 = scalar_select %p30, 0, %s29
    %s32 = sadd.s32 1, %s16
    %s33 = scalar_select %p30, %s32, %s16
    %p34 = scmp.ge.s32.totalorder %s33, 1
    %s35 = scalar_select %p34, 0, %s33
    %s36 = ssub.s32 %s17, %s31
    %s37 = ssub.s32 %s18, %s27
    %s38 = sor.u32 %s36, %s37
    %p39 = scmp.eq.s32.totalorder %s38, 0
    %s41 = sadd.s32 %s40, 1
    %s42 = scalar_select %p39, %s40, %s41
    %p45 = pneg %p39
    %p46 = scmp.eq.s32.totalorder %s9, 3
    %p47 = por %p45, %p46
    %p48 = scmp.ne.s32.totalorder %s40, %s43
    %p49 = scmp.eq.s32.totalorder %s9, 0
    %p50 = por %p48, %p49
    %p51 = scmp.ne.s32.totalorder %s40, %s43
    %p52 = scmp.eq.s32.totalorder %s14, 3
    %p53 = por %p51, %p52
    %p54 = scmp.ne.s32.totalorder %s43, %s44
    %p55 = scmp.eq.s32.totalorder %s14, 0
    %p56 = por %p54, %p55
    %p57 = scmp.ne.s32.totalorder %s43, %s44
    %p58 = scmp.eq.s32.totalorder %s15, 3
    %p59 = por %p57, %p58
    %p61 = scmp.ne.s32.totalorder %s44, %s60
    %p62 = scmp.eq.s32.totalorder %s15, 0
    %p63 = por %p61, %p62
    %s64 = ssub.s32 %s16, %s35
    %p65 = scmp.eq.s32.totalorder %s64, 0
    %s67 = sadd.s32 %s66, 1
    %s68 = scalar_select %p65, %s66, %s67
    %p71 = pneg %p65
    %p72 = scmp.eq.s32.totalorder %s9, 3
    %p73 = por %p71, %p72
    %p74 = scmp.ne.s32.totalorder %s66, %s69
    %p75 = scmp.eq.s32.totalorder %s9, 0
    %p76 = por %p74, %p75
    %p77 = scmp.ne.s32.totalorder %s66, %s69
    %p78 = scmp.eq.s32.totalorder %s14, 3
    %p79 = por %p77, %p78
    %p80 = scmp.ne.s32.totalorder %s69, %s70
    %p81 = scmp.eq.s32.totalorder %s14, 0
    %p82 = por %p80, %p81
    %p83 = scmp.ne.s32.totalorder %s69, %s70
    %p84 = scmp.eq.s32.totalorder %s15, 3
    %p85 = por %p83, %p84
    %p87 = scmp.ne.s32.totalorder %s70, %s86
    %p88 = scmp.eq.s32.totalorder %s15, 0
    %p89 = por %p87, %p88
    %s90 = ssub.s32 %s16, %s35
    %p91 = scmp.eq.s32.totalorder %s90, 0
    %s93 = sadd.s32 %s92, 1
    %s94 = scalar_select %p91, %s92, %s93
    %p97 = pneg %p91
    %p98 = scmp.eq.s32.totalorder %s9, 3
    %p99 = por %p97, %p98
    %p100 = scmp.ne.s32.totalorder %s92, %s95
    %p101 = scmp.eq.s32.totalorder %s9, 0
    %p102 = por %p100, %p101
    %p103 = scmp.ne.s32.totalorder %s92, %s95
    %p104 = scmp.eq.s32.totalorder %s14, 3
    %p105 = por %p103, %p104
    %p106 = scmp.ne.s32.totalorder %s95, %s96
    %p107 = scmp.eq.s32.totalorder %s14, 0
    %p108 = por %p106, %p107
    %p109 = scmp.ne.s32.totalorder %s95, %s96
    %p110 = scmp.eq.s32.totalorder %s15, 3
    %p111 = por %p109, %p110
    %p113 = scmp.ne.s32.totalorder %s96, %s112
    %p114 = scmp.eq.s32.totalorder %s15, 0
    %p115 = por %p113, %p114
    %s116 = ssub.s32 %s17, %s31
    %s117 = ssub.s32 %s18, %s27
    %s118 = sor.u32 %s116, %s117
    %s119 = ssub.s32 %s16, %s35
    %s120 = sor.u32 %s118, %s119
    %p121 = scmp.eq.s32.totalorder %s120, 0
    %s123 = sadd.s32 %s122, 1
    %s124 = scalar_select %p121, %s122, %s123
    %p127 = pneg %p121
    %p128 = scmp.eq.s32.totalorder %s9, 3
    %p129 = por %p127, %p128
    %p130 = scmp.ne.s32.totalorder %s122, %s125
    %p131 = scmp.eq.s32.totalorder %s9, 0
    %p132 = por %p130, %p131
    %p133 = scmp.ne.s32.totalorder %s122, %s125
    %p134 = scmp.eq.s32.totalorder %s14, 3
    %p135 = por %p133, %p134
    %p136 = scmp.ne.s32.totalorder %s125, %s126
    %p137 = scmp.eq.s32.totalorder %s14, 0
    %p138 = por %p136, %p137
    %p139 = scmp.ne.s32.totalorder %s125, %s126
    %p140 = scmp.eq.s32.totalorder %s15, 3
    %p141 = por %p139, %p140
    %p143 = scmp.ne.s32.totalorder %s126, %s142
    %p144 = scmp.eq.s32.totalorder %s15, 0
    %p145 = por %p143, %p144
    %p146 = scmp.le.s32.totalorder 1, %s9
    %p147 = scmp.lt.s32.totalorder %s9, 5
    %p148 = pnand %p146, %p147
    %p149 = pneg %p148
    // Predicated region
    $region9: #{backbone_forward.1} parent=5 // pred_check
      _
    $region10: #{backbone_forward.1} parent=5 // pred_check_branch
      %151 = sbr.rel (%p148) target = $region12
    $region11: #{backbone_forward.1} parent=5 // pred_region
      %s152 = ssub.s32 %s9, 1
      // Predicated region
      $region13: #{backbone_forward.1} parent=11 // pred_check
        %p153 = pneg %p82
      $region14: #{backbone_forward.1} parent=11 // pred_check_branch
        %155 = sbr.rel (%p153) target = $region16
      $region15: #{backbone_forward.1} parent=11 // pred_region
        %s156 = smul.u32 2, %s19
        %p157 = scmp.lt.s32.totalorder %s156, 1
        %s158 = scalar_select %p157, %s156, 1
        %s159 = smul.addr %s158, 4
        %s160 = scalar_lea.vmem %s1, %s159
        %s161 = smul.u32 2, %s19
      $region16: #{backbone_forward.1} parent=11 // pred_fallthru
        _
      // Predicated region
      $region17: #{backbone_forward.1} parent=11 // pred_check
        %p162 = pneg %p108
      $region18: #{backbone_forward.1} parent=11 // pred_check_branch
        %164 = sbr.rel (%p162) target = $region20
      $region19: #{backbone_forward.1} parent=11 // pred_region
        %s165 = smul.u32 2, %s19
        %p166 = scmp.lt.s32.totalorder %s165, 1
        %s167 = scalar_select %p166, %s165, 1
        %s168 = scalar_lea.vmem %s2, %s167
        %s169 = smul.u32 2, %s19
      $region20: #{backbone_forward.1} parent=11 // pred_fallthru
        _
    $region12: #{backbone_forward.1} parent=5 // pred_fallthru
      _
    %p170 = scmp.lt.s32.totalorder %s9, 4
    // Predicated region
    $region21: #{backbone_forward.1} parent=5 // pred_check
      %p171 = pneg %p170
    $region22: #{backbone_forward.1} parent=5 // pred_check_branch
      %173 = sbr.rel (%p171) target = $region24
    $region23: #{backbone_forward.1} parent=5 // pred_region
      // Predicated region
      $region25: #{backbone_forward.1} parent=23 // pred_check
        %p174 = pneg %p50
      $region26: #{backbone_forward.1} parent=23 // pred_check_branch
        %176 = sbr.rel (%p174) target = $region28
      $region27: #{backbone_forward.1} parent=23 // pred_region
        %p177 = scmp.lt.s32.totalorder %s17, 1
        %s178 = scalar_select %p177, %s17, 1
        %p179 = scmp.lt.s32.totalorder %s18, 1
        %s180 = scalar_select %p179, %s18, 1
        %s181 = smul.addr %s180, 32
        %s182 = smul.addr %s178, 64
        %s183 = sadd.s32 %s181, %s182
        %s184 = scalar_lea.vmem %s0, %s183
      $region28: #{backbone_forward.1} parent=23 // pred_fallthru
        _
    $region24: #{backbone_forward.1} parent=5 // pred_fallthru
      _
    %p185 = scmp.le.s32.totalorder 1, %s9
    %p186 = scmp.lt.s32.totalorder %s9, 5
    %p187 = pnand %p185, %p186
    %p188 = pneg %p187
    // Predicated region
    $region29: #{backbone_forward.1} parent=5 // pred_check
      _
    $region30: #{backbone_forward.1} parent=5 // pred_check_branch
      %190 = sbr.rel (%p187) target = $region32
    $region31: #{backbone_forward.1} parent=5 // pred_region
      %s191 = ssub.s32 %s9, 1
      %p192 = scmp.lt.s32.totalorder %s20, 1
      %s193 = scalar_select %p192, %s20, 1
      %p194 = scmp.lt.s32.totalorder %s21, 1
      %s195 = scalar_select %p194, %s21, 1
      %s196 = smul.addr %s195, 32
      %s197 = smul.addr %s193, 64
      %s198 = sadd.s32 %s196, %s197
      %s199 = scalar_lea.vmem %s0, %s198
      %p200 = pneg %p56
      %p201 = pneg %p53
      %s202 = smul.u32 2, %s19
      %p203 = scmp.lt.s32.totalorder %s202, 1
      %s204 = scalar_select %p203, %s202, 1
      %s205 = smul.addr %s204, 4
      %s206 = scalar_lea.vmem %s1, %s205
      %p207 = pneg %p82
      %p208 = pneg %p79
      %s209 = smul.u32 2, %s19
      %p210 = scmp.lt.s32.totalorder %s209, 1
      %s211 = scalar_select %p210, %s209, 1
      %s212 = scalar_lea.vmem %s2, %s211
      %p213 = pneg %p108
      %p214 = pneg %p105
      %p215 = pneg %p138
      %p216 = pneg %p135
      %s217 = smul.u32 2, %s19
      %p218 = scmp.lt.s32.totalorder %s20, 1
      %s219 = scalar_select %p218, %s20, 1
      %p220 = scmp.lt.s32.totalorder %s21, 1
      %s221 = scalar_select %p220, %s21, 1
      %p222 = scmp.lt.s32.totalorder %s217, 1
      %s223 = scalar_select %p222, %s217, 1
      %s224 = smul.addr %s221, 2
      %s225 = sadd.s32 %s223, %s224
      %s226 = smul.addr %s219, 4
      %s227 = sadd.s32 %s225, %s226
      %s228 = smul.addr %s227, 2
      %s229 = scalar_lea.vmem %s3, %s228
      %p230 = scmp.lt.s32.totalorder %s20, 1
      %s231 = scalar_select %p230, %s20, 1
      %p232 = scmp.lt.s32.totalorder %s21, 1
      %s233 = scalar_select %p232, %s21, 1
      %s234 = smul.addr %s233, 32
      %s235 = smul.addr %s231, 64
      %s236 = sadd.s32 %s234, %s235
      %s237 = scalar_lea.vmem %s0, %s236
      %s238 = smul.u32 2, %s19
      %p239 = scmp.lt.s32.totalorder %s238, 1
      %s240 = scalar_select %p239, %s238, 1
      %s241 = smul.addr %s240, 4
      %s242 = scalar_lea.vmem %s1, %s241
      %s243 = smul.u32 2, %s19
      %s244 = smul.u32 2, %s19
      %p245 = scmp.lt.s32.totalorder %s244, 1
      %s246 = scalar_select %p245, %s244, 1
      %s247 = scalar_lea.vmem %s2, %s246
      %s248 = smul.u32 2, %s19
      %s249 = smul.u32 2, %s19
      %p250 = scmp.lt.s32.totalorder %s20, 1
      %s251 = scalar_select %p250, %s20, 1
      %p252 = scmp.lt.s32.totalorder %s21, 1
      %s253 = scalar_select %p252, %s21, 1
      %p254 = scmp.lt.s32.totalorder %s249, 1
      %s255 = scalar_select %p254, %s249, 1
      %s256 = smul.addr %s253, 2
      %s257 = sadd.s32 %s255, %s256
      %s258 = smul.addr %s251, 4
      %s259 = sadd.s32 %s257, %s258
      %s260 = smul.addr %s259, 2
      %s261 = scalar_lea.vmem %s3, %s260
      %s262 = smul.u32 2, %s19
      %v264 = vld [vmem:[%s237] sm:$0x1]
      %v265 = vld [vmem:[%s242] sm:$0xff]
      %v266 = vld [vmem:[%s242 + $0x8] sm:$0xff]
      %v267 = vld [vmem:[%s242 + $0x10] sm:$0xff]
      %v268 = vld [vmem:[%s242 + $0x18] sm:$0xff]
      %v269 = vld [vmem:[%s242 + $0x20] sm:$0xff]
      %v270 = vld [vmem:[%s242 + $0x28] sm:$0xff]
      %v271 = vld [vmem:[%s242 + $0x30] sm:$0xff]
      %v272 = vld [vmem:[%s242 + $0x38] sm:$0xff]
      %v273 = vld [vmem:[%s242 + $0x40] sm:$0xff]
      %v274 = vld [vmem:[%s242 + $0x48] sm:$0xff]
      %v275 = vld [vmem:[%s242 + $0x50] sm:$0xff]
      %v276 = vld [vmem:[%s242 + $0x58] sm:$0xff]
      %s277 = scalar_lea.vmem %s237, 1
      %v278 = vld [vmem:[%s277] sm:$0x1]
      %s279 = scalar_lea.vmem %s242, 96
      %v280 = vld [vmem:[%s279] sm:$0xff]
      %v281 = vld [vmem:[%s279 + $0x8] sm:$0xff]
      %v282 = vld [vmem:[%s279 + $0x10] sm:$0xff]
      %v283 = vld [vmem:[%s279 + $0x18] sm:$0xff]
      %v284 = vld [vmem:[%s279 + $0x20] sm:$0xff]
      %v285 = vld [vmem:[%s279 + $0x28] sm:$0xff]
      %v286 = vld [vmem:[%s279 + $0x30] sm:$0xff]
      %v287 = vld [vmem:[%s279 + $0x38] sm:$0xff]
      %v288 = vld [vmem:[%s279 + $0x40] sm:$0xff]
      %v289 = vld [vmem:[%s279 + $0x48] sm:$0xff]
      %v290 = vld [vmem:[%s279 + $0x50] sm:$0xff]
      %v291 = vld [vmem:[%s279 + $0x58] sm:$0xff]
      %v304 = vunpack.c.l.b16 %v280
      %v305 = vunpack.c.h.b16 %v280
      %v306 = vunpack.c.l.b16 %v281
      %v307 = vunpack.c.h.b16 %v281
      %v308 = vunpack.c.l.b16 %v282
      %v309 = vunpack.c.h.b16 %v282
      %v310 = vunpack.c.l.b16 %v283
      %v311 = vunpack.c.h.b16 %v283
      %v312 = vunpack.c.l.b16 %v284
      %v313 = vunpack.c.h.b16 %v284
      %v314 = vunpack.c.l.b16 %v285
      %v315 = vunpack.c.h.b16 %v285
      %v316 = vunpack.c.l.b16 %v286
      %v317 = vunpack.c.h.b16 %v286
      %v318 = vunpack.c.l.b16 %v287
      %v319 = vunpack.c.h.b16 %v287
      %v320 = vunpack.c.l.b16 %v288
      %v321 = vunpack.c.h.b16 %v288
      %v322 = vunpack.c.l.b16 %v289
      %v323 = vunpack.c.h.b16 %v289
      %v324 = vunpack.c.l.b16 %v290
      %v325 = vunpack.c.h.b16 %v290
      %v326 = vunpack.c.l.b16 %v291
      %v327 = vunpack.c.h.b16 %v291
      %v328 = vpack.c.b16 %v306, %v304
      %v329 = vpack.c.b16 %v307, %v305
      %v330 = vpack.c.b16 %v310, %v308
      %v331 = vpack.c.b16 %v311, %v309
      %v332 = vpack.c.b16 %v314, %v312
      %v333 = vpack.c.b16 %v315, %v313
      %v334 = vpack.c.b16 %v318, %v316
      %v335 = vpack.c.b16 %v319, %v317
      %v336 = vpack.c.b16 %v322, %v320
      %v337 = vpack.c.b16 %v323, %v321
      %v338 = vpack.c.b16 %v326, %v324
      %v339 = vpack.c.b16 %v327, %v325
      %vm352 = vcmask 785408
      %v354 = vsel %vm352, %v278, 0
      %356 = vmatprep.subr.bf16.mxu0 %v329
      %357 = vmatpush1.bf16.msra.mxu0 %v328
      %358 = vmatprep.subr.bf16.mxu0 %v331
      %359 = vmatpush1.bf16.msra.mxu0 %v330
      %360 = vmatprep.subr.bf16.mxu0 %v333
      %361 = vmatpush1.bf16.msra.mxu0 %v332
      %362 = vmatprep.subr.bf16.mxu0 %v335
      %363 = vmatpush1.bf16.msra.mxu0 %v334
      %364 = vmatprep.subr.bf16.mxu0 %v337
      %365 = vmatpush1.bf16.msra.mxu0 %v336
      %366 = vmatprep.subr.bf16.mxu0 %v339
      %367 = vmatpush1.bf16.msra.mxu0 %v338
      %368 = vmatprep.subr.bf16.mxu0 0
      %369 = vmatpush1.bf16.msra.mxu0 0
      %370 = vmatprep.subr.bf16.mxu0 0
      %371 = vmatpush1.bf16.msra.mxu0 0
      %372 = vmatprep.subr.bf16.mxu0 0
      %373 = vmatpush1.bf16.msra.mxu0 0
      %374 = vmatprep.subr.bf16.mxu0 0
      %375 = vmatpush1.bf16.msra.mxu0 0
      %376 = vmatprep.subr.bf16.mxu0 0
      %377 = vmatpush1.bf16.msra.mxu0 0
      %378 = vmatprep.subr.bf16.mxu0 0
      %379 = vmatpush1.bf16.msra.mxu0 0
      %380 = vmatprep.subr.bf16.mxu0 0
      %381 = vmatpush1.bf16.msra.mxu0 0
      %382 = vmatprep.subr.bf16.mxu0 0
      %383 = vmatpush1.bf16.msra.mxu0 0
      %384 = vmatprep.subr.bf16.mxu0 0
      %385 = vmatpush1.bf16.msra.mxu0 0
      %386 = vmatprep.subr.bf16.mxu0 0
      %387 = vmatpush1.bf16.msra.mxu0 0
      %388 = vmatprep.mubr.bf16.mxu0 0
      %389 = vmatmul.mubr.bf16.gmra.mrb[0].mxu0 %v354
      %v390 = vpop.f32.mrb[0].mxu0
      %v391 = vadd.f32 0.0, %v390
      %v392 = vpop.f32.mrb[0].mxu0
      %v393 = vadd.f32 0.0, %v392
      %v394 = vpop.f32.mrb[0].mxu0
      %v395 = vpop.f32.mrb[0].mxu0
      %396 = vdwg.mxu0
      %v409 = vunpack.c.l.b16 %v265
      %v410 = vunpack.c.h.b16 %v265
      %v411 = vunpack.c.l.b16 %v266
      %v412 = vunpack.c.h.b16 %v266
      %v413 = vunpack.c.l.b16 %v267
      %v414 = vunpack.c.h.b16 %v267
      %v415 = vunpack.c.l.b16 %v268
      %v416 = vunpack.c.h.b16 %v268
      %v417 = vunpack.c.l.b16 %v269
      %v418 = vunpack.c.h.b16 %v269
      %v419 = vunpack.c.l.b16 %v270
      %v420 = vunpack.c.h.b16 %v270
      %v421 = vunpack.c.l.b16 %v271
      %v422 = vunpack.c.h.b16 %v271
      %v423 = vunpack.c.l.b16 %v272
      %v424 = vunpack.c.h.b16 %v272
      %v425 = vunpack.c.l.b16 %v273
      %v426 = vunpack.c.h.b16 %v273
      %v427 = vunpack.c.l.b16 %v274
      %v428 = vunpack.c.h.b16 %v274
      %v429 = vunpack.c.l.b16 %v275
      %v430 = vunpack.c.h.b16 %v275
      %v431 = vunpack.c.l.b16 %v276
      %v432 = vunpack.c.h.b16 %v276
      %v433 = vpack.c.b16 %v411, %v409
      %v434 = vpack.c.b16 %v412, %v410
      %v435 = vpack.c.b16 %v415, %v413
      %v436 = vpack.c.b16 %v416, %v414
      %v437 = vpack.c.b16 %v419, %v417
      %v438 = vpack.c.b16 %v420, %v418
      %v439 = vpack.c.b16 %v423, %v421
      %v440 = vpack.c.b16 %v424, %v422
      %v441 = vpack.c.b16 %v427, %v425
      %v442 = vpack.c.b16 %v428, %v426
      %v443 = vpack.c.b16 %v431, %v429
      %v444 = vpack.c.b16 %v432, %v430
      %v458 = vsel %vm352, %v264, 0
      %460 = vmatprep.subr.bf16.mxu0 %v434
      %461 = vmatpush1.bf16.msra.mxu0 %v433
      %462 = vmatprep.subr.bf16.mxu0 %v436
      %463 = vmatpush1.bf16.msra.mxu0 %v435
      %464 = vmatprep.subr.bf16.mxu0 %v438
      %465 = vmatpush1.bf16.msra.mxu0 %v437
      %466 = vmatprep.subr.bf16.mxu0 %v440
      %467 = vmatpush1.bf16.msra.mxu0 %v439
      %468 = vmatprep.subr.bf16.mxu0 %v442
      %469 = vmatpush1.bf16.msra.mxu0 %v441
      %470 = vmatprep.subr.bf16.mxu0 %v444
      %471 = vmatpush1.bf16.msra.mxu0 %v443
      %472 = vmatprep.subr.bf16.mxu0 0
      %473 = vmatpush1.bf16.msra.mxu0 0
      %474 = vmatprep.subr.bf16.mxu0 0
      %475 = vmatpush1.bf16.msra.mxu0 0
      %476 = vmatprep.subr.bf16.mxu0 0
      %477 = vmatpush1.bf16.msra.mxu0 0
      %478 = vmatprep.subr.bf16.mxu0 0
      %479 = vmatpush1.bf16.msra.mxu0 0
      %480 = vmatprep.subr.bf16.mxu0 0
      %481 = vmatpush1.bf16.msra.mxu0 0
      %482 = vmatprep.subr.bf16.mxu0 0
      %483 = vmatpush1.bf16.msra.mxu0 0
      %484 = vmatprep.subr.bf16.mxu0 0
      %485 = vmatpush1.bf16.msra.mxu0 0
      %486 = vmatprep.subr.bf16.mxu0 0
      %487 = vmatpush1.bf16.msra.mxu0 0
      %488 = vmatprep.subr.bf16.mxu0 0
      %489 = vmatpush1.bf16.msra.mxu0 0
      %490 = vmatprep.subr.bf16.mxu0 0
      %491 = vmatpush1.bf16.msra.mxu0 0
      %492 = vmatprep.mubr.bf16.mxu0 0
      %493 = vmatmul.mubr.bf16.gmra.mrb[0].mxu0 %v458
      %v494 = vpop.f32.mrb[0].mxu0
      %v495 = vadd.f32 %v391, %v494
      %v496 = vpop.f32.mrb[0].mxu0
      %v497 = vadd.f32 %v393, %v496
      %v498 = vpop.f32.mrb[0].mxu0
      %v499 = vpop.f32.mrb[0].mxu0
      %500 = vdwg.mxu0
      %s501 = scalar_lea.vmem %s237, 2
      %v502 = vld [vmem:[%s501] sm:$0x1]
      %s503 = scalar_lea.vmem %s242, 192
      %v504 = vld [vmem:[%s503] sm:$0xff]
      %v505 = vld [vmem:[%s503 + $0x8] sm:$0xff]
      %v506 = vld [vmem:[%s503 + $0x10] sm:$0xff]
      %v507 = vld [vmem:[%s503 + $0x18] sm:$0xff]
      %v508 = vld [vmem:[%s503 + $0x20] sm:$0xff]
      %v509 = vld [vmem:[%s503 + $0x28] sm:$0xff]
      %v510 = vld [vmem:[%s503 + $0x30] sm:$0xff]
      %v511 = vld [vmem:[%s503 + $0x38] sm:$0xff]
      %v512 = vld [vmem:[%s503 + $0x40] sm:$0xff]
      %v513 = vld [vmem:[%s503 + $0x48] sm:$0xff]
      %v514 = vld [vmem:[%s503 + $0x50] sm:$0xff]
      %v515 = vld [vmem:[%s503 + $0x58] sm:$0xff]
      %v528 = vunpack.c.l.b16 %v504
      %v529 = vunpack.c.h.b16 %v504
      %v530 = vunpack.c.l.b16 %v505
      %v531 = vunpack.c.h.b16 %v505
      %v532 = vunpack.c.l.b16 %v506
      %v533 = vunpack.c.h.b16 %v506
      %v534 = vunpack.c.l.b16 %v507
      %v535 = vunpack.c.h.b16 %v507
      %v536 = vunpack.c.l.b16 %v508
      %v537 = vunpack.c.h.b16 %v508
      %v538 = vunpack.c.l.b16 %v509
      %v539 = vunpack.c.h.b16 %v509
      %v540 = vunpack.c.l.b16 %v510
      %v541 = vunpack.c.h.b16 %v510
      %v542 = vunpack.c.l.b16 %v511
      %v543 = vunpack.c.h.b16 %v511
      %v544 = vunpack.c.l.b16 %v512
      %v545 = vunpack.c.h.b16 %v512
      %v546 = vunpack.c.l.b16 %v513
      %v547 = vunpack.c.h.b16 %v513
      %v548 = vunpack.c.l.b16 %v514
      %v549 = vunpack.c.h.b16 %v514
      %v550 = vunpack.c.l.b16 %v515
      %v551 = vunpack.c.h.b16 %v515
      %v552 = vpack.c.b16 %v530, %v528
      %v553 = vpack.c.b16 %v531, %v529
      %v554 = vpack.c.b16 %v534, %v532
      %v555 = vpack.c.b16 %v535, %v533
      %v556 = vpack.c.b16 %v538, %v536
      %v557 = vpack.c.b16 %v539, %v537
      %v558 = vpack.c.b16 %v542, %v540
      %v559 = vpack.c.b16 %v543, %v541
      %v560 = vpack.c.b16 %v546, %v544
      %v561 = vpack.c.b16 %v547, %v545
      %v562 = vpack.c.b16 %v550, %v548
      %v563 = vpack.c.b16 %v551, %v549
      %v577 = vsel %vm352, %v502, 0
      %579 = vmatprep.subr.bf16.mxu0 %v553
      %580 = vmatpush1.bf16.msra.mxu0 %v552
      %581 = vmatprep.subr.bf16.mxu0 %v555
      %582 = vmatpush1.bf16.msra.mxu0 %v554
      %583 = vmatprep.subr.bf16.mxu0 %v557
      %584 = vmatpush1.bf16.msra.mxu0 %v556
      %585 = vmatprep.subr.bf16.mxu0 %v559
      %586 = vmatpush1.bf16.msra.mxu0 %v558
      %587 = vmatprep.subr.bf16.mxu0 %v561
      %588 = vmatpush1.bf16.msra.mxu0 %v560
      %589 = vmatprep.subr.bf16.mxu0 %v563
      %590 = vmatpush1.bf16.msra.mxu0 %v562
      %591 = vmatprep.subr.bf16.mxu0 0
      %592 = vmatpush1.bf16.msra.mxu0 0
      %593 = vmatprep.subr.bf16.mxu0 0
      %594 = vmatpush1.bf16.msra.mxu0 0
      %595 = vmatprep.subr.bf16.mxu0 0
      %596 = vmatpush1.bf16.msra.mxu0 0
      %597 = vmatprep.subr.bf16.mxu0 0
      %598 = vmatpush1.bf16.msra.mxu0 0
      %599 = vmatprep.subr.bf16.mxu0 0
      %600 = vmatpush1.bf16.msra.mxu0 0
      %601 = vmatprep.subr.bf16.mxu0 0
      %602 = vmatpush1.bf16.msra.mxu0 0
      %603 = vmatprep.subr.bf16.mxu0 0
      %604 = vmatpush1.bf16.msra.mxu0 0
      %605 = vmatprep.subr.bf16.mxu0 0
      %606 = vmatpush1.bf16.msra.mxu0 0
      %607 = vmatprep.subr.bf16.mxu0 0
      %608 = vmatpush1.bf16.msra.mxu0 0
      %609 = vmatprep.subr.bf16.mxu0 0
      %610 = vmatpush1.bf16.msra.mxu0 0
      %611 = vmatprep.mubr.bf16.mxu0 0
      %612 = vmatmul.mubr.bf16.gmra.mrb[0].mxu0 %v577
      %v613 = vpop.f32.mrb[0].mxu0
      %v614 = vadd.f32 0.0, %v613
      %v615 = vpop.f32.mrb[0].mxu0
      %v616 = vadd.f32 0.0, %v615
      %v617 = vpop.f32.mrb[0].mxu0
      %v618 = vpop.f32.mrb[0].mxu0
      %619 = vdwg.mxu0
      %v620 = vadd.f32 %v495, %v614
      %v621 = vadd.f32 %v497, %v616
      %s622 = scalar_lea.vmem %s237, 3
      %v623 = vld [vmem:[%s622] sm:$0x1]
      %s624 = scalar_lea.vmem %s242, 288
      %v625 = vld [vmem:[%s624] sm:$0xff]
      %v626 = vld [vmem:[%s624 + $0x8] sm:$0xff]
      %v627 = vld [vmem:[%s624 + $0x10] sm:$0xff]
      %v628 = vld [vmem:[%s624 + $0x18] sm:$0xff]
      %v629 = vld [vmem:[%s624 + $0x20] sm:$0xff]
      %v630 = vld [vmem:[%s624 + $0x28] sm:$0xff]
      %v631 = vld [vmem:[%s624 + $0x30] sm:$0xff]
      %v632 = vld [vmem:[%s624 + $0x38] sm:$0xff]
      %v633 = vld [vmem:[%s624 + $0x40] sm:$0xff]
      %v634 = vld [vmem:[%s624 + $0x48] sm:$0xff]
      %v635 = vld [vmem:[%s624 + $0x50] sm:$0xff]
      %v636 = vld [vmem:[%s624 + $0x58] sm:$0xff]
      %v649 = vunpack.c.l.b16 %v625
      %v650 = vunpack.c.h.b16 %v625
      %v651 = vunpack.c.l.b16 %v626
      %v652 = vunpack.c.h.b16 %v626
      %v653 = vunpack.c.l.b16 %v627
      %v654 = vunpack.c.h.b16 %v627
      %v655 = vunpack.c.l.b16 %v628
      %v656 = vunpack.c.h.b16 %v628
      %v657 = vunpack.c.l.b16 %v629
      %v658 = vunpack.c.h.b16 %v629
      %v659 = vunpack.c.l.b16 %v630
      %v660 = vunpack.c.h.b16 %v630
      %v661 = vunpack.c.l.b16 %v631
      %v662 = vunpack.c.h.b16 %v631
      %v663 = vunpack.c.l.b16 %v632
      %v664 = vunpack.c.h.b16 %v632
      %v665 = vunpack.c.l.b16 %v633
      %v666 = vunpack.c.h.b16 %v633
      %v667 = vunpack.c.l.b16 %v634
      %v668 = vunpack.c.h.b16 %v634
      %v669 = vunpack.c.l.b16 %v635
      %v670 = vunpack.c.h.b16 %v635
      %v671 = vunpack.c.l.b16 %v636
      %v672 = vunpack.c.h.b16 %v636
      %v673 = vpack.c.b16 %v651, %v649
      %v674 = vpack.c.b16 %v652, %v650
      %v675 = vpack.c.b16 %v655, %v653
      %v676 = vpack.c.b16 %v656, %v654
      %v677 = vpack.c.b16 %v659, %v657
      %v678 = vpack.c.b16 %v660, %v658
      %v679 = vpack.c.b16 %v663, %v661
      %v680 = vpack.c.b16 %v664, %v662
      %v681 = vpack.c.b16 %v667, %v665
      %v682 = vpack.c.b16 %v668, %v666
      %v683 = vpack.c.b16 %v671, %v669
      %v684 = vpack.c.b16 %v672, %v670
      %v698 = vsel %vm352, %v623, 0
      %700 = vmatprep.subr.bf16.mxu0 %v674
      %701 = vmatpush1.bf16.msra.mxu0 %v673
      %702 = vmatprep.subr.bf16.mxu0 %v676
      %703 = vmatpush1.bf16.msra.mxu0 %v675
      %704 = vmatprep.subr.bf16.mxu0 %v678
      %705 = vmatpush1.bf16.msra.mxu0 %v677
      %706 = vmatprep.subr.bf16.mxu0 %v680
      %707 = vmatpush1.bf16.msra.mxu0 %v679
      %708 = vmatprep.subr.bf16.mxu0 %v682
      %709 = vmatpush1.bf16.msra.mxu0 %v681
      %710 = vmatprep.subr.bf16.mxu0 %v684
      %711 = vmatpush1.bf16.msra.mxu0 %v683
      %712 = vmatprep.subr.bf16.mxu0 0
      %713 = vmatpush1.bf16.msra.mxu0 0
      %714 = vmatprep.subr.bf16.mxu0 0
      %715 = vmatpush1.bf16.msra.mxu0 0
      %716 = vmatprep.subr.bf16.mxu0 0
      %717 = vmatpush1.bf16.msra.mxu0 0
      %718 = vmatprep.subr.bf16.mxu0 0
      %719 = vmatpush1.bf16.msra.mxu0 0
      %720 = vmatprep.subr.bf16.mxu0 0
      %721 = vmatpush1.bf16.msra.mxu0 0
      %722 = vmatprep.subr.bf16.mxu0 0
      %723 = vmatpush1.bf16.msra.mxu0 0
      %724 = vmatprep.subr.bf16.mxu0 0
      %725 = vmatpush1.bf16.msra.mxu0 0
      %726 = vmatprep.subr.bf16.mxu0 0
      %727 = vmatpush1.bf16.msra.mxu0 0
      %728 = vmatprep.subr.bf16.mxu0 0
      %729 = vmatpush1.bf16.msra.mxu0 0
      %730 = vmatprep.subr.bf16.mxu0 0
      %731 = vmatpush1.bf16.msra.mxu0 0
      %732 = vmatprep.mubr.bf16.mxu0 0
      %733 = vmatmul.mubr.bf16.gmra.mrb[0].mxu0 %v698
      %v734 = vpop.f32.mrb[0].mxu0
      %v735 = vadd.f32 0.0, %v734
      %v736 = vpop.f32.mrb[0].mxu0
      %v737 = vadd.f32 0.0, %v736
      %v738 = vpop.f32.mrb[0].mxu0
      %v739 = vpop.f32.mrb[0].mxu0
      %740 = vdwg.mxu0
      %v741 = vadd.f32 %v620, %v735
      %v742 = vadd.f32 %v621, %v737
      %s743 = scalar_lea.vmem %s237, 4
      %v744 = vld [vmem:[%s743] sm:$0x1]
      %s745 = scalar_lea.vmem %s242, 384
      %v746 = vld [vmem:[%s745] sm:$0xff]
      %v747 = vld [vmem:[%s745 + $0x8] sm:$0xff]
      %v748 = vld [vmem:[%s745 + $0x10] sm:$0xff]
      %v749 = vld [vmem:[%s745 + $0x18] sm:$0xff]
      %v750 = vld [vmem:[%s745 + $0x20] sm:$0xff]
      %v751 = vld [vmem:[%s745 + $0x28] sm:$0xff]
      %v752 = vld [vmem:[%s745 + $0x30] sm:$0xff]
      %v753 = vld [vmem:[%s745 + $0x38] sm:$0xff]
      %v754 = vld [vmem:[%s745 + $0x40] sm:$0xff]
      %v755 = vld [vmem:[%s745 + $0x48] sm:$0xff]
      %v756 = vld [vmem:[%s745 + $0x50] sm:$0xff]
      %v757 = vld [vmem:[%s745 + $0x58] sm:$0xff]
      %v770 = vunpack.c.l.b16 %v746
      %v771 = vunpack.c.h.b16 %v746
      %v772 = vunpack.c.l.b16 %v747
      %v773 = vunpack.c.h.b16 %v747
      %v774 = vunpack.c.l.b16 %v748
      %v775 = vunpack.c.h.b16 %v748
      %v776 = vunpack.c.l.b16 %v749
      %v777 = vunpack.c.h.b16 %v749
      %v778 = vunpack.c.l.b16 %v750
      %v779 = vunpack.c.h.b16 %v750
      %v780 = vunpack.c.l.b16 %v751
      %v781 = vunpack.c.h.b16 %v751
      %v782 = vunpack.c.l.b16 %v752
      %v783 = vunpack.c.h.b16 %v752
      %v784 = vunpack.c.l.b16 %v753
      %v785 = vunpack.c.h.b16 %v753
      %v786 = vunpack.c.l.b16 %v754
      %v787 = vunpack.c.h.b16 %v754
      %v788 = vunpack.c.l.b16 %v755
      %v789 = vunpack.c.h.b16 %v755
      %v790 = vunpack.c.l.b16 %v756
      %v791 = vunpack.c.h.b16 %v756
      %v792 = vunpack.c.l.b16 %v757
      %v793 = vunpack.c.h.b16 %v757
      %v794 = vpack.c.b16 %v772, %v770
      %v795 = vpack.c.b16 %v773, %v771
      %v796 = vpack.c.b16 %v776, %v774
      %v797 = vpack.c.b16 %v777, %v775
      %v798 = vpack.c.b16 %v780, %v778
      %v799 = vpack.c.b16 %v781, %v779
      %v800 = vpack.c.b16 %v784, %v782
      %v801 = vpack.c.b16 %v785, %v783
      %v802 = vpack.c.b16 %v788, %v786
      %v803 = vpack.c.b16 %v789, %v787
      %v804 = vpack.c.b16 %v792, %v790
      %v805 = vpack.c.b16 %v793, %v791
      %v819 = vsel %vm352, %v744, 0
      %821 = vmatprep.subr.bf16.mxu0 %v795
      %822 = vmatpush1.bf16.msra.mxu0 %v794
      %823 = vmatprep.subr.bf16.mxu0 %v797
      %824 = vmatpush1.bf16.msra.mxu0 %v796
      %825 = vmatprep.subr.bf16.mxu0 %v799
      %826 = vmatpush1.bf16.msra.mxu0 %v798
      %827 = vmatprep.subr.bf16.mxu0 %v801
      %828 = vmatpush1.bf16.msra.mxu0 %v800
      %829 = vmatprep.subr.bf16.mxu0 %v803
      %830 = vmatpush1.bf16.msra.mxu0 %v802
      %831 = vmatprep.subr.bf16.mxu0 %v805
      %832 = vmatpush1.bf16.msra.mxu0 %v804
      %833 = vmatprep.subr.bf16.mxu0 0
      %834 = vmatpush1.bf16.msra.mxu0 0
      %835 = vmatprep.subr.bf16.mxu0 0
      %836 = vmatpush1.bf16.msra.mxu0 0
      %837 = vmatprep.subr.bf16.mxu0 0
      %838 = vmatpush1.bf16.msra.mxu0 0
      %839 = vmatprep.subr.bf16.mxu0 0
      %840 = vmatpush1.bf16.msra.mxu0 0
      %841 = vmatprep.subr.bf16.mxu0 0
      %842 = vmatpush1.bf16.msra.mxu0 0
      %843 = vmatprep.subr.bf16.mxu0 0
      %844 = vmatpush1.bf16.msra.mxu0 0
      %845 = vmatprep.subr.bf16.mxu0 0
      %846 = vmatpush1.bf16.msra.mxu0 0
      %847 = vmatprep.subr.bf16.mxu0 0
      %848 = vmatpush1.bf16.msra.mxu0 0
      %849 = vmatprep.subr.bf16.mxu0 0
      %850 = vmatpush1.bf16.msra.mxu0 0
      %851 = vmatprep.subr.bf16.mxu0 0
      %852 = vmatpush1.bf16.msra.mxu0 0
      %853 = vmatprep.mubr.bf16.mxu0 0
      %854 = vmatmul.mubr.bf16.gmra.mrb[0].mxu0 %v819
      %v855 = vpop.f32.mrb[0].mxu0
      %v856 = vadd.f32 0.0, %v855
      %v857 = vpop.f32.mrb[0].mxu0
      %v858 = vadd.f32 0.0, %v857
      %v859 = vpop.f32.mrb[0].mxu0
      %v860 = vpop.f32.mrb[0].mxu0
      %861 = vdwg.mxu0
      %v862 = vadd.f32 %v741, %v856
      %v863 = vadd.f32 %v742, %v858
      %s864 = scalar_lea.vmem %s237, 5
      %v865 = vld [vmem:[%s864] sm:$0x1]
      %s866 = scalar_lea.vmem %s242, 480
      %v867 = vld [vmem:[%s866] sm:$0xff]
      %v868 = vld [vmem:[%s866 + $0x8] sm:$0xff]
      %v869 = vld [vmem:[%s866 + $0x10] sm:$0xff]
      %v870 = vld [vmem:[%s866 + $0x18] sm:$0xff]
      %v871 = vld [vmem:[%s866 + $0x20] sm:$0xff]
      %v872 = vld [vmem:[%s866 + $0x28] sm:$0xff]
      %v873 = vld [vmem:[%s866 + $0x30] sm:$0xff]
      %v874 = vld [vmem:[%s866 + $0x38] sm:$0xff]
      %v875 = vld [vmem:[%s866 + $0x40] sm:$0xff]
      %v876 = vld [vmem:[%s866 + $0x48] sm:$0xff]
      %v877 = vld [vmem:[%s866 + $0x50] sm:$0xff]
      %v878 = vld [vmem:[%s866 + $0x58] sm:$0xff]
      %v891 = vunpack.c.l.b16 %v867
      %v892 = vunpack.c.h.b16 %v867
      %v893 = vunpack.c.l.b16 %v868
      %v894 = vunpack.c.h.b16 %v868
      %v895 = vunpack.c.l.b16 %v869
      %v896 = vunpack.c.h.b16 %v869
      %v897 = vunpack.c.l.b16 %v870
      %v898 = vunpack.c.h.b16 %v870
      %v899 = vunpack.c.l.b16 %v871
      %v900 = vunpack.c.h.b16 %v871
      %v901 = vunpack.c.l.b16 %v872
      %v902 = vunpack.c.h.b16 %v872
      %v903 = vunpack.c.l.b16 %v873
      %v904 = vunpack.c.h.b16 %v873
      %v905 = vunpack.c.l.b16 %v874
      %v906 = vunpack.c.h.b16 %v874
      %v907 = vunpack.c.l.b16 %v875
      %v908 = vunpack.c.h.b16 %v875
      %v909 = vunpack.c.l.b16 %v876
      %v910 = vunpack.c.h.b16 %v876
      %v911 = vunpack.c.l.b16 %v877
      %v912 = vunpack.c.h.b16 %v877
      %v913 = vunpack.c.l.b16 %v878
      %v914 = vunpack.c.h.b16 %v878
      %v915 = vpack.c.b16 %v893, %v891
      %v916 = vpack.c.b16 %v894, %v892
      %v917 = vpack.c.b16 %v897, %v895
      %v918 = vpack.c.b16 %v898, %v896
      %v919 = vpack.c.b16 %v901, %v899
      %v920 = vpack.c.b16 %v902, %v900
      %v921 = vpack.c.b16 %v905, %v903
      %v922 = vpack.c.b16 %v906, %v904
      %v923 = vpack.c.b16 %v909, %v907
      %v924 = vpack.c.b16 %v910, %v908
      %v925 = vpack.c.b16 %v913, %v911
      %v926 = vpack.c.b16 %v914, %v912
      %v940 = vsel %vm352, %v865, 0
      %942 = vmatprep.subr.bf16.mxu0 %v916
      %943 = vmatpush1.bf16.msra.mxu0 %v915
      %944 = vmatprep.subr.bf16.mxu0 %v918
      %945 = vmatpush1.bf16.msra.mxu0 %v917
      %946 = vmatprep.subr.bf16.mxu0 %v920
      %947 = vmatpush1.bf16.msra.mxu0 %v919
      %948 = vmatprep.subr.bf16.mxu0 %v922
      %949 = vmatpush1.bf16.msra.mxu0 %v921
      %950 = vmatprep.subr.bf16.mxu0 %v924
      %951 = vmatpush1.bf16.msra.mxu0 %v923
      %952 = vmatprep.subr.bf16.mxu0 %v926
      %953 = vmatpush1.bf16.msra.mxu0 %v925
      %954 = vmatprep.subr.bf16.mxu0 0
      %955 = vmatpush1.bf16.msra.mxu0 0
      %956 = vmatprep.subr.bf16.mxu0 0
      %957 = vmatpush1.bf16.msra.mxu0 0
      %958 = vmatprep.subr.bf16.mxu0 0
      %959 = vmatpush1.bf16.msra.mxu0 0
      %960 = vmatprep.subr.bf16.mxu0 0
      %961 = vmatpush1.bf16.msra.mxu0 0
      %962 = vmatprep.subr.bf16.mxu0 0
      %963 = vmatpush1.bf16.msra.mxu0 0
      %964 = vmatprep.subr.bf16.mxu0 0
      %965 = vmatpush1.bf16.msra.mxu0 0
      %966 = vmatprep.subr.bf16.mxu0 0
      %967 = vmatpush1.bf16.msra.mxu0 0
      %968 = vmatprep.subr.bf16.mxu0 0
      %969 = vmatpush1.bf16.msra.mxu0 0
      %970 = vmatprep.subr.bf16.mxu0 0
      %971 = vmatpush1.bf16.msra.mxu0 0
      %972 = vmatprep.subr.bf16.mxu0 0
      %973 = vmatpush1.bf16.msra.mxu0 0
      %974 = vmatprep.mubr.bf16.mxu0 0
      %975 = vmatmul.mubr.bf16.gmra.mrb[0].mxu0 %v940
      %v976 = vpop.f32.mrb[0].mxu0
      %v977 = vadd.f32 0.0, %v976
      %v978 = vpop.f32.mrb[0].mxu0
      %v979 = vadd.f32 0.0, %v978
      %v980 = vpop.f32.mrb[0].mxu0
      %v981 = vpop.f32.mrb[0].mxu0
      %982 = vdwg.mxu0
      %v983 = vadd.f32 %v862, %v977
      %v984 = vadd.f32 %v863, %v979
      %s985 = scalar_lea.vmem %s237, 6
      %v986 = vld [vmem:[%s985] sm:$0x1]
      %s987 = scalar_lea.vmem %s242, 576
      %v988 = vld [vmem:[%s987] sm:$0xff]
      %v989 = vld [vmem:[%s987 + $0x8] sm:$0xff]
      %v990 = vld [vmem:[%s987 + $0x10] sm:$0xff]
      %v991 = vld [vmem:[%s987 + $0x18] sm:$0xff]
      %v992 = vld [vmem:[%s987 + $0x20] sm:$0xff]
      %v993 = vld [vmem:[%s987 + $0x28] sm:$0xff]
      %v994 = vld [vmem:[%s987 + $0x30] sm:$0xff]
      %v995 = vld [vmem:[%s987 + $0x38] sm:$0xff]
      %v996 = vld [vmem:[%s987 + $0x40] sm:$0xff]
      %v997 = vld [vmem:[%s987 + $0x48] sm:$0xff]
      %v998 = vld [vmem:[%s987 + $0x50] sm:$0xff]
      %v999 = vld [vmem:[%s987 + $0x58] sm:$0xff]
      %v1012 = vunpack.c.l.b16 %v988
      %v1013 = vunpack.c.h.b16 %v988
      %v1014 = vunpack.c.l.b16 %v989
      %v1015 = vunpack.c.h.b16 %v989
      %v1016 = vunpack.c.l.b16 %v990
      %v1017 = vunpack.c.h.b16 %v990
      %v1018 = vunpack.c.l.b16 %v991
      %v1019 = vunpack.c.h.b16 %v991
      %v1020 = vunpack.c.l.b16 %v992
      %v1021 = vunpack.c.h.b16 %v992
      %v1022 = vunpack.c.l.b16 %v993
      %v1023 = vunpack.c.h.b16 %v993
      %v1024 = vunpack.c.l.b16 %v994
      %v1025 = vunpack.c.h.b16 %v994
      %v1026 = vunpack.c.l.b16 %v995
      %v1027 = vunpack.c.h.b16 %v995
      %v1028 = vunpack.c.l.b16 %v996
      %v1029 = vunpack.c.h.b16 %v996
      %v1030 = vunpack.c.l.b16 %v997
      %v1031 = vunpack.c.h.b16 %v997
      %v1032 = vunpack.c.l.b16 %v998
      %v1033 = vunpack.c.h.b16 %v998
      %v1034 = vunpack.c.l.b16 %v999
      %v1035 = vunpack.c.h.b16 %v999
      %v1036 = vpack.c.b16 %v1014, %v1012
      %v1037 = vpack.c.b16 %v1015, %v1013
      %v1038 = vpack.c.b16 %v1018, %v1016
      %v1039 = vpack.c.b16 %v1019, %v1017
      %v1040 = vpack.c.b16 %v1022, %v1020
      %v1041 = vpack.c.b16 %v1023, %v1021
      %v1042 = vpack.c.b16 %v1026, %v1024
      %v1043 = vpack.c.b16 %v1027, %v1025
      %v1044 = vpack.c.b16 %v1030, %v1028
      %v1045 = vpack.c.b16 %v1031, %v1029
      %v1046 = vpack.c.b16 %v1034, %v1032
      %v1047 = vpack.c.b16 %v1035, %v1033
      %v1061 = vsel %vm352, %v986, 0
      %1063 = vmatprep.subr.bf16.mxu0 %v1037
      %1064 = vmatpush1.bf16.msra.mxu0 %v1036
      %1065 = vmatprep.subr.bf16.mxu0 %v1039
      %1066 = vmatpush1.bf16.msra.mxu0 %v1038
      %1067 = vmatprep.subr.bf16.mxu0 %v1041
      %1068 = vmatpush1.bf16.msra.mxu0 %v1040
      %1069 = vmatprep.subr.bf16.mxu0 %v1043
      %1070 = vmatpush1.bf16.msra.mxu0 %v1042
      %1071 = vmatprep.subr.bf16.mxu0 %v1045
      %1072 = vmatpush1.bf16.msra.mxu0 %v1044
      %1073 = vmatprep.subr.bf16.mxu0 %v1047
      %1074 = vmatpush1.bf16.msra.mxu0 %v1046
      %1075 = vmatprep.subr.bf16.mxu0 0
      %1076 = vmatpush1.bf16.msra.mxu0 0
      %1077 = vmatprep.subr.bf16.mxu0 0
      %1078 = vmatpush1.bf16.msra.mxu0 0
      %1079 = vmatprep.subr.bf16.mxu0 0
      %1080 = vmatpush1.bf16.msra.mxu0 0
      %1081 = vmatprep.subr.bf16.mxu0 0
      %1082 = vmatpush1.bf16.msra.mxu0 0
      %1083 = vmatprep.subr.bf16.mxu0 0
      %1084 = vmatpush1.bf16.msra.mxu0 0
      %1085 = vmatprep.subr.bf16.mxu0 0
      %1086 = vmatpush1.bf16.msra.mxu0 0
      %1087 = vmatprep.subr.bf16.mxu0 0
      %1088 = vmatpush1.bf16.msra.mxu0 0
      %1089 = vmatprep.subr.bf16.mxu0 0
      %1090 = vmatpush1.bf16.msra.mxu0 0
      %1091 = vmatprep.subr.bf16.mxu0 0
      %1092 = vmatpush1.bf16.msra.mxu0 0
      %1093 = vmatprep.subr.bf16.mxu0 0
      %1094 = vmatpush1.bf16.msra.mxu0 0
      %1095 = vmatprep.mubr.bf16.mxu0 0
      %1096 = vmatmul.mubr.bf16.gmra.mrb[0].mxu0 %v1061
      %v1097 = vpop.f32.mrb[0].mxu0
      %v1098 = vadd.f32 0.0, %v1097
      %v1099 = vpop.f32.mrb[0].mxu0
      %v1100 = vadd.f32 0.0, %v1099
      %v1101 = vpop.f32.mrb[0].mxu0
      %v1102 = vpop.f32.mrb[0].mxu0
      %1103 = vdwg.mxu0
      %v1104 = vadd.f32 %v983, %v1098
      %v1105 = vadd.f32 %v984, %v1100
      %s1106 = scalar_lea.vmem %s237, 7
      %v1107 = vld [vmem:[%s1106] sm:$0x1]
      %s1108 = scalar_lea.vmem %s242, 672
      %v1109 = vld [vmem:[%s1108] sm:$0xff]
      %v1110 = vld [vmem:[%s1108 + $0x8] sm:$0xff]
      %v1111 = vld [vmem:[%s1108 + $0x10] sm:$0xff]
      %v1112 = vld [vmem:[%s1108 + $0x18] sm:$0xff]
      %v1113 = vld [vmem:[%s1108 + $0x20] sm:$0xff]
      %v1114 = vld [vmem:[%s1108 + $0x28] sm:$0xff]
      %v1115 = vld [vmem:[%s1108 + $0x30] sm:$0xff]
      %v1116 = vld [vmem:[%s1108 + $0x38] sm:$0xff]
      %v1117 = vld [vmem:[%s1108 + $0x40] sm:$0xff]
      %v1118 = vld [vmem:[%s1108 + $0x48] sm:$0xff]
      %v1119 = vld [vmem:[%s1108 + $0x50] sm:$0xff]
      %v1120 = vld [vmem:[%s1108 + $0x58] sm:$0xff]
      %v1133 = vunpack.c.l.b16 %v1109
      %v1134 = vunpack.c.h.b16 %v1109
      %v1135 = vunpack.c.l.b16 %v1110
      %v1136 = vunpack.c.h.b16 %v1110
      %v1137 = vunpack.c.l.b16 %v1111
      %v1138 = vunpack.c.h.b16 %v1111
      %v1139 = vunpack.c.l.b16 %v1112
      %v1140 = vunpack.c.h.b16 %v1112
      %v1141 = vunpack.c.l.b16 %v1113
      %v1142 = vunpack.c.h.b16 %v1113
      %v1143 = vunpack.c.l.b16 %v1114
      %v1144 = vunpack.c.h.b16 %v1114
      %v1145 = vunpack.c.l.b16 %v1115
      %v1146 = vunpack.c.h.b16 %v1115
      %v1147 = vunpack.c.l.b16 %v1116
      %v1148 = vunpack.c.h.b16 %v1116
      %v1149 = vunpack.c.l.b16 %v1117
      %v1150 = vunpack.c.h.b16 %v1117
      %v1151 = vunpack.c.l.b16 %v1118
      %v1152 = vunpack.c.h.b16 %v1118
      %v1153 = vunpack.c.l.b16 %v1119
      %v1154 = vunpack.c.h.b16 %v1119
      %v1155 = vunpack.c.l.b16 %v1120
      %v1156 = vunpack.c.h.b16 %v1120
      %v1157 = vpack.c.b16 %v1135, %v1133
      %v1158 = vpack.c.b16 %v1136, %v1134
      %v1159 = vpack.c.b16 %v1139, %v1137
      %v1160 = vpack.c.b16 %v1140, %v1138
      %v1161 = vpack.c.b16 %v1143, %v1141
      %v1162 = vpack.c.b16 %v1144, %v1142
      %v1163 = vpack.c.b16 %v1147, %v1145
      %v1164 = vpack.c.b16 %v1148, %v1146
      %v1165 = vpack.c.b16 %v1151, %v1149
      %v1166 = vpack.c.b16 %v1152, %v1150
      %v1167 = vpack.c.b16 %v1155, %v1153
      %v1168 = vpack.c.b16 %v1156, %v1154
      %v1182 = vsel %vm352, %v1107, 0
      %1184 = vmatprep.subr.bf16.mxu0 %v1158
      %1185 = vmatpush1.bf16.msra.mxu0 %v1157
      %1186 = vmatprep.subr.bf16.mxu0 %v1160
      %1187 = vmatpush1.bf16.msra.mxu0 %v1159
      %1188 = vmatprep.subr.bf16.mxu0 %v1162
      %1189 = vmatpush1.bf16.msra.mxu0 %v1161
      %1190 = vmatprep.subr.bf16.mxu0 %v1164
      %1191 = vmatpush1.bf16.msra.mxu0 %v1163
      %1192 = vmatprep.subr.bf16.mxu0 %v1166
      %1193 = vmatpush1.bf16.msra.mxu0 %v1165
      %1194 = vmatprep.subr.bf16.mxu0 %v1168
      %1195 = vmatpush1.bf16.msra.mxu0 %v1167
      %1196 = vmatprep.subr.bf16.mxu0 0
      %1197 = vmatpush1.bf16.msra.mxu0 0
      %1198 = vmatprep.subr.bf16.mxu0 0
      %1199 = vmatpush1.bf16.msra.mxu0 0
      %1200 = vmatprep.subr.bf16.mxu0 0
      %1201 = vmatpush1.bf16.msra.mxu0 0
      %1202 = vmatprep.subr.bf16.mxu0 0
      %1203 = vmatpush1.bf16.msra.mxu0 0
      %1204 = vmatprep.subr.bf16.mxu0 0
      %1205 = vmatpush1.bf16.msra.mxu0 0
      %1206 = vmatprep.subr.bf16.mxu0 0
      %1207 = vmatpush1.bf16.msra.mxu0 0
      %1208 = vmatprep.subr.bf16.mxu0 0
      %1209 = vmatpush1.bf16.msra.mxu0 0
      %1210 = vmatprep.subr.bf16.mxu0 0
      %1211 = vmatpush1.bf16.msra.mxu0 0
      %1212 = vmatprep.subr.bf16.mxu0 0
      %1213 = vmatpush1.bf16.msra.mxu0 0
      %1214 = vmatprep.subr.bf16.mxu0 0
      %1215 = vmatpush1.bf16.msra.mxu0 0
      %1216 = vmatprep.mubr.bf16.mxu0 0
      %1217 = vmatmul.mubr.bf16.gmra.mrb[0].mxu0 %v1182
      %v1218 = vpop.f32.mrb[0].mxu0
      %v1219 = vadd.f32 0.0, %v1218
      %v1220 = vpop.f32.mrb[0].mxu0
      %v1221 = vadd.f32 0.0, %v1220
      %v1222 = vpop.f32.mrb[0].mxu0
      %v1223 = vpop.f32.mrb[0].mxu0
      %1224 = vdwg.mxu0
      %v1225 = vadd.f32 %v1104, %v1219
      %v1226 = vadd.f32 %v1105, %v1221
      %s1227 = scalar_lea.vmem %s237, 8
      %v1228 = vld [vmem:[%s1227] sm:$0x1]
      %s1229 = scalar_lea.vmem %s242, 768
      %v1230 = vld [vmem:[%s1229] sm:$0xff]
      %v1231 = vld [vmem:[%s1229 + $0x8] sm:$0xff]
      %v1232 = vld [vmem:[%s1229 + $0x10] sm:$0xff]
      %v1233 = vld [vmem:[%s1229 + $0x18] sm:$0xff]
      %v1234 = vld [vmem:[%s1229 + $0x20] sm:$0xff]
      %v1235 = vld [vmem:[%s1229 + $0x28] sm:$0xff]
      %v1236 = vld [vmem:[%s1229 + $0x30] sm:$0xff]
      %v1237 = vld [vmem:[%s1229 + $0x38] sm:$0xff]
      %v1238 = vld [vmem:[%s1229 + $0x40] sm:$0xff]
      %v1239 = vld [vmem:[%s1229 + $0x48] sm:$0xff]
      %v1240 = vld [vmem:[%s1229 + $0x50] sm:$0xff]
      %v1241 = vld [vmem:[%s1229 + $0x58] sm:$0xff]
      %v1254 = vunpack.c.l.b16 %v1230
      %v1255 = vunpack.c.h.b16 %v1230
      %v1256 = vunpack.c.l.b16 %v1231
      %v1257 = vunpack.c.h.b16 %v1231
      %v1258 = vunpack.c.l.b16 %v1232
      %v1259 = vunpack.c.h.b16 %v1232
      %v1260 = vunpack.c.l.b16 %v1233
      %v1261 = vunpack.c.h.b16 %v1233
      %v1262 = vunpack.c.l.b16 %v1234
      %v1263 = vunpack.c.h.b16 %v1234
      %v1264 = vunpack.c.l.b16 %v1235
      %v1265 = vunpack.c.h.b16 %v1235
      %v1266 = vunpack.c.l.b16 %v1236
      %v1267 = vunpack.c.h.b16 %v1236
      %v1268 = vunpack.c.l.b16 %v1237
      %v1269 = vunpack.c.h.b16 %v1237
      %v1270 = vunpack.c.l.b16 %v1238
      %v1271 = vunpack.c.h.b16 %v1238
      %v1272 = vunpack.c.l.b16 %v1239
      %v1273 = vunpack.c.h.b16 %v1239
      %v1274 = vunpack.c.l.b16 %v1240
      %v1275 = vunpack.c.h.b16 %v1240
      %v1276 = vunpack.c.l.b16 %v1241
      %v1277 = vunpack.c.h.b16 %v1241
      %v1278 = vpack.c.b16 %v1256, %v1254
      %v1279 = vpack.c.b16 %v1257, %v1255
      %v1280 = vpack.c.b16 %v1260, %v1258
      %v1281 = vpack.c.b16 %v1261, %v1259
      %v1282 = vpack.c.b16 %v1264, %v1262
      %v1283 = vpack.c.b16 %v1265, %v1263
      %v1284 = vpack.c.b16 %v1268, %v1266
      %v1285 = vpack.c.b16 %v1269, %v1267
      %v1286 = vpack.c.b16 %v1272, %v1270
      %v1287 = vpack.c.b16 %v1273, %v1271
      %v1288 = vpack.c.b16 %v1276, %v1274
      %v1289 = vpack.c.b16 %v1277, %v1275
      %v1303 = vsel %vm352, %v1228, 0
      %1305 = vmatprep.subr.bf16.mxu0 %v1279
      %1306 = vmatpush1.bf16.msra.mxu0 %v1278
      %1307 = vmatprep.subr.bf16.mxu0 %v1281
      %1308 = vmatpush1.bf16.msra.mxu0 %v1280
      %1309 = vmatprep.subr.bf16.mxu0 %v1283
      %1310 = vmatpush1.bf16.msra.mxu0 %v1282
      %1311 = vmatprep.subr.bf16.mxu0 %v1285
      %1312 = vmatpush1.bf16.msra.mxu0 %v1284
      %1313 = vmatprep.subr.bf16.mxu0 %v1287
      %1314 = vmatpush1.bf16.msra.mxu0 %v1286
      %1315 = vmatprep.subr.bf16.mxu0 %v1289
      %1316 = vmatpush1.bf16.msra.mxu0 %v1288
      %1317 = vmatprep.subr.bf16.mxu0 0
      %1318 = vmatpush1.bf16.msra.mxu0 0
      %1319 = vmatprep.subr.bf16.mxu0 0
      %1320 = vmatpush1.bf16.msra.mxu0 0
      %1321 = vmatprep.subr.bf16.mxu0 0
      %1322 = vmatpush1.bf16.msra.mxu0 0
      %1323 = vmatprep.subr.bf16.mxu0 0
      %1324 = vmatpush1.bf16.msra.mxu0 0
      %1325 = vmatprep.subr.bf16.mxu0 0
      %1326 = vmatpush1.bf16.msra.mxu0 0
      %1327 = vmatprep.subr.bf16.mxu0 0
      %1328 = vmatpush1.bf16.msra.mxu0 0
      %1329 = vmatprep.subr.bf16.mxu0 0
      %1330 = vmatpush1.bf16.msra.mxu0 0
      %1331 = vmatprep.subr.bf16.mxu0 0
      %1332 = vmatpush1.bf16.msra.mxu0 0
      %1333 = vmatprep.subr.bf16.mxu0 0
      %1334 = vmatpush1.bf16.msra.mxu0 0
      %1335 = vmatprep.subr.bf16.mxu0 0
      %1336 = vmatpush1.bf16.msra.mxu0 0
      %1337 = vmatprep.mubr.bf16.mxu0 0
      %1338 = vmatmul.mubr.bf16.gmra.mrb[0].mxu0 %v1303
      %v1339 = vpop.f32.mrb[0].mxu0
      %v1340 = vadd.f32 0.0, %v1339
      %v1341 = vpop.f32.mrb[0].mxu0
      %v1342 = vadd.f32 0.0, %v1341
      %v1343 = vpop.f32.mrb[0].mxu0
      %v1344 = vpop.f32.mrb[0].mxu0
      %1345 = vdwg.mxu0
      %v1346 = vadd.f32 %v1225, %v1340
      %v1347 = vadd.f32 %v1226, %v1342
      %s1348 = scalar_lea.vmem %s237, 9
      %v1349 = vld [vmem:[%s1348] sm:$0x1]
      %s1350 = scalar_lea.vmem %s242, 864
      %v1351 = vld [vmem:[%s1350] sm:$0xff]
      %v1352 = vld [vmem:[%s1350 + $0x8] sm:$0xff]
      %v1353 = vld [vmem:[%s1350 + $0x10] sm:$0xff]
      %v1354 = vld [vmem:[%s1350 + $0x18] sm:$0xff]
      %v1355 = vld [vmem:[%s1350 + $0x20] sm:$0xff]
      %v1356 = vld [vmem:[%s1350 + $0x28] sm:$0xff]
      %v1357 = vld [vmem:[%s1350 + $0x30] sm:$0xff]
      %v1358 = vld [vmem:[%s1350 + $0x38] sm:$0xff]
      %v1359 = vld [vmem:[%s1350 + $0x40] sm:$0xff]
      %v1360 = vld [vmem:[%s1350 + $0x48] sm:$0xff]
      %v1361 = vld [vmem:[%s1350 + $0x50] sm:$0xff]
      %v1362 = vld [vmem:[%s1350 + $0x58] sm:$0xff]
      %v1375 = vunpack.c.l.b16 %v1351
      %v1376 = vunpack.c.h.b16 %v1351
      %v1377 = vunpack.c.l.b16 %v1352
      %v1378 = vunpack.c.h.b16 %v1352
      %v1379 = vunpack.c.l.b16 %v1353
      %v1380 = vunpack.c.h.b16 %v1353
      %v1381 = vunpack.c.l.b16 %v1354
      %v1382 = vunpack.c.h.b16 %v1354
      %v1383 = vunpack.c.l.b16 %v1355
      %v1384 = vunpack.c.h.b16 %v1355
      %v1385 = vunpack.c.l.b16 %v1356
      %v1386 = vunpack.c.h.b16 %v1356
      %v1387 = vunpack.c.l.b16 %v1357
      %v1388 = vunpack.c.h.b16 %v1357
      %v1389 = vunpack.c.l.b16 %v1358
      %v1390 = vunpack.c.h.b16 %v1358
      %v1391 = vunpack.c.l.b16 %v1359
      %v1392 = vunpack.c.h.b16 %v1359
      %v1393 = vunpack.c.l.b16 %v1360
      %v1394 = vunpack.c.h.b16 %v1360
      %v1395 = vunpack.c.l.b16 %v1361
      %v1396 = vunpack.c.h.b16 %v1361
      %v1397 = vunpack.c.l.b16 %v1362
      %v1398 = vunpack.c.h.b16 %v1362
      %v1399 = vpack.c.b16 %v1377, %v1375
      %v1400 = vpack.c.b16 %v1378, %v1376
      %v1401 = vpack.c.b16 %v1381, %v1379
      %v1402 = vpack.c.b16 %v1382, %v1380
      %v1403 = vpack.c.b16 %v1385, %v1383
      %v1404 = vpack.c.b16 %v1386, %v1384
      %v1405 = vpack.c.b16 %v1389, %v1387
      %v1406 = vpack.c.b16 %v1390, %v1388
      %v1407 = vpack.c.b16 %v1393, %v1391
      %v1408 = vpack.c.b16 %v1394, %v1392
      %v1409 = vpack.c.b16 %v1397, %v1395
      %v1410 = vpack.c.b16 %v1398, %v1396
      %v1424 = vsel %vm352, %v1349, 0
      %1426 = vmatprep.subr.bf16.mxu0 %v1400
      %1427 = vmatpush1.bf16.msra.mxu0 %v1399
      %1428 = vmatprep.subr.bf16.mxu0 %v1402
      %1429 = vmatpush1.bf16.msra.mxu0 %v1401
      %1430 = vmatprep.subr.bf16.mxu0 %v1404
      %1431 = vmatpush1.bf16.msra.mxu0 %v1403
      %1432 = vmatprep.subr.bf16.mxu0 %v1406
      %1433 = vmatpush1.bf16.msra.mxu0 %v1405
      %1434 = vmatprep.subr.bf16.mxu0 %v1408
      %1435 = vmatpush1.bf16.msra.mxu0 %v1407
      %1436 = vmatprep.subr.bf16.mxu0 %v1410
      %1437 = vmatpush1.bf16.msra.mxu0 %v1409
      %1438 = vmatprep.subr.bf16.mxu0 0
      %1439 = vmatpush1.bf16.msra.mxu0 0
      %1440 = vmatprep.subr.bf16.mxu0 0
      %1441 = vmatpush1.bf16.msra.mxu0 0
      %1442 = vmatprep.subr.bf16.mxu0 0
      %1443 = vmatpush1.bf16.msra.mxu0 0
      %1444 = vmatprep.subr.bf16.mxu0 0
      %1445 = vmatpush1.bf16.msra.mxu0 0
      %1446 = vmatprep.subr.bf16.mxu0 0
      %1447 = vmatpush1.bf16.msra.mxu0 0
      %1448 = vmatprep.subr.bf16.mxu0 0
      %1449 = vmatpush1.bf16.msra.mxu0 0
      %1450 = vmatprep.subr.bf16.mxu0 0
      %1451 = vmatpush1.bf16.msra.mxu0 0
      %1452 = vmatprep.subr.bf16.mxu0 0
      %1453 = vmatpush1.bf16.msra.mxu0 0
      %1454 = vmatprep.subr.bf16.mxu0 0
      %1455 = vmatpush1.bf16.msra.mxu0 0
      %1456 = vmatprep.subr.bf16.mxu0 0
      %1457 = vmatpush1.bf16.msra.mxu0 0
      %1458 = vmatprep.mubr.bf16.mxu0 0
      %1459 = vmatmul.mubr.bf16.gmra.mrb[0].mxu0 %v1424
      %v1460 = vpop.f32.mrb[0].mxu0
      %v1461 = vadd.f32 0.0, %v1460
      %v1462 = vpop.f32.mrb[0].mxu0
      %v1463 = vadd.f32 0.0, %v1462
      %v1464 = vpop.f32.mrb[0].mxu0
      %v1465 = vpop.f32.mrb[0].mxu0
      %1466 = vdwg.mxu0
      %v1467 = vadd.f32 %v1346, %v1461
      %v1468 = vadd.f32 %v1347, %v1463
      %s1469 = scalar_lea.vmem %s237, 10
      %v1470 = vld [vmem:[%s1469] sm:$0x1]
      %s1471 = scalar_lea.vmem %s242, 960
      %v1472 = vld [vmem:[%s1471] sm:$0xff]
      %v1473 = vld [vmem:[%s1471 + $0x8] sm:$0xff]
      %v1474 = vld [vmem:[%s1471 + $0x10] sm:$0xff]
      %v1475 = vld [vmem:[%s1471 + $0x18] sm:$0xff]
      %v1476 = vld [vmem:[%s1471 + $0x20] sm:$0xff]
      %v1477 = vld [vmem:[%s1471 + $0x28] sm:$0xff]
      %v1478 = vld [vmem:[%s1471 + $0x30] sm:$0xff]
      %v1479 = vld [vmem:[%s1471 + $0x38] sm:$0xff]
      %v1480 = vld [vmem:[%s1471 + $0x40] sm:$0xff]
      %v1481 = vld [vmem:[%s1471 + $0x48] sm:$0xff]
      %v1482 = vld [vmem:[%s1471 + $0x50] sm:$0xff]
      %v1483 = vld [vmem:[%s1471 + $0x58] sm:$0xff]
      %v1496 = vunpack.c.l.b16 %v1472
      %v1497 = vunpack.c.h.b16 %v1472
      %v1498 = vunpack.c.l.b16 %v1473
      %v1499 = vunpack.c.h.b16 %v1473
      %v1500 = vunpack.c.l.b16 %v1474
      %v1501 = vunpack.c.h.b16 %v1474
      %v1502 = vunpack.c.l.b16 %v1475
      %v1503 = vunpack.c.h.b16 %v1475
      %v1504 = vunpack.c.l.b16 %v1476
      %v1505 = vunpack.c.h.b16 %v1476
      %v1506 = vunpack.c.l.b16 %v1477
      %v1507 = vunpack.c.h.b16 %v1477
      %v1508 = vunpack.c.l.b16 %v1478
      %v1509 = vunpack.c.h.b16 %v1478
      %v1510 = vunpack.c.l.b16 %v1479
      %v1511 = vunpack.c.h.b16 %v1479
      %v1512 = vunpack.c.l.b16 %v1480
      %v1513 = vunpack.c.h.b16 %v1480
      %v1514 = vunpack.c.l.b16 %v1481
      %v1515 = vunpack.c.h.b16 %v1481
      %v1516 = vunpack.c.l.b16 %v1482
      %v1517 = vunpack.c.h.b16 %v1482
      %v1518 = vunpack.c.l.b16 %v1483
      %v1519 = vunpack.c.h.b16 %v1483
      %v1520 = vpack.c.b16 %v1498, %v1496
      %v1521 = vpack.c.b16 %v1499, %v1497
      %v1522 = vpack.c.b16 %v1502, %v1500
      %v1523 = vpack.c.b16 %v1503, %v1501
      %v1524 = vpack.c.b16 %v1506, %v1504
      %v1525 = vpack.c.b16 %v1507, %v1505
      %v1526 = vpack.c.b16 %v1510, %v1508
      %v1527 = vpack.c.b16 %v1511, %v1509
      %v1528 = vpack.c.b16 %v1514, %v1512
      %v1529 = vpack.c.b16 %v1515, %v1513
      %v1530 = vpack.c.b16 %v1518, %v1516
      %v1531 = vpack.c.b16 %v1519, %v1517
      %v1545 = vsel %vm352, %v1470, 0
      %1547 = vmatprep.subr.bf16.mxu0 %v1521
      %1548 = vmatpush1.bf16.msra.mxu0 %v1520
      %1549 = vmatprep.subr.bf16.mxu0 %v1523
      %1550 = vmatpush1.bf16.msra.mxu0 %v1522
      %1551 = vmatprep.subr.bf16.mxu0 %v1525
      %1552 = vmatpush1.bf16.msra.mxu0 %v1524
      %1553 = vmatprep.subr.bf16.mxu0 %v1527
      %1554 = vmatpush1.bf16.msra.mxu0 %v1526
      %1555 = vmatprep.subr.bf16.mxu0 %v1529
      %1556 = vmatpush1.bf16.msra.mxu0 %v1528
      %1557 = vmatprep.subr.bf16.mxu0 %v1531
      %1558 = vmatpush1.bf16.msra.mxu0 %v1530
      %1559 = vmatprep.subr.bf16.mxu0 0
      %1560 = vmatpush1.bf16.msra.mxu0 0
      %1561 = vmatprep.subr.bf16.mxu0 0
      %1562 = vmatpush1.bf16.msra.mxu0 0
      %1563 = vmatprep.subr.bf16.mxu0 0
      %1564 = vmatpush1.bf16.msra.mxu0 0
      %1565 = vmatprep.subr.bf16.mxu0 0
      %1566 = vmatpush1.bf16.msra.mxu0 0
      %1567 = vmatprep.subr.bf16.mxu0 0
      %1568 = vmatpush1.bf16.msra.mxu0 0
      %1569 = vmatprep.subr.bf16.mxu0 0
      %1570 = vmatpush1.bf16.msra.mxu0 0
      %1571 = vmatprep.subr.bf16.mxu0 0
      %1572 = vmatpush1.bf16.msra.mxu0 0
      %1573 = vmatprep.subr.bf16.mxu0 0
      %1574 = vmatpush1.bf16.msra.mxu0 0
      %1575 = vmatprep.subr.bf16.mxu0 0
      %1576 = vmatpush1.bf16.msra.mxu0 0
      %1577 = vmatprep.subr.bf16.mxu0 0
      %1578 = vmatpush1.bf16.msra.mxu0 0
      %1579 = vmatprep.mubr.bf16.mxu0 0
      %1580 = vmatmul.mubr.bf16.gmra.mrb[0].mxu0 %v1545
      %v1581 = vpop.f32.mrb[0].mxu0
      %v1582 = vadd.f32 0.0, %v1581
      %v1583 = vpop.f32.mrb[0].mxu0
      %v1584 = vadd.f32 0.0, %v1583
      %v1585 = vpop.f32.mrb[0].mxu0
      %v1586 = vpop.f32.mrb[0].mxu0
      %1587 = vdwg.mxu0
      %v1588 = vadd.f32 %v1467, %v1582
      %v1589 = vadd.f32 %v1468, %v1584
      %s1590 = scalar_lea.vmem %s237, 11
      %v1591 = vld [vmem:[%s1590] sm:$0x1]
      %s1592 = scalar_lea.vmem %s242, 1056
      %v1593 = vld [vmem:[%s1592] sm:$0xff]
      %v1594 = vld [vmem:[%s1592 + $0x8] sm:$0xff]
      %v1595 = vld [vmem:[%s1592 + $0x10] sm:$0xff]
      %v1596 = vld [vmem:[%s1592 + $0x18] sm:$0xff]
      %v1597 = vld [vmem:[%s1592 + $0x20] sm:$0xff]
      %v1598 = vld [vmem:[%s1592 + $0x28] sm:$0xff]
      %v1599 = vld [vmem:[%s1592 + $0x30] sm:$0xff]
      %v1600 = vld [vmem:[%s1592 + $0x38] sm:$0xff]
      %v1601 = vld [vmem:[%s1592 + $0x40] sm:$0xff]
      %v1602 = vld [vmem:[%s1592 + $0x48] sm:$0xff]
      %v1603 = vld [vmem:[%s1592 + $0x50] sm:$0xff]
      %v1604 = vld [vmem:[%s1592 + $0x58] sm:$0xff]
      %v1617 = vunpack.c.l.b16 %v1593
      %v1618 = vunpack.c.h.b16 %v1593
      %v1619 = vunpack.c.l.b16 %v1594
      %v1620 = vunpack.c.h.b16 %v1594
      %v1621 = vunpack.c.l.b16 %v1595
      %v1622 = vunpack.c.h.b16 %v1595
      %v1623 = vunpack.c.l.b16 %v1596
      %v1624 = vunpack.c.h.b16 %v1596
      %v1625 = vunpack.c.l.b16 %v1597
      %v1626 = vunpack.c.h.b16 %v1597
      %v1627 = vunpack.c.l.b16 %v1598
      %v1628 = vunpack.c.h.b16 %v1598
      %v1629 = vunpack.c.l.b16 %v1599
      %v1630 = vunpack.c.h.b16 %v1599
      %v1631 = vunpack.c.l.b16 %v1600
      %v1632 = vunpack.c.h.b16 %v1600
      %v1633 = vunpack.c.l.b16 %v1601
      %v1634 = vunpack.c.h.b16 %v1601
      %v1635 = vunpack.c.l.b16 %v1602
      %v1636 = vunpack.c.h.b16 %v1602
      %v1637 = vunpack.c.l.b16 %v1603
      %v1638 = vunpack.c.h.b16 %v1603
      %v1639 = vunpack.c.l.b16 %v1604
      %v1640 = vunpack.c.h.b16 %v1604
      %v1641 = vpack.c.b16 %v1619, %v1617
      %v1642 = vpack.c.b16 %v1620, %v1618
      %v1643 = vpack.c.b16 %v1623, %v1621
      %v1644 = vpack.c.b16 %v1624, %v1622
      %v1645 = vpack.c.b16 %v1627, %v1625
      %v1646 = vpack.c.b16 %v1628, %v1626
      %v1647 = vpack.c.b16 %v1631, %v1629
      %v1648 = vpack.c.b16 %v1632, %v1630
      %v1649 = vpack.c.b16 %v1635, %v1633
      %v1650 = vpack.c.b16 %v1636, %v1634
      %v1651 = vpack.c.b16 %v1639, %v1637
      %v1652 = vpack.c.b16 %v1640, %v1638
      %v1666 = vsel %vm352, %v1591, 0
      %1668 = vmatprep.subr.bf16.mxu0 %v1642
      %1669 = vmatpush1.bf16.msra.mxu0 %v1641
      %1670 = vmatprep.subr.bf16.mxu0 %v1644
      %1671 = vmatpush1.bf16.msra.mxu0 %v1643
      %1672 = vmatprep.subr.bf16.mxu0 %v1646
      %1673 = vmatpush1.bf16.msra.mxu0 %v1645
      %1674 = vmatprep.subr.bf16.mxu0 %v1648
      %1675 = vmatpush1.bf16.msra.mxu0 %v1647
      %1676 = vmatprep.subr.bf16.mxu0 %v1650
      %1677 = vmatpush1.bf16.msra.mxu0 %v1649
      %1678 = vmatprep.subr.bf16.mxu0 %v1652
      %1679 = vmatpush1.bf16.msra.mxu0 %v1651
      %1680 = vmatprep.subr.bf16.mxu0 0
      %1681 = vmatpush1.bf16.msra.mxu0 0
      %1682 = vmatprep.subr.bf16.mxu0 0
      %1683 = vmatpush1.bf16.msra.mxu0 0
      %1684 = vmatprep.subr.bf16.mxu0 0
      %1685 = vmatpush1.bf16.msra.mxu0 0
      %1686 = vmatprep.subr.bf16.mxu0 0
      %1687 = vmatpush1.bf16.msra.mxu0 0
      %1688 = vmatprep.subr.bf16.mxu0 0
      %1689 = vmatpush1.bf16.msra.mxu0 0
      %1690 = vmatprep.subr.bf16.mxu0 0
      %1691 = vmatpush1.bf16.msra.mxu0 0
      %1692 = vmatprep.subr.bf16.mxu0 0
      %1693 = vmatpush1.bf16.msra.mxu0 0
      %1694 = vmatprep.subr.bf16.mxu0 0
      %1695 = vmatpush1.bf16.msra.mxu0 0
      %1696 = vmatprep.subr.bf16.mxu0 0
      %1697 = vmatpush1.bf16.msra.mxu0 0
      %1698 = vmatprep.subr.bf16.mxu0 0
      %1699 = vmatpush1.bf16.msra.mxu0 0
      %1700 = vmatprep.mubr.bf16.mxu0 0
      %1701 = vmatmul.mubr.bf16.gmra.mrb[0].mxu0 %v1666
      %v1702 = vpop.f32.mrb[0].mxu0
      %v1703 = vadd.f32 0.0, %v1702
      %v1704 = vpop.f32.mrb[0].mxu0
      %v1705 = vadd.f32 0.0, %v1704
      %v1706 = vpop.f32.mrb[0].mxu0
      %v1707 = vpop.f32.mrb[0].mxu0
      %1708 = vdwg.mxu0
      %v1709 = vadd.f32 %v1588, %v1703
      %v1710 = vadd.f32 %v1589, %v1705
      %s1711 = scalar_lea.vmem %s237, 12
      %v1712 = vld [vmem:[%s1711] sm:$0x1]
      %s1713 = scalar_lea.vmem %s242, 1152
      %v1714 = vld [vmem:[%s1713] sm:$0xff]
      %v1715 = vld [vmem:[%s1713 + $0x8] sm:$0xff]
      %v1716 = vld [vmem:[%s1713 + $0x10] sm:$0xff]
      %v1717 = vld [vmem:[%s1713 + $0x18] sm:$0xff]
      %v1718 = vld [vmem:[%s1713 + $0x20] sm:$0xff]
      %v1719 = vld [vmem:[%s1713 + $0x28] sm:$0xff]
      %v1720 = vld [vmem:[%s1713 + $0x30] sm:$0xff]
      %v1721 = vld [vmem:[%s1713 + $0x38] sm:$0xff]
      %v1722 = vld [vmem:[%s1713 + $0x40] sm:$0xff]
      %v1723 = vld [vmem:[%s1713 + $0x48] sm:$0xff]
      %v1724 = vld [vmem:[%s1713 + $0x50] sm:$0xff]
      %v1725 = vld [vmem:[%s1713 + $0x58] sm:$0xff]
      %v1738 = vunpack.c.l.b16 %v1714
      %v1739 = vunpack.c.h.b16 %v1714
      %v1740 = vunpack.c.l.b16 %v1715
      %v1741 = vunpack.c.h.b16 %v1715
      %v1742 = vunpack.c.l.b16 %v1716
      %v1743 = vunpack.c.h.b16 %v1716
      %v1744 = vunpack.c.l.b16 %v1717
      %v1745 = vunpack.c.h.b16 %v1717
      %v1746 = vunpack.c.l.b16 %v1718
      %v1747 = vunpack.c.h.b16 %v1718
      %v1748 = vunpack.c.l.b16 %v1719
      %v1749 = vunpack.c.h.b16 %v1719
      %v1750 = vunpack.c.l.b16 %v1720
      %v1751 = vunpack.c.h.b16 %v1720
      %v1752 = vunpack.c.l.b16 %v1721
      %v1753 = vunpack.c.h.b16 %v1721
      %v1754 = vunpack.c.l.b16 %v1722
      %v1755 = vunpack.c.h.b16 %v1722
      %v1756 = vunpack.c.l.b16 %v1723
      %v1757 = vunpack.c.h.b16 %v1723
      %v1758 = vunpack.c.l.b16 %v1724
      %v1759 = vunpack.c.h.b16 %v1724
      %v1760 = vunpack.c.l.b16 %v1725
      %v1761 = vunpack.c.h.b16 %v1725
      %v1762 = vpack.c.b16 %v1740, %v1738
      %v1763 = vpack.c.b16 %v1741, %v1739
      %v1764 = vpack.c.b16 %v1744, %v1742
      %v1765 = vpack.c.b16 %v1745, %v1743
      %v1766 = vpack.c.b16 %v1748, %v1746
      %v1767 = vpack.c.b16 %v1749, %v1747
      %v1768 = vpack.c.b16 %v1752, %v1750
      %v1769 = vpack.c.b16 %v1753, %v1751
      %v1770 = vpack.c.b16 %v1756, %v1754
      %v1771 = vpack.c.b16 %v1757, %v1755
      %v1772 = vpack.c.b16 %v1760, %v1758
      %v1773 = vpack.c.b16 %v1761, %v1759
      %v1787 = vsel %vm352, %v1712, 0
      %1789 = vmatprep.subr.bf16.mxu0 %v1763
      %1790 = vmatpush1.bf16.msra.mxu0 %v1762
      %1791 = vmatprep.subr.bf16.mxu0 %v1765
      %1792 = vmatpush1.bf16.msra.mxu0 %v1764
      %1793 = vmatprep.subr.bf16.mxu0 %v1767
      %1794 = vmatpush1.bf16.msra.mxu0 %v1766
      %1795 = vmatprep.subr.bf16.mxu0 %v1769
      %1796 = vmatpush1.bf16.msra.mxu0 %v1768
      %1797 = vmatprep.subr.bf16.mxu0 %v1771
      %1798 = vmatpush1.bf16.msra.mxu0 %v1770
      %1799 = vmatprep.subr.bf16.mxu0 %v1773
      %1800 = vmatpush1.bf16.msra.mxu0 %v1772
      %1801 = vmatprep.subr.bf16.mxu0 0
      %1802 = vmatpush1.bf16.msra.mxu0 0
      %1803 = vmatprep.subr.bf16.mxu0 0
      %1804 = vmatpush1.bf16.msra.mxu0 0
      %1805 = vmatprep.subr.bf16.mxu0 0
      %1806 = vmatpush1.bf16.msra.mxu0 0
      %1807 = vmatprep.subr.bf16.mxu0 0
      %1808 = vmatpush1.bf16.msra.mxu0 0
      %1809 = vmatprep.subr.bf16.mxu0 0
      %1810 = vmatpush1.bf16.msra.mxu0 0
      %1811 = vmatprep.subr.bf16.mxu0 0
      %1812 = vmatpush1.bf16.msra.mxu0 0
      %1813 = vmatprep.subr.bf16.mxu0 0
      %1814 = vmatpush1.bf16.msra.mxu0 0
      %1815 = vmatprep.subr.bf16.mxu0 0
      %1816 = vmatpush1.bf16.msra.mxu0 0
      %1817 = vmatprep.subr.bf16.mxu0 0
      %1818 = vmatpush1.bf16.msra.mxu0 0
      %1819 = vmatprep.subr.bf16.mxu0 0
      %1820 = vmatpush1.bf16.msra.mxu0 0
      %1821 = vmatprep.mubr.bf16.mxu0 0
      %1822 = vmatmul.mubr.bf16.gmra.mrb[0].mxu0 %v1787
      %v1823 = vpop.f32.mrb[0].mxu0
      %v1824 = vadd.f32 0.0, %v1823
      %v1825 = vpop.f32.mrb[0].mxu0
      %v1826 = vadd.f32 0.0, %v1825
      %v1827 = vpop.f32.mrb[0].mxu0
      %v1828 = vpop.f32.mrb[0].mxu0
      %1829 = vdwg.mxu0
      %v1830 = vadd.f32 %v1709, %v1824
      %v1831 = vadd.f32 %v1710, %v1826
      %s1832 = scalar_lea.vmem %s237, 13
      %v1833 = vld [vmem:[%s1832] sm:$0x1]
      %s1834 = scalar_lea.vmem %s242, 1248
      %v1835 = vld [vmem:[%s1834] sm:$0xff]
      %v1836 = vld [vmem:[%s1834 + $0x8] sm:$0xff]
      %v1837 = vld [vmem:[%s1834 + $0x10] sm:$0xff]
      %v1838 = vld [vmem:[%s1834 + $0x18] sm:$0xff]
      %v1839 = vld [vmem:[%s1834 + $0x20] sm:$0xff]
      %v1840 = vld [vmem:[%s1834 + $0x28] sm:$0xff]
      %v1841 = vld [vmem:[%s1834 + $0x30] sm:$0xff]
      %v1842 = vld [vmem:[%s1834 + $0x38] sm:$0xff]
      %v1843 = vld [vmem:[%s1834 + $0x40] sm:$0xff]
      %v1844 = vld [vmem:[%s1834 + $0x48] sm:$0xff]
      %v1845 = vld [vmem:[%s1834 + $0x50] sm:$0xff]
      %v1846 = vld [vmem:[%s1834 + $0x58] sm:$0xff]
      %v1859 = vunpack.c.l.b16 %v1835
      %v1860 = vunpack.c.h.b16 %v1835
      %v1861 = vunpack.c.l.b16 %v1836
      %v1862 = vunpack.c.h.b16 %v1836
      %v1863 = vunpack.c.l.b16 %v1837
      %v1864 = vunpack.c.h.b16 %v1837
      %v1865 = vunpack.c.l.b16 %v1838
      %v1866 = vunpack.c.h.b16 %v1838
      %v1867 = vunpack.c.l.b16 %v1839
      %v1868 = vunpack.c.h.b16 %v1839
      %v1869 = vunpack.c.l.b16 %v1840
      %v1870 = vunpack.c.h.b16 %v1840
      %v1871 = vunpack.c.l.b16 %v1841
      %v1872 = vunpack.c.h.b16 %v1841
      %v1873 = vunpack.c.l.b16 %v1842
      %v1874 = vunpack.c.h.b16 %v1842
      %v1875 = vunpack.c.l.b16 %v1843
      %v1876 = vunpack.c.h.b16 %v1843
      %v1877 = vunpack.c.l.b16 %v1844
      %v1878 = vunpack.c.h.b16 %v1844
      %v1879 = vunpack.c.l.b16 %v1845
      %v1880 = vunpack.c.h.b16 %v1845
      %v1881 = vunpack.c.l.b16 %v1846
      %v1882 = vunpack.c.h.b16 %v1846
      %v1883 = vpack.c.b16 %v1861, %v1859
      %v1884 = vpack.c.b16 %v1862, %v1860
      %v1885 = vpack.c.b16 %v1865, %v1863
      %v1886 = vpack.c.b16 %v1866, %v1864
      %v1887 = vpack.c.b16 %v1869, %v1867
      %v1888 = vpack.c.b16 %v1870, %v1868
      %v1889 = vpack.c.b16 %v1873, %v1871
      %v1890 = vpack.c.b16 %v1874, %v1872
      %v1891 = vpack.c.b16 %v1877, %v1875
      %v1892 = vpack.c.b16 %v1878, %v1876
      %v1893 = vpack.c.b16 %v1881, %v1879
      %v1894 = vpack.c.b16 %v1882, %v1880
      %v1908 = vsel %vm352, %v1833, 0
      %1910 = vmatprep.subr.bf16.mxu0 %v1884
      %1911 = vmatpush1.bf16.msra.mxu0 %v1883
      %1912 = vmatprep.subr.bf16.mxu0 %v1886
      %1913 = vmatpush1.bf16.msra.mxu0 %v1885
      %1914 = vmatprep.subr.bf16.mxu0 %v1888
      %1915 = vmatpush1.bf16.msra.mxu0 %v1887
      %1916 = vmatprep.subr.bf16.mxu0 %v1890
      %1917 = vmatpush1.bf16.msra.mxu0 %v1889
      %1918 = vmatprep.subr.bf16.mxu0 %v1892
      %1919 = vmatpush1.bf16.msra.mxu0 %v1891
      %1920 = vmatprep.subr.bf16.mxu0 %v1894
      %1921 = vmatpush1.bf16.msra.mxu0 %v1893
      %1922 = vmatprep.subr.bf16.mxu0 0
      %1923 = vmatpush1.bf16.msra.mxu0 0
      %1924 = vmatprep.subr.bf16.mxu0 0
      %1925 = vmatpush1.bf16.msra.mxu0 0
      %1926 = vmatprep.subr.bf16.mxu0 0
      %1927 = vmatpush1.bf16.msra.mxu0 0
      %1928 = vmatprep.subr.bf16.mxu0 0
      %1929 = vmatpush1.bf16.msra.mxu0 0
      %1930 = vmatprep.subr.bf16.mxu0 0
      %1931 = vmatpush1.bf16.msra.mxu0 0
      %1932 = vmatprep.subr.bf16.mxu0 0
      %1933 = vmatpush1.bf16.msra.mxu0 0
      %1934 = vmatprep.subr.bf16.mxu0 0
      %1935 = vmatpush1.bf16.msra.mxu0 0
      %1936 = vmatprep.subr.bf16.mxu0 0
      %1937 = vmatpush1.bf16.msra.mxu0 0
      %1938 = vmatprep.subr.bf16.mxu0 0
      %1939 = vmatpush1.bf16.msra.mxu0 0
      %1940 = vmatprep.subr.bf16.mxu0 0
      %1941 = vmatpush1.bf16.msra.mxu0 0
      %1942 = vmatprep.mubr.bf16.mxu0 0
      %1943 = vmatmul.mubr.bf16.gmra.mrb[0].mxu0 %v1908
      %v1944 = vpop.f32.mrb[0].mxu0
      %v1945 = vadd.f32 0.0, %v1944
      %v1946 = vpop.f32.mrb[0].mxu0
      %v1947 = vadd.f32 0.0, %v1946
      %v1948 = vpop.f32.mrb[0].mxu0
      %v1949 = vpop.f32.mrb[0].mxu0
      %1950 = vdwg.mxu0
      %v1951 = vadd.f32 %v1830, %v1945
      %v1952 = vadd.f32 %v1831, %v1947
      %s1953 = scalar_lea.vmem %s237, 14
      %v1954 = vld [vmem:[%s1953] sm:$0x1]
      %s1955 = scalar_lea.vmem %s242, 1344
      %v1956 = vld [vmem:[%s1955] sm:$0xff]
      %v1957 = vld [vmem:[%s1955 + $0x8] sm:$0xff]
      %v1958 = vld [vmem:[%s1955 + $0x10] sm:$0xff]
      %v1959 = vld [vmem:[%s1955 + $0x18] sm:$0xff]
      %v1960 = vld [vmem:[%s1955 + $0x20] sm:$0xff]
      %v1961 = vld [vmem:[%s1955 + $0x28] sm:$0xff]
      %v1962 = vld [vmem:[%s1955 + $0x30] sm:$0xff]
      %v1963 = vld [vmem:[%s1955 + $0x38] sm:$0xff]
      %v1964 = vld [vmem:[%s1955 + $0x40] sm:$0xff]
      %v1965 = vld [vmem:[%s1955 + $0x48] sm:$0xff]
      %v1966 = vld [vmem:[%s1955 + $0x50] sm:$0xff]
      %v1967 = vld [vmem:[%s1955 + $0x58] sm:$0xff]
      %v1980 = vunpack.c.l.b16 %v1956
      %v1981 = vunpack.c.h.b16 %v1956
      %v1982 = vunpack.c.l.b16 %v1957
      %v1983 = vunpack.c.h.b16 %v1957
      %v1984 = vunpack.c.l.b16 %v1958
      %v1985 = vunpack.c.h.b16 %v1958
      %v1986 = vunpack.c.l.b16 %v1959
      %v1987 = vunpack.c.h.b16 %v1959
      %v1988 = vunpack.c.l.b16 %v1960
      %v1989 = vunpack.c.h.b16 %v1960
      %v1990 = vunpack.c.l.b16 %v1961
      %v1991 = vunpack.c.h.b16 %v1961
      %v1992 = vunpack.c.l.b16 %v1962
      %v1993 = vunpack.c.h.b16 %v1962
      %v1994 = vunpack.c.l.b16 %v1963
      %v1995 = vunpack.c.h.b16 %v1963
      %v1996 = vunpack.c.l.b16 %v1964
      %v1997 = vunpack.c.h.b16 %v1964
      %v1998 = vunpack.c.l.b16 %v1965
      %v1999 = vunpack.c.h.b16 %v1965
      %v2000 = vunpack.c.l.b16 %v1966
      %v2001 = vunpack.c.h.b16 %v1966
      %v2002 = vunpack.c.l.b16 %v1967
      %v2003 = vunpack.c.h.b16 %v1967
      %v2004 = vpack.c.b16 %v1982, %v1980
      %v2005 = vpack.c.b16 %v1983, %v1981
      %v2006 = vpack.c.b16 %v1986, %v1984
      %v2007 = vpack.c.b16 %v1987, %v1985
      %v2008 = vpack.c.b16 %v1990, %v1988
      %v2009 = vpack.c.b16 %v1991, %v1989
      %v2010 = vpack.c.b16 %v1994, %v1992
      %v2011 = vpack.c.b16 %v1995, %v1993
      %v2012 = vpack.c.b16 %v1998, %v1996
      %v2013 = vpack.c.b16 %v1999, %v1997
      %v2014 = vpack.c.b16 %v2002, %v2000
      %v2015 = vpack.c.b16 %v2003, %v2001
      %v2029 = vsel %vm352, %v1954, 0
      %2031 = vmatprep.subr.bf16.mxu0 %v2005
      %2032 = vmatpush1.bf16.msra.mxu0 %v2004
      %2033 = vmatprep.subr.bf16.mxu0 %v2007
      %2034 = vmatpush1.bf16.msra.mxu0 %v2006
      %2035 = vmatprep.subr.bf16.mxu0 %v2009
      %2036 = vmatpush1.bf16.msra.mxu0 %v2008
      %2037 = vmatprep.subr.bf16.mxu0 %v2011
      %2038 = vmatpush1.bf16.msra.mxu0 %v2010
      %2039 = vmatprep.subr.bf16.mxu0 %v2013
      %2040 = vmatpush1.bf16.msra.mxu0 %v2012
      %2041 = vmatprep.subr.bf16.mxu0 %v2015
      %2042 = vmatpush1.bf16.msra.mxu0 %v2014
      %2043 = vmatprep.subr.bf16.mxu0 0
      %2044 = vmatpush1.bf16.msra.mxu0 0
      %2045 = vmatprep.subr.bf16.mxu0 0
      %2046 = vmatpush1.bf16.msra.mxu0 0
      %2047 = vmatprep.subr.bf16.mxu0 0
      %2048 = vmatpush1.bf16.msra.mxu0 0
      %2049 = vmatprep.subr.bf16.mxu0 0
      %2050 = vmatpush1.bf16.msra.mxu0 0
      %2051 = vmatprep.subr.bf16.mxu0 0
      %2052 = vmatpush1.bf16.msra.mxu0 0
      %2053 = vmatprep.subr.bf16.mxu0 0
      %2054 = vmatpush1.bf16.msra.mxu0 0
      %2055 = vmatprep.subr.bf16.mxu0 0
      %2056 = vmatpush1.bf16.msra.mxu0 0
      %2057 = vmatprep.subr.bf16.mxu0 0
      %2058 = vmatpush1.bf16.msra.mxu0 0
      %2059 = vmatprep.subr.bf16.mxu0 0
      %2060 = vmatpush1.bf16.msra.mxu0 0
      %2061 = vmatprep.subr.bf16.mxu0 0
      %2062 = vmatpush1.bf16.msra.mxu0 0
      %2063 = vmatprep.mubr.bf16.mxu0 0
      %2064 = vmatmul.mubr.bf16.gmra.mrb[0].mxu0 %v2029
      %v2065 = vpop.f32.mrb[0].mxu0
      %v2066 = vadd.f32 0.0, %v2065
      %v2067 = vpop.f32.mrb[0].mxu0
      %v2068 = vadd.f32 0.0, %v2067
      %v2069 = vpop.f32.mrb[0].mxu0
      %v2070 = vpop.f32.mrb[0].mxu0
      %2071 = vdwg.mxu0
      %v2072 = vadd.f32 %v1951, %v2066
      %v2073 = vadd.f32 %v1952, %v2068
      %s2074 = scalar_lea.vmem %s237, 15
      %v2075 = vld [vmem:[%s2074] sm:$0x1]
      %s2076 = scalar_lea.vmem %s242, 1440
      %v2077 = vld [vmem:[%s2076] sm:$0xff]
      %v2078 = vld [vmem:[%s2076 + $0x8] sm:$0xff]
      %v2079 = vld [vmem:[%s2076 + $0x10] sm:$0xff]
      %v2080 = vld [vmem:[%s2076 + $0x18] sm:$0xff]
      %v2081 = vld [vmem:[%s2076 + $0x20] sm:$0xff]
      %v2082 = vld [vmem:[%s2076 + $0x28] sm:$0xff]
      %v2083 = vld [vmem:[%s2076 + $0x30] sm:$0xff]
      %v2084 = vld [vmem:[%s2076 + $0x38] sm:$0xff]
      %v2085 = vld [vmem:[%s2076 + $0x40] sm:$0xff]
      %v2086 = vld [vmem:[%s2076 + $0x48] sm:$0xff]
      %v2087 = vld [vmem:[%s2076 + $0x50] sm:$0xff]
      %v2088 = vld [vmem:[%s2076 + $0x58] sm:$0xff]
      %v2101 = vunpack.c.l.b16 %v2077
      %v2102 = vunpack.c.h.b16 %v2077
      %v2103 = vunpack.c.l.b16 %v2078
      %v2104 = vunpack.c.h.b16 %v2078
      %v2105 = vunpack.c.l.b16 %v2079
      %v2106 = vunpack.c.h.b16 %v2079
      %v2107 = vunpack.c.l.b16 %v2080
      %v2108 = vunpack.c.h.b16 %v2080
      %v2109 = vunpack.c.l.b16 %v2081
      %v2110 = vunpack.c.h.b16 %v2081
      %v2111 = vunpack.c.l.b16 %v2082
      %v2112 = vunpack.c.h.b16 %v2082
      %v2113 = vunpack.c.l.b16 %v2083
      %v2114 = vunpack.c.h.b16 %v2083
      %v2115 = vunpack.c.l.b16 %v2084
      %v2116 = vunpack.c.h.b16 %v2084
      %v2117 = vunpack.c.l.b16 %v2085
      %v2118 = vunpack.c.h.b16 %v2085
      %v2119 = vunpack.c.l.b16 %v2086
      %v2120 = vunpack.c.h.b16 %v2086
      %v2121 = vunpack.c.l.b16 %v2087
      %v2122 = vunpack.c.h.b16 %v2087
      %v2123 = vunpack.c.l.b16 %v2088
      %v2124 = vunpack.c.h.b16 %v2088
      %v2125 = vpack.c.b16 %v2103, %v2101
      %v2126 = vpack.c.b16 %v2104, %v2102
      %v2127 = vpack.c.b16 %v2107, %v2105
      %v2128 = vpack.c.b16 %v2108, %v2106
      %v2129 = vpack.c.b16 %v2111, %v2109
      %v2130 = vpack.c.b16 %v2112, %v2110
      %v2131 = vpack.c.b16 %v2115, %v2113
      %v2132 = vpack.c.b16 %v2116, %v2114
      %v2133 = vpack.c.b16 %v2119, %v2117
      %v2134 = vpack.c.b16 %v2120, %v2118
      %v2135 = vpack.c.b16 %v2123, %v2121
      %v2136 = vpack.c.b16 %v2124, %v2122
      %v2150 = vsel %vm352, %v2075, 0
      %2152 = vmatprep.subr.bf16.mxu0 %v2126
      %2153 = vmatpush1.bf16.msra.mxu0 %v2125
      %2154 = vmatprep.subr.bf16.mxu0 %v2128
      %2155 = vmatpush1.bf16.msra.mxu0 %v2127
      %2156 = vmatprep.subr.bf16.mxu0 %v2130
      %2157 = vmatpush1.bf16.msra.mxu0 %v2129
      %2158 = vmatprep.subr.bf16.mxu0 %v2132
      %2159 = vmatpush1.bf16.msra.mxu0 %v2131
      %2160 = vmatprep.subr.bf16.mxu0 %v2134
      %2161 = vmatpush1.bf16.msra.mxu0 %v2133
      %2162 = vmatprep.subr.bf16.mxu0 %v2136
      %2163 = vmatpush1.bf16.msra.mxu0 %v2135
      %2164 = vmatprep.subr.bf16.mxu0 0
      %2165 = vmatpush1.bf16.msra.mxu0 0
      %2166 = vmatprep.subr.bf16.mxu0 0
      %2167 = vmatpush1.bf16.msra.mxu0 0
      %2168 = vmatprep.subr.bf16.mxu0 0
      %2169 = vmatpush1.bf16.msra.mxu0 0
      %2170 = vmatprep.subr.bf16.mxu0 0
      %2171 = vmatpush1.bf16.msra.mxu0 0
      %2172 = vmatprep.subr.bf16.mxu0 0
      %2173 = vmatpush1.bf16.msra.mxu0 0
      %2174 = vmatprep.subr.bf16.mxu0 0
      %2175 = vmatpush1.bf16.msra.mxu0 0
      %2176 = vmatprep.subr.bf16.mxu0 0
      %2177 = vmatpush1.bf16.msra.mxu0 0
      %2178 = vmatprep.subr.bf16.mxu0 0
      %2179 = vmatpush1.bf16.msra.mxu0 0
      %2180 = vmatprep.subr.bf16.mxu0 0
      %2181 = vmatpush1.bf16.msra.mxu0 0
      %2182 = vmatprep.subr.bf16.mxu0 0
      %2183 = vmatpush1.bf16.msra.mxu0 0
      %2184 = vmatprep.mubr.bf16.mxu0 0
      %2185 = vmatmul.mubr.bf16.gmra.mrb[0].mxu0 %v2150
      %v2186 = vpop.f32.mrb[0].mxu0
      %v2187 = vadd.f32 0.0, %v2186
      %v2188 = vpop.f32.mrb[0].mxu0
      %v2189 = vadd.f32 0.0, %v2188
      %v2190 = vpop.f32.mrb[0].mxu0
      %v2191 = vpop.f32.mrb[0].mxu0
      %2192 = vdwg.mxu0
      %v2193 = vadd.f32 %v2072, %v2187
      %v2194 = vadd.f32 %v2073, %v2189
      %s2195 = scalar_lea.vmem %s237, 16
      %v2196 = vld [vmem:[%s2195] sm:$0x1]
      %s2197 = scalar_lea.vmem %s242, 1536
      %v2198 = vld [vmem:[%s2197] sm:$0xff]
      %v2199 = vld [vmem:[%s2197 + $0x8] sm:$0xff]
      %v2200 = vld [vmem:[%s2197 + $0x10] sm:$0xff]
      %v2201 = vld [vmem:[%s2197 + $0x18] sm:$0xff]
      %v2202 = vld [vmem:[%s2197 + $0x20] sm:$0xff]
      %v2203 = vld [vmem:[%s2197 + $0x28] sm:$0xff]
      %v2204 = vld [vmem:[%s2197 + $0x30] sm:$0xff]
      %v2205 = vld [vmem:[%s2197 + $0x38] sm:$0xff]
      %v2206 = vld [vmem:[%s2197 + $0x40] sm:$0xff]
      %v2207 = vld [vmem:[%s2197 + $0x48] sm:$0xff]
      %v2208 = vld [vmem:[%s2197 + $0x50] sm:$0xff]
      %v2209 = vld [vmem:[%s2197 + $0x58] sm:$0xff]
      %v2222 = vunpack.c.l.b16 %v2198
      %v2223 = vunpack.c.h.b16 %v2198
      %v2224 = vunpack.c.l.b16 %v2199
      %v2225 = vunpack.c.h.b16 %v2199
      %v2226 = vunpack.c.l.b16 %v2200
      %v2227 = vunpack.c.h.b16 %v2200
      %v2228 = vunpack.c.l.b16 %v2201
      %v2229 = vunpack.c.h.b16 %v2201
      %v2230 = vunpack.c.l.b16 %v2202
      %v2231 = vunpack.c.h.b16 %v2202
      %v2232 = vunpack.c.l.b16 %v2203
      %v2233 = vunpack.c.h.b16 %v2203
      %v2234 = vunpack.c.l.b16 %v2204
      %v2235 = vunpack.c.h.b16 %v2204
      %v2236 = vunpack.c.l.b16 %v2205
      %v2237 = vunpack.c.h.b16 %v2205
      %v2238 = vunpack.c.l.b16 %v2206
      %v2239 = vunpack.c.h.b16 %v2206
      %v2240 = vunpack.c.l.b16 %v2207
      %v2241 = vunpack.c.h.b16 %v2207
      %v2242 = vunpack.c.l.b16 %v2208
      %v2243 = vunpack.c.h.b16 %v2208
      %v2244 = vunpack.c.l.b16 %v2209
      %v2245 = vunpack.c.h.b16 %v2209
      %v2246 = vpack.c.b16 %v2224, %v2222
      %v2247 = vpack.c.b16 %v2225, %v2223
      %v2248 = vpack.c.b16 %v2228, %v2226
      %v2249 = vpack.c.b16 %v2229, %v2227
      %v2250 = vpack.c.b16 %v2232, %v2230
      %v2251 = vpack.c.b16 %v2233, %v2231
      %v2252 = vpack.c.b16 %v2236, %v2234
      %v2253 = vpack.c.b16 %v2237, %v2235
      %v2254 = vpack.c.b16 %v2240, %v2238
      %v2255 = vpack.c.b16 %v2241, %v2239
      %v2256 = vpack.c.b16 %v2244, %v2242
      %v2257 = vpack.c.b16 %v2245, %v2243
      %v2271 = vsel %vm352, %v2196, 0
      %2273 = vmatprep.subr.bf16.mxu0 %v2247
      %2274 = vmatpush1.bf16.msra.mxu0 %v2246
      %2275 = vmatprep.subr.bf16.mxu0 %v2249
      %2276 = vmatpush1.bf16.msra.mxu0 %v2248
      %2277 = vmatprep.subr.bf16.mxu0 %v2251
      %2278 = vmatpush1.bf16.msra.mxu0 %v2250
      %2279 = vmatprep.subr.bf16.mxu0 %v2253
      %2280 = vmatpush1.bf16.msra.mxu0 %v2252
      %2281 = vmatprep.subr.bf16.mxu0 %v2255
      %2282 = vmatpush1.bf16.msra.mxu0 %v2254
      %2283 = vmatprep.subr.bf16.mxu0 %v2257
      %2284 = vmatpush1.bf16.msra.mxu0 %v2256
      %2285 = vmatprep.subr.bf16.mxu0 0
      %2286 = vmatpush1.bf16.msra.mxu0 0
      %2287 = vmatprep.subr.bf16.mxu0 0
      %2288 = vmatpush1.bf16.msra.mxu0 0
      %2289 = vmatprep.subr.bf16.mxu0 0
      %2290 = vmatpush1.bf16.msra.mxu0 0
      %2291 = vmatprep.subr.bf16.mxu0 0
      %2292 = vmatpush1.bf16.msra.mxu0 0
      %2293 = vmatprep.subr.bf16.mxu0 0
      %2294 = vmatpush1.bf16.msra.mxu0 0
      %2295 = vmatprep.subr.bf16.mxu0 0
      %2296 = vmatpush1.bf16.msra.mxu0 0
      %2297 = vmatprep.subr.bf16.mxu0 0
      %2298 = vmatpush1.bf16.msra.mxu0 0
      %2299 = vmatprep.subr.bf16.mxu0 0
      %2300 = vmatpush1.bf16.msra.mxu0 0
      %2301 = vmatprep.subr.bf16.mxu0 0
      %2302 = vmatpush1.bf16.msra.mxu0 0
      %2303 = vmatprep.subr.bf16.mxu0 0
      %2304 = vmatpush1.bf16.msra.mxu0 0
      %2305 = vmatprep.mubr.bf16.mxu0 0
      %2306 = vmatmul.mubr.bf16.gmra.mrb[0].mxu0 %v2271
      %v2307 = vpop.f32.mrb[0].mxu0
      %v2308 = vadd.f32 0.0, %v2307
      %v2309 = vpop.f32.mrb[0].mxu0
      %v2310 = vadd.f32 0.0, %v2309
      %v2311 = vpop.f32.mrb[0].mxu0
      %v2312 = vpop.f32.mrb[0].mxu0
      %2313 = vdwg.mxu0
      %v2314 = vadd.f32 %v2193, %v2308
      %v2315 = vadd.f32 %v2194, %v2310
      %s2316 = scalar_lea.vmem %s237, 17
      %v2317 = vld [vmem:[%s2316] sm:$0x1]
      %s2318 = scalar_lea.vmem %s242, 1632
      %v2319 = vld [vmem:[%s2318] sm:$0xff]
      %v2320 = vld [vmem:[%s2318 + $0x8] sm:$0xff]
      %v2321 = vld [vmem:[%s2318 + $0x10] sm:$0xff]
      %v2322 = vld [vmem:[%s2318 + $0x18] sm:$0xff]
      %v2323 = vld [vmem:[%s2318 + $0x20] sm:$0xff]
      %v2324 = vld [vmem:[%s2318 + $0x28] sm:$0xff]
      %v2325 = vld [vmem:[%s2318 + $0x30] sm:$0xff]
      %v2326 = vld [vmem:[%s2318 + $0x38] sm:$0xff]
      %v2327 = vld [vmem:[%s2318 + $0x40] sm:$0xff]
      %v2328 = vld [vmem:[%s2318 + $0x48] sm:$0xff]
      %v2329 = vld [vmem:[%s2318 + $0x50] sm:$0xff]
      %v2330 = vld [vmem:[%s2318 + $0x58] sm:$0xff]
      %v2343 = vunpack.c.l.b16 %v2319
      %v2344 = vunpack.c.h.b16 %v2319
      %v2345 = vunpack.c.l.b16 %v2320
      %v2346 = vunpack.c.h.b16 %v2320
      %v2347 = vunpack.c.l.b16 %v2321
      %v2348 = vunpack.c.h.b16 %v2321
      %v2349 = vunpack.c.l.b16 %v2322
      %v2350 = vunpack.c.h.b16 %v2322
      %v2351 = vunpack.c.l.b16 %v2323
      %v2352 = vunpack.c.h.b16 %v2323
      %v2353 = vunpack.c.l.b16 %v2324
      %v2354 = vunpack.c.h.b16 %v2324
      %v2355 = vunpack.c.l.b16 %v2325
      %v2356 = vunpack.c.h.b16 %v2325
      %v2357 = vunpack.c.l.b16 %v2326
      %v2358 = vunpack.c.h.b16 %v2326
      %v2359 = vunpack.c.l.b16 %v2327
      %v2360 = vunpack.c.h.b16 %v2327
      %v2361 = vunpack.c.l.b16 %v2328
      %v2362 = vunpack.c.h.b16 %v2328
      %v2363 = vunpack.c.l.b16 %v2329
      %v2364 = vunpack.c.h.b16 %v2329
      %v2365 = vunpack.c.l.b16 %v2330
      %v2366 = vunpack.c.h.b16 %v2330
      %v2367 = vpack.c.b16 %v2345, %v2343
      %v2368 = vpack.c.b16 %v2346, %v2344
      %v2369 = vpack.c.b16 %v2349, %v2347
      %v2370 = vpack.c.b16 %v2350, %v2348
      %v2371 = vpack.c.b16 %v2353, %v2351
      %v2372 = vpack.c.b16 %v2354, %v2352
      %v2373 = vpack.c.b16 %v2357, %v2355
      %v2374 = vpack.c.b16 %v2358, %v2356
      %v2375 = vpack.c.b16 %v2361, %v2359
      %v2376 = vpack.c.b16 %v2362, %v2360
      %v2377 = vpack.c.b16 %v2365, %v2363
      %v2378 = vpack.c.b16 %v2366, %v2364
      %v2392 = vsel %vm352, %v2317, 0
      %2394 = vmatprep.subr.bf16.mxu0 %v2368
      %2395 = vmatpush1.bf16.msra.mxu0 %v2367
      %2396 = vmatprep.subr.bf16.mxu0 %v2370
      %2397 = vmatpush1.bf16.msra.mxu0 %v2369
      %2398 = vmatprep.subr.bf16.mxu0 %v2372
      %2399 = vmatpush1.bf16.msra.mxu0 %v2371
      %2400 = vmatprep.subr.bf16.mxu0 %v2374
      %2401 = vmatpush1.bf16.msra.mxu0 %v2373
      %2402 = vmatprep.subr.bf16.mxu0 %v2376
      %2403 = vmatpush1.bf16.msra.mxu0 %v2375
      %2404 = vmatprep.subr.bf16.mxu0 %v2378
      %2405 = vmatpush1.bf16.msra.mxu0 %v2377
      %2406 = vmatprep.subr.bf16.mxu0 0
      %2407 = vmatpush1.bf16.msra.mxu0 0
      %2408 = vmatprep.subr.bf16.mxu0 0
      %2409 = vmatpush1.bf16.msra.mxu0 0
      %2410 = vmatprep.subr.bf16.mxu0 0
      %2411 = vmatpush1.bf16.msra.mxu0 0
      %2412 = vmatprep.subr.bf16.mxu0 0
      %2413 = vmatpush1.bf16.msra.mxu0 0
      %2414 = vmatprep.subr.bf16.mxu0 0
      %2415 = vmatpush1.bf16.msra.mxu0 0
      %2416 = vmatprep.subr.bf16.mxu0 0
      %2417 = vmatpush1.bf16.msra.mxu0 0
      %2418 = vmatprep.subr.bf16.mxu0 0
      %2419 = vmatpush1.bf16.msra.mxu0 0
      %2420 = vmatprep.subr.bf16.mxu0 0
      %2421 = vmatpush1.bf16.msra.mxu0 0
      %2422 = vmatprep.subr.bf16.mxu0 0
      %2423 = vmatpush1.bf16.msra.mxu0 0
      %2424 = vmatprep.subr.bf16.mxu0 0
      %2425 = vmatpush1.bf16.msra.mxu0 0
      %2426 = vmatprep.mubr.bf16.mxu0 0
      %2427 = vmatmul.mubr.bf16.gmra.mrb[0].mxu0 %v2392
      %v2428 = vpop.f32.mrb[0].mxu0
      %v2429 = vadd.f32 0.0, %v2428
      %v2430 = vpop.f32.mrb[0].mxu0
      %v2431 = vadd.f32 0.0, %v2430
      %v2432 = vpop.f32.mrb[0].mxu0
      %v2433 = vpop.f32.mrb[0].mxu0
      %2434 = vdwg.mxu0
      %v2435 = vadd.f32 %v2314, %v2429
      %v2436 = vadd.f32 %v2315, %v2431
      %s2437 = scalar_lea.vmem %s237, 18
      %v2438 = vld [vmem:[%s2437] sm:$0x1]
      %s2439 = scalar_lea.vmem %s242, 1728
      %v2440 = vld [vmem:[%s2439] sm:$0xff]
      %v2441 = vld [vmem:[%s2439 + $0x8] sm:$0xff]
      %v2442 = vld [vmem:[%s2439 + $0x10] sm:$0xff]
      %v2443 = vld [vmem:[%s2439 + $0x18] sm:$0xff]
      %v2444 = vld [vmem:[%s2439 + $0x20] sm:$0xff]
      %v2445 = vld [vmem:[%s2439 + $0x28] sm:$0xff]
      %v2446 = vld [vmem:[%s2439 + $0x30] sm:$0xff]
      %v2447 = vld [vmem:[%s2439 + $0x38] sm:$0xff]
      %v2448 = vld [vmem:[%s2439 + $0x40] sm:$0xff]
      %v2449 = vld [vmem:[%s2439 + $0x48] sm:$0xff]
      %v2450 = vld [vmem:[%s2439 + $0x50] sm:$0xff]
      %v2451 = vld [vmem:[%s2439 + $0x58] sm:$0xff]
      %v2464 = vunpack.c.l.b16 %v2440
      %v2465 = vunpack.c.h.b16 %v2440
      %v2466 = vunpack.c.l.b16 %v2441
      %v2467 = vunpack.c.h.b16 %v2441
      %v2468 = vunpack.c.l.b16 %v2442
      %v2469 = vunpack.c.h.b16 %v2442
      %v2470 = vunpack.c.l.b16 %v2443
      %v2471 = vunpack.c.h.b16 %v2443
      %v2472 = vunpack.c.l.b16 %v2444
      %v2473 = vunpack.c.h.b16 %v2444
      %v2474 = vunpack.c.l.b16 %v2445
      %v2475 = vunpack.c.h.b16 %v2445
      %v2476 = vunpack.c.l.b16 %v2446
      %v2477 = vunpack.c.h.b16 %v2446
      %v2478 = vunpack.c.l.b16 %v2447
      %v2479 = vunpack.c.h.b16 %v2447
      %v2480 = vunpack.c.l.b16 %v2448
      %v2481 = vunpack.c.h.b16 %v2448
      %v2482 = vunpack.c.l.b16 %v2449
      %v2483 = vunpack.c.h.b16 %v2449
      %v2484 = vunpack.c.l.b16 %v2450
      %v2485 = vunpack.c.h.b16 %v2450
      %v2486 = vunpack.c.l.b16 %v2451
      %v2487 = vunpack.c.h.b16 %v2451
      %v2488 = vpack.c.b16 %v2466, %v2464
      %v2489 = vpack.c.b16 %v2467, %v2465
      %v2490 = vpack.c.b16 %v2470, %v2468
      %v2491 = vpack.c.b16 %v2471, %v2469
      %v2492 = vpack.c.b16 %v2474, %v2472
      %v2493 = vpack.c.b16 %v2475, %v2473
      %v2494 = vpack.c.b16 %v2478, %v2476
      %v2495 = vpack.c.b16 %v2479, %v2477
      %v2496 = vpack.c.b16 %v2482, %v2480
      %v2497 = vpack.c.b16 %v2483, %v2481
      %v2498 = vpack.c.b16 %v2486, %v2484
      %v2499 = vpack.c.b16 %v2487, %v2485
      %v2513 = vsel %vm352, %v2438, 0
      %2515 = vmatprep.subr.bf16.mxu0 %v2489
      %2516 = vmatpush1.bf16.msra.mxu0 %v2488
      %2517 = vmatprep.subr.bf16.mxu0 %v2491
      %2518 = vmatpush1.bf16.msra.mxu0 %v2490
      %2519 = vmatprep.subr.bf16.mxu0 %v2493
      %2520 = vmatpush1.bf16.msra.mxu0 %v2492
      %2521 = vmatprep.subr.bf16.mxu0 %v2495
      %2522 = vmatpush1.bf16.msra.mxu0 %v2494
      %2523 = vmatprep.subr.bf16.mxu0 %v2497
      %2524 = vmatpush1.bf16.msra.mxu0 %v2496
      %2525 = vmatprep.subr.bf16.mxu0 %v2499
      %2526 = vmatpush1.bf16.msra.mxu0 %v2498
      %2527 = vmatprep.subr.bf16.mxu0 0
      %2528 = vmatpush1.bf16.msra.mxu0 0
      %2529 = vmatprep.subr.bf16.mxu0 0
      %2530 = vmatpush1.bf16.msra.mxu0 0
      %2531 = vmatprep.subr.bf16.mxu0 0
      %2532 = vmatpush1.bf16.msra.mxu0 0
      %2533 = vmatprep.subr.bf16.mxu0 0
      %2534 = vmatpush1.bf16.msra.mxu0 0
      %2535 = vmatprep.subr.bf16.mxu0 0
      %2536 = vmatpush1.bf16.msra.mxu0 0
      %2537 = vmatprep.subr.bf16.mxu0 0
      %2538 = vmatpush1.bf16.msra.mxu0 0
      %2539 = vmatprep.subr.bf16.mxu0 0
      %2540 = vmatpush1.bf16.msra.mxu0 0
      %2541 = vmatprep.subr.bf16.mxu0 0
      %2542 = vmatpush1.bf16.msra.mxu0 0
      %2543 = vmatprep.subr.bf16.mxu0 0
      %2544 = vmatpush1.bf16.msra.mxu0 0
      %2545 = vmatprep.subr.bf16.mxu0 0
      %2546 = vmatpush1.bf16.msra.mxu0 0
      %2547 = vmatprep.mubr.bf16.mxu0 0
      %2548 = vmatmul.mubr.bf16.gmra.mrb[0].mxu0 %v2513
      %v2549 = vpop.f32.mrb[0].mxu0
      %v2550 = vadd.f32 0.0, %v2549
      %v2551 = vpop.f32.mrb[0].mxu0
      %v2552 = vadd.f32 0.0, %v2551
      %v2553 = vpop.f32.mrb[0].mxu0
      %v2554 = vpop.f32.mrb[0].mxu0
      %2555 = vdwg.mxu0
      %v2556 = vadd.f32 %v2435, %v2550
      %v2557 = vadd.f32 %v2436, %v2552
      %s2558 = scalar_lea.vmem %s237, 19
      %v2559 = vld [vmem:[%s2558] sm:$0x1]
      %s2560 = scalar_lea.vmem %s242, 1824
      %v2561 = vld [vmem:[%s2560] sm:$0xff]
      %v2562 = vld [vmem:[%s2560 + $0x8] sm:$0xff]
      %v2563 = vld [vmem:[%s2560 + $0x10] sm:$0xff]
      %v2564 = vld [vmem:[%s2560 + $0x18] sm:$0xff]
      %v2565 = vld [vmem:[%s2560 + $0x20] sm:$0xff]
      %v2566 = vld [vmem:[%s2560 + $0x28] sm:$0xff]
      %v2567 = vld [vmem:[%s2560 + $0x30] sm:$0xff]
      %v2568 = vld [vmem:[%s2560 + $0x38] sm:$0xff]
      %v2569 = vld [vmem:[%s2560 + $0x40] sm:$0xff]
      %v2570 = vld [vmem:[%s2560 + $0x48] sm:$0xff]
      %v2571 = vld [vmem:[%s2560 + $0x50] sm:$0xff]
      %v2572 = vld [vmem:[%s2560 + $0x58] sm:$0xff]
      %v2585 = vunpack.c.l.b16 %v2561
      %v2586 = vunpack.c.h.b16 %v2561
      %v2587 = vunpack.c.l.b16 %v2562
      %v2588 = vunpack.c.h.b16 %v2562
      %v2589 = vunpack.c.l.b16 %v2563
      %v2590 = vunpack.c.h.b16 %v2563
      %v2591 = vunpack.c.l.b16 %v2564
      %v2592 = vunpack.c.h.b16 %v2564
      %v2593 = vunpack.c.l.b16 %v2565
      %v2594 = vunpack.c.h.b16 %v2565
      %v2595 = vunpack.c.l.b16 %v2566
      %v2596 = vunpack.c.h.b16 %v2566
      %v2597 = vunpack.c.l.b16 %v2567
      %v2598 = vunpack.c.h.b16 %v2567
      %v2599 = vunpack.c.l.b16 %v2568
      %v2600 = vunpack.c.h.b16 %v2568
      %v2601 = vunpack.c.l.b16 %v2569
      %v2602 = vunpack.c.h.b16 %v2569
      %v2603 = vunpack.c.l.b16 %v2570
      %v2604 = vunpack.c.h.b16 %v2570
      %v2605 = vunpack.c.l.b16 %v2571
      %v2606 = vunpack.c.h.b16 %v2571
      %v2607 = vunpack.c.l.b16 %v2572
      %v2608 = vunpack.c.h.b16 %v2572
      %v2609 = vpack.c.b16 %v2587, %v2585
      %v2610 = vpack.c.b16 %v2588, %v2586
      %v2611 = vpack.c.b16 %v2591, %v2589
      %v2612 = vpack.c.b16 %v2592, %v2590
      %v2613 = vpack.c.b16 %v2595, %v2593
      %v2614 = vpack.c.b16 %v2596, %v2594
      %v2615 = vpack.c.b16 %v2599, %v2597
      %v2616 = vpack.c.b16 %v2600, %v2598
      %v2617 = vpack.c.b16 %v2603, %v2601
      %v2618 = vpack.c.b16 %v2604, %v2602
      %v2619 = vpack.c.b16 %v2607, %v2605
      %v2620 = vpack.c.b16 %v2608, %v2606
      %v2634 = vsel %vm352, %v2559, 0
      %2636 = vmatprep.subr.bf16.mxu0 %v2610
      %2637 = vmatpush1.bf16.msra.mxu0 %v2609
      %2638 = vmatprep.subr.bf16.mxu0 %v2612
      %2639 = vmatpush1.bf16.msra.mxu0 %v2611
      %2640 = vmatprep.subr.bf16.mxu0 %v2614
      %2641 = vmatpush1.bf16.msra.mxu0 %v2613
      %2642 = vmatprep.subr.bf16.mxu0 %v2616
      %2643 = vmatpush1.bf16.msra.mxu0 %v2615
      %2644 = vmatprep.subr.bf16.mxu0 %v2618
      %2645 = vmatpush1.bf16.msra.mxu0 %v2617
      %2646 = vmatprep.subr.bf16.mxu0 %v2620
      %2647 = vmatpush1.bf16.msra.mxu0 %v2619
      %2648 = vmatprep.subr.bf16.mxu0 0
      %2649 = vmatpush1.bf16.msra.mxu0 0
      %2650 = vmatprep.subr.bf16.mxu0 0
      %2651 = vmatpush1.bf16.msra.mxu0 0
      %2652 = vmatprep.subr.bf16.mxu0 0
      %2653 = vmatpush1.bf16.msra.mxu0 0
      %2654 = vmatprep.subr.bf16.mxu0 0
      %2655 = vmatpush1.bf16.msra.mxu0 0
      %2656 = vmatprep.subr.bf16.mxu0 0
      %2657 = vmatpush1.bf16.msra.mxu0 0
      %2658 = vmatprep.subr.bf16.mxu0 0
      %2659 = vmatpush1.bf16.msra.mxu0 0
      %2660 = vmatprep.subr.bf16.mxu0 0
      %2661 = vmatpush1.bf16.msra.mxu0 0
      %2662 = vmatprep.subr.bf16.mxu0 0
      %2663 = vmatpush1.bf16.msra.mxu0 0
      %2664 = vmatprep.subr.bf16.mxu0 0
      %2665 = vmatpush1.bf16.msra.mxu0 0
      %2666 = vmatprep.subr.bf16.mxu0 0
      %2667 = vmatpush1.bf16.msra.mxu0 0
      %2668 = vmatprep.mubr.bf16.mxu0 0
      %2669 = vmatmul.mubr.bf16.gmra.mrb[0].mxu0 %v2634
      %v2670 = vpop.f32.mrb[0].mxu0
      %v2671 = vadd.f32 0.0, %v2670
      %v2672 = vpop.f32.mrb[0].mxu0
      %v2673 = vadd.f32 0.0, %v2672
      %v2674 = vpop.f32.mrb[0].mxu0
      %v2675 = vpop.f32.mrb[0].mxu0
      %2676 = vdwg.mxu0
      %v2677 = vadd.f32 %v2556, %v2671
      %v2678 = vadd.f32 %v2557, %v2673
      %s2679 = scalar_lea.vmem %s237, 20
      %v2680 = vld [vmem:[%s2679] sm:$0x1]
      %s2681 = scalar_lea.vmem %s242, 1920
      %v2682 = vld [vmem:[%s2681] sm:$0xff]
      %v2683 = vld [vmem:[%s2681 + $0x8] sm:$0xff]
      %v2684 = vld [vmem:[%s2681 + $0x10] sm:$0xff]
      %v2685 = vld [vmem:[%s2681 + $0x18] sm:$0xff]
      %v2686 = vld [vmem:[%s2681 + $0x20] sm:$0xff]
      %v2687 = vld [vmem:[%s2681 + $0x28] sm:$0xff]
      %v2688 = vld [vmem:[%s2681 + $0x30] sm:$0xff]
      %v2689 = vld [vmem:[%s2681 + $0x38] sm:$0xff]
      %v2690 = vld [vmem:[%s2681 + $0x40] sm:$0xff]
      %v2691 = vld [vmem:[%s2681 + $0x48] sm:$0xff]
      %v2692 = vld [vmem:[%s2681 + $0x50] sm:$0xff]
      %v2693 = vld [vmem:[%s2681 + $0x58] sm:$0xff]
      %v2706 = vunpack.c.l.b16 %v2682
      %v2707 = vunpack.c.h.b16 %v2682
      %v2708 = vunpack.c.l.b16 %v2683
      %v2709 = vunpack.c.h.b16 %v2683
      %v2710 = vunpack.c.l.b16 %v2684
      %v2711 = vunpack.c.h.b16 %v2684
      %v2712 = vunpack.c.l.b16 %v2685
      %v2713 = vunpack.c.h.b16 %v2685
      %v2714 = vunpack.c.l.b16 %v2686
      %v2715 = vunpack.c.h.b16 %v2686
      %v2716 = vunpack.c.l.b16 %v2687
      %v2717 = vunpack.c.h.b16 %v2687
      %v2718 = vunpack.c.l.b16 %v2688
      %v2719 = vunpack.c.h.b16 %v2688
      %v2720 = vunpack.c.l.b16 %v2689
      %v2721 = vunpack.c.h.b16 %v2689
      %v2722 = vunpack.c.l.b16 %v2690
      %v2723 = vunpack.c.h.b16 %v2690
      %v2724 = vunpack.c.l.b16 %v2691
      %v2725 = vunpack.c.h.b16 %v2691
      %v2726 = vunpack.c.l.b16 %v2692
      %v2727 = vunpack.c.h.b16 %v2692
      %v2728 = vunpack.c.l.b16 %v2693
      %v2729 = vunpack.c.h.b16 %v2693
      %v2730 = vpack.c.b16 %v2708, %v2706
      %v2731 = vpack.c.b16 %v2709, %v2707
      %v2732 = vpack.c.b16 %v2712, %v2710
      %v2733 = vpack.c.b16 %v2713, %v2711
      %v2734 = vpack.c.b16 %v2716, %v2714
      %v2735 = vpack.c.b16 %v2717, %v2715
      %v2736 = vpack.c.b16 %v2720, %v2718
      %v2737 = vpack.c.b16 %v2721, %v2719
      %v2738 = vpack.c.b16 %v2724, %v2722
      %v2739 = vpack.c.b16 %v2725, %v2723
      %v2740 = vpack.c.b16 %v2728, %v2726
      %v2741 = vpack.c.b16 %v2729, %v2727
      %v2755 = vsel %vm352, %v2680, 0
      %2757 = vmatprep.subr.bf16.mxu0 %v2731
      %2758 = vmatpush1.bf16.msra.mxu0 %v2730
      %2759 = vmatprep.subr.bf16.mxu0 %v2733
      %2760 = vmatpush1.bf16.msra.mxu0 %v2732
      %2761 = vmatprep.subr.bf16.mxu0 %v2735
      %2762 = vmatpush1.bf16.msra.mxu0 %v2734
      %2763 = vmatprep.subr.bf16.mxu0 %v2737
      %2764 = vmatpush1.bf16.msra.mxu0 %v2736
      %2765 = vmatprep.subr.bf16.mxu0 %v2739
      %2766 = vmatpush1.bf16.msra.mxu0 %v2738
      %2767 = vmatprep.subr.bf16.mxu0 %v2741
      %2768 = vmatpush1.bf16.msra.mxu0 %v2740
      %2769 = vmatprep.subr.bf16.mxu0 0
      %2770 = vmatpush1.bf16.msra.mxu0 0
      %2771 = vmatprep.subr.bf16.mxu0 0
      %2772 = vmatpush1.bf16.msra.mxu0 0
      %2773 = vmatprep.subr.bf16.mxu0 0
      %2774 = vmatpush1.bf16.msra.mxu0 0
      %2775 = vmatprep.subr.bf16.mxu0 0
      %2776 = vmatpush1.bf16.msra.mxu0 0
      %2777 = vmatprep.subr.bf16.mxu0 0
      %2778 = vmatpush1.bf16.msra.mxu0 0
      %2779 = vmatprep.subr.bf16.mxu0 0
      %2780 = vmatpush1.bf16.msra.mxu0 0
      %2781 = vmatprep.subr.bf16.mxu0 0
      %2782 = vmatpush1.bf16.msra.mxu0 0
      %2783 = vmatprep.subr.bf16.mxu0 0
      %2784 = vmatpush1.bf16.msra.mxu0 0
      %2785 = vmatprep.subr.bf16.mxu0 0
      %2786 = vmatpush1.bf16.msra.mxu0 0
      %2787 = vmatprep.subr.bf16.mxu0 0
      %2788 = vmatpush1.bf16.msra.mxu0 0
      %2789 = vmatprep.mubr.bf16.mxu0 0
      %2790 = vmatmul.mubr.bf16.gmra.mrb[0].mxu0 %v2755
      %v2791 = vpop.f32.mrb[0].mxu0
      %v2792 = vadd.f32 0.0, %v2791
      %v2793 = vpop.f32.mrb[0].mxu0
      %v2794 = vadd.f32 0.0, %v2793
      %v2795 = vpop.f32.mrb[0].mxu0
      %v2796 = vpop.f32.mrb[0].mxu0
      %2797 = vdwg.mxu0
      %v2798 = vadd.f32 %v2677, %v2792
      %v2799 = vadd.f32 %v2678, %v2794
      %s2800 = scalar_lea.vmem %s237, 21
      %v2801 = vld [vmem:[%s2800] sm:$0x1]
      %s2802 = scalar_lea.vmem %s242, 2016
      %v2803 = vld [vmem:[%s2802] sm:$0xff]
      %v2804 = vld [vmem:[%s2802 + $0x8] sm:$0xff]
      %v2805 = vld [vmem:[%s2802 + $0x10] sm:$0xff]
      %v2806 = vld [vmem:[%s2802 + $0x18] sm:$0xff]
      %v2807 = vld [vmem:[%s2802 + $0x20] sm:$0xff]
      %v2808 = vld [vmem:[%s2802 + $0x28] sm:$0xff]
      %v2809 = vld [vmem:[%s2802 + $0x30] sm:$0xff]
      %v2810 = vld [vmem:[%s2802 + $0x38] sm:$0xff]
      %v2811 = vld [vmem:[%s2802 + $0x40] sm:$0xff]
      %v2812 = vld [vmem:[%s2802 + $0x48] sm:$0xff]
      %v2813 = vld [vmem:[%s2802 + $0x50] sm:$0xff]
      %v2814 = vld [vmem:[%s2802 + $0x58] sm:$0xff]
      %v2827 = vunpack.c.l.b16 %v2803
      %v2828 = vunpack.c.h.b16 %v2803
      %v2829 = vunpack.c.l.b16 %v2804
      %v2830 = vunpack.c.h.b16 %v2804
      %v2831 = vunpack.c.l.b16 %v2805
      %v2832 = vunpack.c.h.b16 %v2805
      %v2833 = vunpack.c.l.b16 %v2806
      %v2834 = vunpack.c.h.b16 %v2806
      %v2835 = vunpack.c.l.b16 %v2807
      %v2836 = vunpack.c.h.b16 %v2807
      %v2837 = vunpack.c.l.b16 %v2808
      %v2838 = vunpack.c.h.b16 %v2808
      %v2839 = vunpack.c.l.b16 %v2809
      %v2840 = vunpack.c.h.b16 %v2809
      %v2841 = vunpack.c.l.b16 %v2810
      %v2842 = vunpack.c.h.b16 %v2810
      %v2843 = vunpack.c.l.b16 %v2811
      %v2844 = vunpack.c.h.b16 %v2811
      %v2845 = vunpack.c.l.b16 %v2812
      %v2846 = vunpack.c.h.b16 %v2812
      %v2847 = vunpack.c.l.b16 %v2813
      %v2848 = vunpack.c.h.b16 %v2813
      %v2849 = vunpack.c.l.b16 %v2814
      %v2850 = vunpack.c.h.b16 %v2814
      %v2851 = vpack.c.b16 %v2829, %v2827
      %v2852 = vpack.c.b16 %v2830, %v2828
      %v2853 = vpack.c.b16 %v2833, %v2831
      %v2854 = vpack.c.b16 %v2834, %v2832
      %v2855 = vpack.c.b16 %v2837, %v2835
      %v2856 = vpack.c.b16 %v2838, %v2836
      %v2857 = vpack.c.b16 %v2841, %v2839
      %v2858 = vpack.c.b16 %v2842, %v2840
      %v2859 = vpack.c.b16 %v2845, %v2843
      %v2860 = vpack.c.b16 %v2846, %v2844
      %v2861 = vpack.c.b16 %v2849, %v2847
      %v2862 = vpack.c.b16 %v2850, %v2848
      %v2876 = vsel %vm352, %v2801, 0
      %2878 = vmatprep.subr.bf16.mxu0 %v2852
      %2879 = vmatpush1.bf16.msra.mxu0 %v2851
      %2880 = vmatprep.subr.bf16.mxu0 %v2854
      %2881 = vmatpush1.bf16.msra.mxu0 %v2853
      %2882 = vmatprep.subr.bf16.mxu0 %v2856
      %2883 = vmatpush1.bf16.msra.mxu0 %v2855
      %2884 = vmatprep.subr.bf16.mxu0 %v2858
      %2885 = vmatpush1.bf16.msra.mxu0 %v2857
      %2886 = vmatprep.subr.bf16.mxu0 %v2860
      %2887 = vmatpush1.bf16.msra.mxu0 %v2859
      %2888 = vmatprep.subr.bf16.mxu0 %v2862
      %2889 = vmatpush1.bf16.msra.mxu0 %v2861
      %2890 = vmatprep.subr.bf16.mxu0 0
      %2891 = vmatpush1.bf16.msra.mxu0 0
      %2892 = vmatprep.subr.bf16.mxu0 0
      %2893 = vmatpush1.bf16.msra.mxu0 0
      %2894 = vmatprep.subr.bf16.mxu0 0
      %2895 = vmatpush1.bf16.msra.mxu0 0
      %2896 = vmatprep.subr.bf16.mxu0 0
      %2897 = vmatpush1.bf16.msra.mxu0 0
      %2898 = vmatprep.subr.bf16.mxu0 0
      %2899 = vmatpush1.bf16.msra.mxu0 0
      %2900 = vmatprep.subr.bf16.mxu0 0
      %2901 = vmatpush1.bf16.msra.mxu0 0
      %2902 = vmatprep.subr.bf16.mxu0 0
      %2903 = vmatpush1.bf16.msra.mxu0 0
      %2904 = vmatprep.subr.bf16.mxu0 0
      %2905 = vmatpush1.bf16.msra.mxu0 0
      %2906 = vmatprep.subr.bf16.mxu0 0
      %2907 = vmatpush1.bf16.msra.mxu0 0
      %2908 = vmatprep.subr.bf16.mxu0 0
      %2909 = vmatpush1.bf16.msra.mxu0 0
      %2910 = vmatprep.mubr.bf16.mxu0 0
      %2911 = vmatmul.mubr.bf16.gmra.mrb[0].mxu0 %v2876
      %v2912 = vpop.f32.mrb[0].mxu0
      %v2913 = vadd.f32 0.0, %v2912
      %v2914 = vpop.f32.mrb[0].mxu0
      %v2915 = vadd.f32 0.0, %v2914
      %v2916 = vpop.f32.mrb[0].mxu0
      %v2917 = vpop.f32.mrb[0].mxu0
      %2918 = vdwg.mxu0
      %v2919 = vadd.f32 %v2798, %v2913
      %v2920 = vadd.f32 %v2799, %v2915
      %s2921 = scalar_lea.vmem %s237, 22
      %v2922 = vld [vmem:[%s2921] sm:$0x1]
      %s2923 = scalar_lea.vmem %s242, 2112
      %v2924 = vld [vmem:[%s2923] sm:$0xff]
      %v2925 = vld [vmem:[%s2923 + $0x8] sm:$0xff]
      %v2926 = vld [vmem:[%s2923 + $0x10] sm:$0xff]
      %v2927 = vld [vmem:[%s2923 + $0x18] sm:$0xff]
      %v2928 = vld [vmem:[%s2923 + $0x20] sm:$0xff]
      %v2929 = vld [vmem:[%s2923 + $0x28] sm:$0xff]
      %v2930 = vld [vmem:[%s2923 + $0x30] sm:$0xff]
      %v2931 = vld [vmem:[%s2923 + $0x38] sm:$0xff]
      %v2932 = vld [vmem:[%s2923 + $0x40] sm:$0xff]
      %v2933 = vld [vmem:[%s2923 + $0x48] sm:$0xff]
      %v2934 = vld [vmem:[%s2923 + $0x50] sm:$0xff]
      %v2935 = vld [vmem:[%s2923 + $0x58] sm:$0xff]
      %v2948 = vunpack.c.l.b16 %v2924
      %v2949 = vunpack.c.h.b16 %v2924
      %v2950 = vunpack.c.l.b16 %v2925
      %v2951 = vunpack.c.h.b16 %v2925
      %v2952 = vunpack.c.l.b16 %v2926
      %v2953 = vunpack.c.h.b16 %v2926
      %v2954 = vunpack.c.l.b16 %v2927
      %v2955 = vunpack.c.h.b16 %v2927
      %v2956 = vunpack.c.l.b16 %v2928
      %v2957 = vunpack.c.h.b16 %v2928
      %v2958 = vunpack.c.l.b16 %v2929
      %v2959 = vunpack.c.h.b16 %v2929
      %v2960 = vunpack.c.l.b16 %v2930
      %v2961 = vunpack.c.h.b16 %v2930
      %v2962 = vunpack.c.l.b16 %v2931
      %v2963 = vunpack.c.h.b16 %v2931
      %v2964 = vunpack.c.l.b16 %v2932
      %v2965 = vunpack.c.h.b16 %v2932
      %v2966 = vunpack.c.l.b16 %v2933
      %v2967 = vunpack.c.h.b16 %v2933
      %v2968 = vunpack.c.l.b16 %v2934
      %v2969 = vunpack.c.h.b16 %v2934
      %v2970 = vunpack.c.l.b16 %v2935
      %v2971 = vunpack.c.h.b16 %v2935
      %v2972 = vpack.c.b16 %v2950, %v2948
      %v2973 = vpack.c.b16 %v2951, %v2949
      %v2974 = vpack.c.b16 %v2954, %v2952
      %v2975 = vpack.c.b16 %v2955, %v2953
      %v2976 = vpack.c.b16 %v2958, %v2956
      %v2977 = vpack.c.b16 %v2959, %v2957
      %v2978 = vpack.c.b16 %v2962, %v2960
      %v2979 = vpack.c.b16 %v2963, %v2961
      %v2980 = vpack.c.b16 %v2966, %v2964
      %v2981 = vpack.c.b16 %v2967, %v2965
      %v2982 = vpack.c.b16 %v2970, %v2968
      %v2983 = vpack.c.b16 %v2971, %v2969
      %v2997 = vsel %vm352, %v2922, 0
      %2999 = vmatprep.subr.bf16.mxu0 %v2973
      %3000 = vmatpush1.bf16.msra.mxu0 %v2972
      %3001 = vmatprep.subr.bf16.mxu0 %v2975
      %3002 = vmatpush1.bf16.msra.mxu0 %v2974
      %3003 = vmatprep.subr.bf16.mxu0 %v2977
      %3004 = vmatpush1.bf16.msra.mxu0 %v2976
      %3005 = vmatprep.subr.bf16.mxu0 %v2979
      %3006 = vmatpush1.bf16.msra.mxu0 %v2978
      %3007 = vmatprep.subr.bf16.mxu0 %v2981
      %3008 = vmatpush1.bf16.msra.mxu0 %v2980
      %3009 = vmatprep.subr.bf16.mxu0 %v2983
      %3010 = vmatpush1.bf16.msra.mxu0 %v2982
      %3011 = vmatprep.subr.bf16.mxu0 0
      %3012 = vmatpush1.bf16.msra.mxu0 0
      %3013 = vmatprep.subr.bf16.mxu0 0
      %3014 = vmatpush1.bf16.msra.mxu0 0
      %3015 = vmatprep.subr.bf16.mxu0 0
      %3016 = vmatpush1.bf16.msra.mxu0 0
      %3017 = vmatprep.subr.bf16.mxu0 0
      %3018 = vmatpush1.bf16.msra.mxu0 0
      %3019 = vmatprep.subr.bf16.mxu0 0
      %3020 = vmatpush1.bf16.msra.mxu0 0
      %3021 = vmatprep.subr.bf16.mxu0 0
      %3022 = vmatpush1.bf16.msra.mxu0 0
      %3023 = vmatprep.subr.bf16.mxu0 0
      %3024 = vmatpush1.bf16.msra.mxu0 0
      %3025 = vmatprep.subr.bf16.mxu0 0
      %3026 = vmatpush1.bf16.msra.mxu0 0
      %3027 = vmatprep.subr.bf16.mxu0 0
      %3028 = vmatpush1.bf16.msra.mxu0 0
      %3029 = vmatprep.subr.bf16.mxu0 0
      %3030 = vmatpush1.bf16.msra.mxu0 0
      %3031 = vmatprep.mubr.bf16.mxu0 0
      %3032 = vmatmul.mubr.bf16.gmra.mrb[0].mxu0 %v2997
      %v3033 = vpop.f32.mrb[0].mxu0
      %v3034 = vadd.f32 0.0, %v3033
      %v3035 = vpop.f32.mrb[0].mxu0
      %v3036 = vadd.f32 0.0, %v3035
      %v3037 = vpop.f32.mrb[0].mxu0
      %v3038 = vpop.f32.mrb[0].mxu0
      %3039 = vdwg.mxu0
      %v3040 = vadd.f32 %v2919, %v3034
      %v3041 = vadd.f32 %v2920, %v3036
      %s3042 = scalar_lea.vmem %s237, 23
      %v3043 = vld [vmem:[%s3042] sm:$0x1]
      %s3044 = scalar_lea.vmem %s242, 2208
      %v3045 = vld [vmem:[%s3044] sm:$0xff]
      %v3046 = vld [vmem:[%s3044 + $0x8] sm:$0xff]
      %v3047 = vld [vmem:[%s3044 + $0x10] sm:$0xff]
      %v3048 = vld [vmem:[%s3044 + $0x18] sm:$0xff]
      %v3049 = vld [vmem:[%s3044 + $0x20] sm:$0xff]
      %v3050 = vld [vmem:[%s3044 + $0x28] sm:$0xff]
      %v3051 = vld [vmem:[%s3044 + $0x30] sm:$0xff]
      %v3052 = vld [vmem:[%s3044 + $0x38] sm:$0xff]
      %v3053 = vld [vmem:[%s3044 + $0x40] sm:$0xff]
      %v3054 = vld [vmem:[%s3044 + $0x48] sm:$0xff]
      %v3055 = vld [vmem:[%s3044 + $0x50] sm:$0xff]
      %v3056 = vld [vmem:[%s3044 + $0x58] sm:$0xff]
      %v3069 = vunpack.c.l.b16 %v3045
      %v3070 = vunpack.c.h.b16 %v3045
      %v3071 = vunpack.c.l.b16 %v3046
      %v3072 = vunpack.c.h.b16 %v3046
      %v3073 = vunpack.c.l.b16 %v3047
      %v3074 = vunpack.c.h.b16 %v3047
      %v3075 = vunpack.c.l.b16 %v3048
      %v3076 = vunpack.c.h.b16 %v3048
      %v3077 = vunpack.c.l.b16 %v3049
      %v3078 = vunpack.c.h.b16 %v3049
      %v3079 = vunpack.c.l.b16 %v3050
      %v3080 = vunpack.c.h.b16 %v3050
      %v3081 = vunpack.c.l.b16 %v3051
      %v3082 = vunpack.c.h.b16 %v3051
      %v3083 = vunpack.c.l.b16 %v3052
      %v3084 = vunpack.c.h.b16 %v3052
      %v3085 = vunpack.c.l.b16 %v3053
      %v3086 = vunpack.c.h.b16 %v3053
      %v3087 = vunpack.c.l.b16 %v3054
      %v3088 = vunpack.c.h.b16 %v3054
      %v3089 = vunpack.c.l.b16 %v3055
      %v3090 = vunpack.c.h.b16 %v3055
      %v3091 = vunpack.c.l.b16 %v3056
      %v3092 = vunpack.c.h.b16 %v3056
      %v3093 = vpack.c.b16 %v3071, %v3069
      %v3094 = vpack.c.b16 %v3072, %v3070
      %v3095 = vpack.c.b16 %v3075, %v3073
      %v3096 = vpack.c.b16 %v3076, %v3074
      %v3097 = vpack.c.b16 %v3079, %v3077
      %v3098 = vpack.c.b16 %v3080, %v3078
      %v3099 = vpack.c.b16 %v3083, %v3081
      %v3100 = vpack.c.b16 %v3084, %v3082
      %v3101 = vpack.c.b16 %v3087, %v3085
      %v3102 = vpack.c.b16 %v3088, %v3086
      %v3103 = vpack.c.b16 %v3091, %v3089
      %v3104 = vpack.c.b16 %v3092, %v3090
      %v3118 = vsel %vm352, %v3043, 0
      %3120 = vmatprep.subr.bf16.mxu0 %v3094
      %3121 = vmatpush1.bf16.msra.mxu0 %v3093
      %3122 = vmatprep.subr.bf16.mxu0 %v3096
      %3123 = vmatpush1.bf16.msra.mxu0 %v3095
      %3124 = vmatprep.subr.bf16.mxu0 %v3098
      %3125 = vmatpush1.bf16.msra.mxu0 %v3097
      %3126 = vmatprep.subr.bf16.mxu0 %v3100
      %3127 = vmatpush1.bf16.msra.mxu0 %v3099
      %3128 = vmatprep.subr.bf16.mxu0 %v3102
      %3129 = vmatpush1.bf16.msra.mxu0 %v3101
      %3130 = vmatprep.subr.bf16.mxu0 %v3104
      %3131 = vmatpush1.bf16.msra.mxu0 %v3103
      %3132 = vmatprep.subr.bf16.mxu0 0
      %3133 = vmatpush1.bf16.msra.mxu0 0
      %3134 = vmatprep.subr.bf16.mxu0 0
      %3135 = vmatpush1.bf16.msra.mxu0 0
      %3136 = vmatprep.subr.bf16.mxu0 0
      %3137 = vmatpush1.bf16.msra.mxu0 0
      %3138 = vmatprep.subr.bf16.mxu0 0
      %3139 = vmatpush1.bf16.msra.mxu0 0
      %3140 = vmatprep.subr.bf16.mxu0 0
      %3141 = vmatpush1.bf16.msra.mxu0 0
      %3142 = vmatprep.subr.bf16.mxu0 0
      %3143 = vmatpush1.bf16.msra.mxu0 0
      %3144 = vmatprep.subr.bf16.mxu0 0
      %3145 = vmatpush1.bf16.msra.mxu0 0
      %3146 = vmatprep.subr.bf16.mxu0 0
      %3147 = vmatpush1.bf16.msra.mxu0 0
      %3148 = vmatprep.subr.bf16.mxu0 0
      %3149 = vmatpush1.bf16.msra.mxu0 0
      %3150 = vmatprep.subr.bf16.mxu0 0
      %3151 = vmatpush1.bf16.msra.mxu0 0
      %3152 = vmatprep.mubr.bf16.mxu0 0
      %3153 = vmatmul.mubr.bf16.gmra.mrb[0].mxu0 %v3118
      %v3154 = vpop.f32.mrb[0].mxu0
      %v3155 = vadd.f32 0.0, %v3154
      %v3156 = vpop.f32.mrb[0].mxu0
      %v3157 = vadd.f32 0.0, %v3156
      %v3158 = vpop.f32.mrb[0].mxu0
      %v3159 = vpop.f32.mrb[0].mxu0
      %3160 = vdwg.mxu0
      %v3161 = vadd.f32 %v3040, %v3155
      %v3162 = vadd.f32 %v3041, %v3157
      %s3163 = scalar_lea.vmem %s237, 24
      %v3164 = vld [vmem:[%s3163] sm:$0x1]
      %s3165 = scalar_lea.vmem %s242, 2304
      %v3166 = vld [vmem:[%s3165] sm:$0xff]
      %v3167 = vld [vmem:[%s3165 + $0x8] sm:$0xff]
      %v3168 = vld [vmem:[%s3165 + $0x10] sm:$0xff]
      %v3169 = vld [vmem:[%s3165 + $0x18] sm:$0xff]
      %v3170 = vld [vmem:[%s3165 + $0x20] sm:$0xff]
      %v3171 = vld [vmem:[%s3165 + $0x28] sm:$0xff]
      %v3172 = vld [vmem:[%s3165 + $0x30] sm:$0xff]
      %v3173 = vld [vmem:[%s3165 + $0x38] sm:$0xff]
      %v3174 = vld [vmem:[%s3165 + $0x40] sm:$0xff]
      %v3175 = vld [vmem:[%s3165 + $0x48] sm:$0xff]
      %v3176 = vld [vmem:[%s3165 + $0x50] sm:$0xff]
      %v3177 = vld [vmem:[%s3165 + $0x58] sm:$0xff]
      %v3190 = vunpack.c.l.b16 %v3166
      %v3191 = vunpack.c.h.b16 %v3166
      %v3192 = vunpack.c.l.b16 %v3167
      %v3193 = vunpack.c.h.b16 %v3167
      %v3194 = vunpack.c.l.b16 %v3168
      %v3195 = vunpack.c.h.b16 %v3168
      %v3196 = vunpack.c.l.b16 %v3169
      %v3197 = vunpack.c.h.b16 %v3169
      %v3198 = vunpack.c.l.b16 %v3170
      %v3199 = vunpack.c.h.b16 %v3170
      %v3200 = vunpack.c.l.b16 %v3171
      %v3201 = vunpack.c.h.b16 %v3171
      %v3202 = vunpack.c.l.b16 %v3172
      %v3203 = vunpack.c.h.b16 %v3172
      %v3204 = vunpack.c.l.b16 %v3173
      %v3205 = vunpack.c.h.b16 %v3173
      %v3206 = vunpack.c.l.b16 %v3174
      %v3207 = vunpack.c.h.b16 %v3174
      %v3208 = vunpack.c.l.b16 %v3175
      %v3209 = vunpack.c.h.b16 %v3175
      %v3210 = vunpack.c.l.b16 %v3176
      %v3211 = vunpack.c.h.b16 %v3176
      %v3212 = vunpack.c.l.b16 %v3177
      %v3213 = vunpack.c.h.b16 %v3177
      %v3214 = vpack.c.b16 %v3192, %v3190
      %v3215 = vpack.c.b16 %v3193, %v3191
      %v3216 = vpack.c.b16 %v3196, %v3194
      %v3217 = vpack.c.b16 %v3197, %v3195
      %v3218 = vpack.c.b16 %v3200, %v3198
      %v3219 = vpack.c.b16 %v3201, %v3199
      %v3220 = vpack.c.b16 %v3204, %v3202
      %v3221 = vpack.c.b16 %v3205, %v3203
      %v3222 = vpack.c.b16 %v3208, %v3206
      %v3223 = vpack.c.b16 %v3209, %v3207
      %v3224 = vpack.c.b16 %v3212, %v3210
      %v3225 = vpack.c.b16 %v3213, %v3211
      %v3239 = vsel %vm352, %v3164, 0
      %3241 = vmatprep.subr.bf16.mxu0 %v3215
      %3242 = vmatpush1.bf16.msra.mxu0 %v3214
      %3243 = vmatprep.subr.bf16.mxu0 %v3217
      %3244 = vmatpush1.bf16.msra.mxu0 %v3216
      %3245 = vmatprep.subr.bf16.mxu0 %v3219
      %3246 = vmatpush1.bf16.msra.mxu0 %v3218
      %3247 = vmatprep.subr.bf16.mxu0 %v3221
      %3248 = vmatpush1.bf16.msra.mxu0 %v3220
      %3249 = vmatprep.subr.bf16.mxu0 %v3223
      %3250 = vmatpush1.bf16.msra.mxu0 %v3222
      %3251 = vmatprep.subr.bf16.mxu0 %v3225
      %3252 = vmatpush1.bf16.msra.mxu0 %v3224
      %3253 = vmatprep.subr.bf16.mxu0 0
      %3254 = vmatpush1.bf16.msra.mxu0 0
      %3255 = vmatprep.subr.bf16.mxu0 0
      %3256 = vmatpush1.bf16.msra.mxu0 0
      %3257 = vmatprep.subr.bf16.mxu0 0
      %3258 = vmatpush1.bf16.msra.mxu0 0
      %3259 = vmatprep.subr.bf16.mxu0 0
      %3260 = vmatpush1.bf16.msra.mxu0 0
      %3261 = vmatprep.subr.bf16.mxu0 0
      %3262 = vmatpush1.bf16.msra.mxu0 0
      %3263 = vmatprep.subr.bf16.mxu0 0
      %3264 = vmatpush1.bf16.msra.mxu0 0
      %3265 = vmatprep.subr.bf16.mxu0 0
      %3266 = vmatpush1.bf16.msra.mxu0 0
      %3267 = vmatprep.subr.bf16.mxu0 0
      %3268 = vmatpush1.bf16.msra.mxu0 0
      %3269 = vmatprep.subr.bf16.mxu0 0
      %3270 = vmatpush1.bf16.msra.mxu0 0
      %3271 = vmatprep.subr.bf16.mxu0 0
      %3272 = vmatpush1.bf16.msra.mxu0 0
      %3273 = vmatprep.mubr.bf16.mxu0 0
      %3274 = vmatmul.mubr.bf16.gmra.mrb[0].mxu0 %v3239
      %v3275 = vpop.f32.mrb[0].mxu0
      %v3276 = vadd.f32 0.0, %v3275
      %v3277 = vpop.f32.mrb[0].mxu0
      %v3278 = vadd.f32 0.0, %v3277
      %v3279 = vpop.f32.mrb[0].mxu0
      %v3280 = vpop.f32.mrb[0].mxu0
      %3281 = vdwg.mxu0
      %v3282 = vadd.f32 %v3161, %v3276
      %v3283 = vadd.f32 %v3162, %v3278
      %s3284 = scalar_lea.vmem %s237, 25
      %v3285 = vld [vmem:[%s3284] sm:$0x1]
      %s3286 = scalar_lea.vmem %s242, 2400
      %v3287 = vld [vmem:[%s3286] sm:$0xff]
      %v3288 = vld [vmem:[%s3286 + $0x8] sm:$0xff]
      %v3289 = vld [vmem:[%s3286 + $0x10] sm:$0xff]
      %v3290 = vld [vmem:[%s3286 + $0x18] sm:$0xff]
      %v3291 = vld [vmem:[%s3286 + $0x20] sm:$0xff]
      %v3292 = vld [vmem:[%s3286 + $0x28] sm:$0xff]
      %v3293 = vld [vmem:[%s3286 + $0x30] sm:$0xff]
      %v3294 = vld [vmem:[%s3286 + $0x38] sm:$0xff]
      %v3295 = vld [vmem:[%s3286 + $0x40] sm:$0xff]
      %v3296 = vld [vmem:[%s3286 + $0x48] sm:$0xff]
      %v3297 = vld [vmem:[%s3286 + $0x50] sm:$0xff]
      %v3298 = vld [vmem:[%s3286 + $0x58] sm:$0xff]
      %v3311 = vunpack.c.l.b16 %v3287
      %v3312 = vunpack.c.h.b16 %v3287
      %v3313 = vunpack.c.l.b16 %v3288
      %v3314 = vunpack.c.h.b16 %v3288
      %v3315 = vunpack.c.l.b16 %v3289
      %v3316 = vunpack.c.h.b16 %v3289
      %v3317 = vunpack.c.l.b16 %v3290
      %v3318 = vunpack.c.h.b16 %v3290
      %v3319 = vunpack.c.l.b16 %v3291
      %v3320 = vunpack.c.h.b16 %v3291
      %v3321 = vunpack.c.l.b16 %v3292
      %v3322 = vunpack.c.h.b16 %v3292
      %v3323 = vunpack.c.l.b16 %v3293
      %v3324 = vunpack.c.h.b16 %v3293
      %v3325 = vunpack.c.l.b16 %v3294
      %v3326 = vunpack.c.h.b16 %v3294
      %v3327 = vunpack.c.l.b16 %v3295
      %v3328 = vunpack.c.h.b16 %v3295
      %v3329 = vunpack.c.l.b16 %v3296
      %v3330 = vunpack.c.h.b16 %v3296
      %v3331 = vunpack.c.l.b16 %v3297
      %v3332 = vunpack.c.h.b16 %v3297
      %v3333 = vunpack.c.l.b16 %v3298
      %v3334 = vunpack.c.h.b16 %v3298
      %v3335 = vpack.c.b16 %v3313, %v3311
      %v3336 = vpack.c.b16 %v3314, %v3312
      %v3337 = vpack.c.b16 %v3317, %v3315
      %v3338 = vpack.c.b16 %v3318, %v3316
      %v3339 = vpack.c.b16 %v3321, %v3319
      %v3340 = vpack.c.b16 %v3322, %v3320
      %v3341 = vpack.c.b16 %v3325, %v3323
      %v3342 = vpack.c.b16 %v3326, %v3324
      %v3343 = vpack.c.b16 %v3329, %v3327
      %v3344 = vpack.c.b16 %v3330, %v3328
      %v3345 = vpack.c.b16 %v3333, %v3331
      %v3346 = vpack.c.b16 %v3334, %v3332
      %v3360 = vsel %vm352, %v3285, 0
      %3362 = vmatprep.subr.bf16.mxu0 %v3336
      %3363 = vmatpush1.bf16.msra.mxu0 %v3335
      %3364 = vmatprep.subr.bf16.mxu0 %v3338
      %3365 = vmatpush1.bf16.msra.mxu0 %v3337
      %3366 = vmatprep.subr.bf16.mxu0 %v3340
      %3367 = vmatpush1.bf16.msra.mxu0 %v3339
      %3368 = vmatprep.subr.bf16.mxu0 %v3342
      %3369 = vmatpush1.bf16.msra.mxu0 %v3341
      %3370 = vmatprep.subr.bf16.mxu0 %v3344
      %3371 = vmatpush1.bf16.msra.mxu0 %v3343
      %3372 = vmatprep.subr.bf16.mxu0 %v3346
      %3373 = vmatpush1.bf16.msra.mxu0 %v3345
      %3374 = vmatprep.subr.bf16.mxu0 0
      %3375 = vmatpush1.bf16.msra.mxu0 0
      %3376 = vmatprep.subr.bf16.mxu0 0
      %3377 = vmatpush1.bf16.msra.mxu0 0
      %3378 = vmatprep.subr.bf16.mxu0 0
      %3379 = vmatpush1.bf16.msra.mxu0 0
      %3380 = vmatprep.subr.bf16.mxu0 0
      %3381 = vmatpush1.bf16.msra.mxu0 0
      %3382 = vmatprep.subr.bf16.mxu0 0
      %3383 = vmatpush1.bf16.msra.mxu0 0
      %3384 = vmatprep.subr.bf16.mxu0 0
      %3385 = vmatpush1.bf16.msra.mxu0 0
      %3386 = vmatprep.subr.bf16.mxu0 0
      %3387 = vmatpush1.bf16.msra.mxu0 0
      %3388 = vmatprep.subr.bf16.mxu0 0
      %3389 = vmatpush1.bf16.msra.mxu0 0
      %3390 = vmatprep.subr.bf16.mxu0 0
      %3391 = vmatpush1.bf16.msra.mxu0 0
      %3392 = vmatprep.subr.bf16.mxu0 0
      %3393 = vmatpush1.bf16.msra.mxu0 0
      %3394 = vmatprep.mubr.bf16.mxu0 0
      %3395 = vmatmul.mubr.bf16.gmra.mrb[0].mxu0 %v3360
      %v3396 = vpop.f32.mrb[0].mxu0
      %v3397 = vadd.f32 0.0, %v3396
      %v3398 = vpop.f32.mrb[0].mxu0
      %v3399 = vadd.f32 0.0, %v3398
      %v3400 = vpop.f32.mrb[0].mxu0
      %v3401 = vpop.f32.mrb[0].mxu0
      %3402 = vdwg.mxu0
      %v3403 = vadd.f32 %v3282, %v3397
      %v3404 = vadd.f32 %v3283, %v3399
      %s3405 = scalar_lea.vmem %s237, 26
      %v3406 = vld [vmem:[%s3405] sm:$0x1]
      %s3407 = scalar_lea.vmem %s242, 2496
      %v3408 = vld [vmem:[%s3407] sm:$0xff]
      %v3409 = vld [vmem:[%s3407 + $0x8] sm:$0xff]
      %v3410 = vld [vmem:[%s3407 + $0x10] sm:$0xff]
      %v3411 = vld [vmem:[%s3407 + $0x18] sm:$0xff]
      %v3412 = vld [vmem:[%s3407 + $0x20] sm:$0xff]
      %v3413 = vld [vmem:[%s3407 + $0x28] sm:$0xff]
      %v3414 = vld [vmem:[%s3407 + $0x30] sm:$0xff]
      %v3415 = vld [vmem:[%s3407 + $0x38] sm:$0xff]
      %v3416 = vld [vmem:[%s3407 + $0x40] sm:$0xff]
      %v3417 = vld [vmem:[%s3407 + $0x48] sm:$0xff]
      %v3418 = vld [vmem:[%s3407 + $0x50] sm:$0xff]
      %v3419 = vld [vmem:[%s3407 + $0x58] sm:$0xff]
      %v3432 = vunpack.c.l.b16 %v3408
      %v3433 = vunpack.c.h.b16 %v3408
      %v3434 = vunpack.c.l.b16 %v3409
      %v3435 = vunpack.c.h.b16 %v3409
      %v3436 = vunpack.c.l.b16 %v3410
      %v3437 = vunpack.c.h.b16 %v3410
      %v3438 = vunpack.c.l.b16 %v3411
      %v3439 = vunpack.c.h.b16 %v3411
      %v3440 = vunpack.c.l.b16 %v3412
      %v3441 = vunpack.c.h.b16 %v3412
      %v3442 = vunpack.c.l.b16 %v3413
      %v3443 = vunpack.c.h.b16 %v3413
      %v3444 = vunpack.c.l.b16 %v3414
      %v3445 = vunpack.c.h.b16 %v3414
      %v3446 = vunpack.c.l.b16 %v3415
      %v3447 = vunpack.c.h.b16 %v3415
      %v3448 = vunpack.c.l.b16 %v3416
      %v3449 = vunpack.c.h.b16 %v3416
      %v3450 = vunpack.c.l.b16 %v3417
      %v3451 = vunpack.c.h.b16 %v3417
      %v3452 = vunpack.c.l.b16 %v3418
      %v3453 = vunpack.c.h.b16 %v3418
      %v3454 = vunpack.c.l.b16 %v3419
      %v3455 = vunpack.c.h.b16 %v3419
      %v3456 = vpack.c.b16 %v3434, %v3432
      %v3457 = vpack.c.b16 %v3435, %v3433
      %v3458 = vpack.c.b16 %v3438, %v3436
      %v3459 = vpack.c.b16 %v3439, %v3437
      %v3460 = vpack.c.b16 %v3442, %v3440
      %v3461 = vpack.c.b16 %v3443, %v3441
      %v3462 = vpack.c.b16 %v3446, %v3444
      %v3463 = vpack.c.b16 %v3447, %v3445
      %v3464 = vpack.c.b16 %v3450, %v3448
      %v3465 = vpack.c.b16 %v3451, %v3449
      %v3466 = vpack.c.b16 %v3454, %v3452
      %v3467 = vpack.c.b16 %v3455, %v3453
      %v3481 = vsel %vm352, %v3406, 0
      %3483 = vmatprep.subr.bf16.mxu0 %v3457
      %3484 = vmatpush1.bf16.msra.mxu0 %v3456
      %3485 = vmatprep.subr.bf16.mxu0 %v3459
      %3486 = vmatpush1.bf16.msra.mxu0 %v3458
      %3487 = vmatprep.subr.bf16.mxu0 %v3461
      %3488 = vmatpush1.bf16.msra.mxu0 %v3460
      %3489 = vmatprep.subr.bf16.mxu0 %v3463
      %3490 = vmatpush1.bf16.msra.mxu0 %v3462
      %3491 = vmatprep.subr.bf16.mxu0 %v3465
      %3492 = vmatpush1.bf16.msra.mxu0 %v3464
      %3493 = vmatprep.subr.bf16.mxu0 %v3467
      %3494 = vmatpush1.bf16.msra.mxu0 %v3466
      %3495 = vmatprep.subr.bf16.mxu0 0
      %3496 = vmatpush1.bf16.msra.mxu0 0
      %3497 = vmatprep.subr.bf16.mxu0 0
      %3498 = vmatpush1.bf16.msra.mxu0 0
      %3499 = vmatprep.subr.bf16.mxu0 0
      %3500 = vmatpush1.bf16.msra.mxu0 0
      %3501 = vmatprep.subr.bf16.mxu0 0
      %3502 = vmatpush1.bf16.msra.mxu0 0
      %3503 = vmatprep.subr.bf16.mxu0 0
      %3504 = vmatpush1.bf16.msra.mxu0 0
      %3505 = vmatprep.subr.bf16.mxu0 0
      %3506 = vmatpush1.bf16.msra.mxu0 0
      %3507 = vmatprep.subr.bf16.mxu0 0
      %3508 = vmatpush1.bf16.msra.mxu0 0
      %3509 = vmatprep.subr.bf16.mxu0 0
      %3510 = vmatpush1.bf16.msra.mxu0 0
      %3511 = vmatprep.subr.bf16.mxu0 0
      %3512 = vmatpush1.bf16.msra.mxu0 0
      %3513 = vmatprep.subr.bf16.mxu0 0
      %3514 = vmatpush1.bf16.msra.mxu0 0
      %3515 = vmatprep.mubr.bf16.mxu0 0
      %3516 = vmatmul.mubr.bf16.gmra.mrb[0].mxu0 %v3481
      %v3517 = vpop.f32.mrb[0].mxu0
      %v3518 = vadd.f32 0.0, %v3517
      %v3519 = vpop.f32.mrb[0].mxu0
      %v3520 = vadd.f32 0.0, %v3519
      %v3521 = vpop.f32.mrb[0].mxu0
      %v3522 = vpop.f32.mrb[0].mxu0
      %3523 = vdwg.mxu0
      %v3524 = vadd.f32 %v3403, %v3518
      %v3525 = vadd.f32 %v3404, %v3520
      %s3526 = scalar_lea.vmem %s237, 27
      %v3527 = vld [vmem:[%s3526] sm:$0x1]
      %s3528 = scalar_lea.vmem %s242, 2592
      %v3529 = vld [vmem:[%s3528] sm:$0xff]
      %v3530 = vld [vmem:[%s3528 + $0x8] sm:$0xff]
      %v3531 = vld [vmem:[%s3528 + $0x10] sm:$0xff]
      %v3532 = vld [vmem:[%s3528 + $0x18] sm:$0xff]
      %v3533 = vld [vmem:[%s3528 + $0x20] sm:$0xff]
      %v3534 = vld [vmem:[%s3528 + $0x28] sm:$0xff]
      %v3535 = vld [vmem:[%s3528 + $0x30] sm:$0xff]
      %v3536 = vld [vmem:[%s3528 + $0x38] sm:$0xff]
      %v3537 = vld [vmem:[%s3528 + $0x40] sm:$0xff]
      %v3538 = vld [vmem:[%s3528 + $0x48] sm:$0xff]
      %v3539 = vld [vmem:[%s3528 + $0x50] sm:$0xff]
      %v3540 = vld [vmem:[%s3528 + $0x58] sm:$0xff]
      %v3553 = vunpack.c.l.b16 %v3529
      %v3554 = vunpack.c.h.b16 %v3529
      %v3555 = vunpack.c.l.b16 %v3530
      %v3556 = vunpack.c.h.b16 %v3530
      %v3557 = vunpack.c.l.b16 %v3531
      %v3558 = vunpack.c.h.b16 %v3531
      %v3559 = vunpack.c.l.b16 %v3532
      %v3560 = vunpack.c.h.b16 %v3532
      %v3561 = vunpack.c.l.b16 %v3533
      %v3562 = vunpack.c.h.b16 %v3533
      %v3563 = vunpack.c.l.b16 %v3534
      %v3564 = vunpack.c.h.b16 %v3534
      %v3565 = vunpack.c.l.b16 %v3535
      %v3566 = vunpack.c.h.b16 %v3535
      %v3567 = vunpack.c.l.b16 %v3536
      %v3568 = vunpack.c.h.b16 %v3536
      %v3569 = vunpack.c.l.b16 %v3537
      %v3570 = vunpack.c.h.b16 %v3537
      %v3571 = vunpack.c.l.b16 %v3538
      %v3572 = vunpack.c.h.b16 %v3538
      %v3573 = vunpack.c.l.b16 %v3539
      %v3574 = vunpack.c.h.b16 %v3539
      %v3575 = vunpack.c.l.b16 %v3540
      %v3576 = vunpack.c.h.b16 %v3540
      %v3577 = vpack.c.b16 %v3555, %v3553
      %v3578 = vpack.c.b16 %v3556, %v3554
      %v3579 = vpack.c.b16 %v3559, %v3557
      %v3580 = vpack.c.b16 %v3560, %v3558
      %v3581 = vpack.c.b16 %v3563, %v3561
      %v3582 = vpack.c.b16 %v3564, %v3562
      %v3583 = vpack.c.b16 %v3567, %v3565
      %v3584 = vpack.c.b16 %v3568, %v3566
      %v3585 = vpack.c.b16 %v3571, %v3569
      %v3586 = vpack.c.b16 %v3572, %v3570
      %v3587 = vpack.c.b16 %v3575, %v3573
      %v3588 = vpack.c.b16 %v3576, %v3574
      %v3602 = vsel %vm352, %v3527, 0
      %3604 = vmatprep.subr.bf16.mxu0 %v3578
      %3605 = vmatpush1.bf16.msra.mxu0 %v3577
      %3606 = vmatprep.subr.bf16.mxu0 %v3580
      %3607 = vmatpush1.bf16.msra.mxu0 %v3579
      %3608 = vmatprep.subr.bf16.mxu0 %v3582
      %3609 = vmatpush1.bf16.msra.mxu0 %v3581
      %3610 = vmatprep.subr.bf16.mxu0 %v3584
      %3611 = vmatpush1.bf16.msra.mxu0 %v3583
      %3612 = vmatprep.subr.bf16.mxu0 %v3586
      %3613 = vmatpush1.bf16.msra.mxu0 %v3585
      %3614 = vmatprep.subr.bf16.mxu0 %v3588
      %3615 = vmatpush1.bf16.msra.mxu0 %v3587
      %3616 = vmatprep.subr.bf16.mxu0 0
      %3617 = vmatpush1.bf16.msra.mxu0 0
      %3618 = vmatprep.subr.bf16.mxu0 0
      %3619 = vmatpush1.bf16.msra.mxu0 0
      %3620 = vmatprep.subr.bf16.mxu0 0
      %3621 = vmatpush1.bf16.msra.mxu0 0
      %3622 = vmatprep.subr.bf16.mxu0 0
      %3623 = vmatpush1.bf16.msra.mxu0 0
      %3624 = vmatprep.subr.bf16.mxu0 0
      %3625 = vmatpush1.bf16.msra.mxu0 0
      %3626 = vmatprep.subr.bf16.mxu0 0
      %3627 = vmatpush1.bf16.msra.mxu0 0
      %3628 = vmatprep.subr.bf16.mxu0 0
      %3629 = vmatpush1.bf16.msra.mxu0 0
      %3630 = vmatprep.subr.bf16.mxu0 0
      %3631 = vmatpush1.bf16.msra.mxu0 0
      %3632 = vmatprep.subr.bf16.mxu0 0
      %3633 = vmatpush1.bf16.msra.mxu0 0
      %3634 = vmatprep.subr.bf16.mxu0 0
      %3635 = vmatpush1.bf16.msra.mxu0 0
      %3636 = vmatprep.mubr.bf16.mxu0 0
      %3637 = vmatmul.mubr.bf16.gmra.mrb[0].mxu0 %v3602
      %v3638 = vpop.f32.mrb[0].mxu0
      %v3639 = vadd.f32 0.0, %v3638
      %v3640 = vpop.f32.mrb[0].mxu0
      %v3641 = vadd.f32 0.0, %v3640
      %v3642 = vpop.f32.mrb[0].mxu0
      %v3643 = vpop.f32.mrb[0].mxu0
      %3644 = vdwg.mxu0
      %v3645 = vadd.f32 %v3524, %v3639
      %v3646 = vadd.f32 %v3525, %v3641
      %s3647 = scalar_lea.vmem %s237, 28
      %v3648 = vld [vmem:[%s3647] sm:$0x1]
      %s3649 = scalar_lea.vmem %s242, 2688
      %v3650 = vld [vmem:[%s3649] sm:$0xff]
      %v3651 = vld [vmem:[%s3649 + $0x8] sm:$0xff]
      %v3652 = vld [vmem:[%s3649 + $0x10] sm:$0xff]
      %v3653 = vld [vmem:[%s3649 + $0x18] sm:$0xff]
      %v3654 = vld [vmem:[%s3649 + $0x20] sm:$0xff]
      %v3655 = vld [vmem:[%s3649 + $0x28] sm:$0xff]
      %v3656 = vld [vmem:[%s3649 + $0x30] sm:$0xff]
      %v3657 = vld [vmem:[%s3649 + $0x38] sm:$0xff]
      %v3658 = vld [vmem:[%s3649 + $0x40] sm:$0xff]
      %v3659 = vld [vmem:[%s3649 + $0x48] sm:$0xff]
      %v3660 = vld [vmem:[%s3649 + $0x50] sm:$0xff]
      %v3661 = vld [vmem:[%s3649 + $0x58] sm:$0xff]
      %v3674 = vunpack.c.l.b16 %v3650
      %v3675 = vunpack.c.h.b16 %v3650
      %v3676 = vunpack.c.l.b16 %v3651
      %v3677 = vunpack.c.h.b16 %v3651
      %v3678 = vunpack.c.l.b16 %v3652
      %v3679 = vunpack.c.h.b16 %v3652
      %v3680 = vunpack.c.l.b16 %v3653
      %v3681 = vunpack.c.h.b16 %v3653
      %v3682 = vunpack.c.l.b16 %v3654
      %v3683 = vunpack.c.h.b16 %v3654
      %v3684 = vunpack.c.l.b16 %v3655
      %v3685 = vunpack.c.h.b16 %v3655
      %v3686 = vunpack.c.l.b16 %v3656
      %v3687 = vunpack.c.h.b16 %v3656
      %v3688 = vunpack.c.l.b16 %v3657
      %v3689 = vunpack.c.h.b16 %v3657
      %v3690 = vunpack.c.l.b16 %v3658
      %v3691 = vunpack.c.h.b16 %v3658
      %v3692 = vunpack.c.l.b16 %v3659
      %v3693 = vunpack.c.h.b16 %v3659
      %v3694 = vunpack.c.l.b16 %v3660
      %v3695 = vunpack.c.h.b16 %v3660
      %v3696 = vunpack.c.l.b16 %v3661
      %v3697 = vunpack.c.h.b16 %v3661
      %v3698 = vpack.c.b16 %v3676, %v3674
      %v3699 = vpack.c.b16 %v3677, %v3675
      %v3700 = vpack.c.b16 %v3680, %v3678
      %v3701 = vpack.c.b16 %v3681, %v3679
      %v3702 = vpack.c.b16 %v3684, %v3682
      %v3703 = vpack.c.b16 %v3685, %v3683
      %v3704 = vpack.c.b16 %v3688, %v3686
      %v3705 = vpack.c.b16 %v3689, %v3687
      %v3706 = vpack.c.b16 %v3692, %v3690
      %v3707 = vpack.c.b16 %v3693, %v3691
      %v3708 = vpack.c.b16 %v3696, %v3694
      %v3709 = vpack.c.b16 %v3697, %v3695
      %v3723 = vsel %vm352, %v3648, 0
      %3725 = vmatprep.subr.bf16.mxu0 %v3699
      %3726 = vmatpush1.bf16.msra.mxu0 %v3698
      %3727 = vmatprep.subr.bf16.mxu0 %v3701
      %3728 = vmatpush1.bf16.msra.mxu0 %v3700
      %3729 = vmatprep.subr.bf16.mxu0 %v3703
      %3730 = vmatpush1.bf16.msra.mxu0 %v3702
      %3731 = vmatprep.subr.bf16.mxu0 %v3705
      %3732 = vmatpush1.bf16.msra.mxu0 %v3704
      %3733 = vmatprep.subr.bf16.mxu0 %v3707
      %3734 = vmatpush1.bf16.msra.mxu0 %v3706
      %3735 = vmatprep.subr.bf16.mxu0 %v3709
      %3736 = vmatpush1.bf16.msra.mxu0 %v3708
      %3737 = vmatprep.subr.bf16.mxu0 0
      %3738 = vmatpush1.bf16.msra.mxu0 0
      %3739 = vmatprep.subr.bf16.mxu0 0
      %3740 = vmatpush1.bf16.msra.mxu0 0
      %3741 = vmatprep.subr.bf16.mxu0 0
      %3742 = vmatpush1.bf16.msra.mxu0 0
      %3743 = vmatprep.subr.bf16.mxu0 0
      %3744 = vmatpush1.bf16.msra.mxu0 0
      %3745 = vmatprep.subr.bf16.mxu0 0
      %3746 = vmatpush1.bf16.msra.mxu0 0
      %3747 = vmatprep.subr.bf16.mxu0 0
      %3748 = vmatpush1.bf16.msra.mxu0 0
      %3749 = vmatprep.subr.bf16.mxu0 0
      %3750 = vmatpush1.bf16.msra.mxu0 0
      %3751 = vmatprep.subr.bf16.mxu0 0
      %3752 = vmatpush1.bf16.msra.mxu0 0
      %3753 = vmatprep.subr.bf16.mxu0 0
      %3754 = vmatpush1.bf16.msra.mxu0 0
      %3755 = vmatprep.subr.bf16.mxu0 0
      %3756 = vmatpush1.bf16.msra.mxu0 0
      %3757 = vmatprep.mubr.bf16.mxu0 0
      %3758 = vmatmul.mubr.bf16.gmra.mrb[0].mxu0 %v3723
      %v3759 = vpop.f32.mrb[0].mxu0
      %v3760 = vadd.f32 0.0, %v3759
      %v3761 = vpop.f32.mrb[0].mxu0
      %v3762 = vadd.f32 0.0, %v3761
      %v3763 = vpop.f32.mrb[0].mxu0
      %v3764 = vpop.f32.mrb[0].mxu0
      %3765 = vdwg.mxu0
      %v3766 = vadd.f32 %v3645, %v3760
      %v3767 = vadd.f32 %v3646, %v3762
      %s3768 = scalar_lea.vmem %s237, 29
      %v3769 = vld [vmem:[%s3768] sm:$0x1]
      %s3770 = scalar_lea.vmem %s242, 2784
      %v3771 = vld [vmem:[%s3770] sm:$0xff]
      %v3772 = vld [vmem:[%s3770 + $0x8] sm:$0xff]
      %v3773 = vld [vmem:[%s3770 + $0x10] sm:$0xff]
      %v3774 = vld [vmem:[%s3770 + $0x18] sm:$0xff]
      %v3775 = vld [vmem:[%s3770 + $0x20] sm:$0xff]
      %v3776 = vld [vmem:[%s3770 + $0x28] sm:$0xff]
      %v3777 = vld [vmem:[%s3770 + $0x30] sm:$0xff]
      %v3778 = vld [vmem:[%s3770 + $0x38] sm:$0xff]
      %v3779 = vld [vmem:[%s3770 + $0x40] sm:$0xff]
      %v3780 = vld [vmem:[%s3770 + $0x48] sm:$0xff]
      %v3781 = vld [vmem:[%s3770 + $0x50] sm:$0xff]
      %v3782 = vld [vmem:[%s3770 + $0x58] sm:$0xff]
      %v3795 = vunpack.c.l.b16 %v3771
      %v3796 = vunpack.c.h.b16 %v3771
      %v3797 = vunpack.c.l.b16 %v3772
      %v3798 = vunpack.c.h.b16 %v3772
      %v3799 = vunpack.c.l.b16 %v3773
      %v3800 = vunpack.c.h.b16 %v3773
      %v3801 = vunpack.c.l.b16 %v3774
      %v3802 = vunpack.c.h.b16 %v3774
      %v3803 = vunpack.c.l.b16 %v3775
      %v3804 = vunpack.c.h.b16 %v3775
      %v3805 = vunpack.c.l.b16 %v3776
      %v3806 = vunpack.c.h.b16 %v3776
      %v3807 = vunpack.c.l.b16 %v3777
      %v3808 = vunpack.c.h.b16 %v3777
      %v3809 = vunpack.c.l.b16 %v3778
      %v3810 = vunpack.c.h.b16 %v3778
      %v3811 = vunpack.c.l.b16 %v3779
      %v3812 = vunpack.c.h.b16 %v3779
      %v3813 = vunpack.c.l.b16 %v3780
      %v3814 = vunpack.c.h.b16 %v3780
      %v3815 = vunpack.c.l.b16 %v3781
      %v3816 = vunpack.c.h.b16 %v3781
      %v3817 = vunpack.c.l.b16 %v3782
      %v3818 = vunpack.c.h.b16 %v3782
      %v3819 = vpack.c.b16 %v3797, %v3795
      %v3820 = vpack.c.b16 %v3798, %v3796
      %v3821 = vpack.c.b16 %v3801, %v3799
      %v3822 = vpack.c.b16 %v3802, %v3800
      %v3823 = vpack.c.b16 %v3805, %v3803
      %v3824 = vpack.c.b16 %v3806, %v3804
      %v3825 = vpack.c.b16 %v3809, %v3807
      %v3826 = vpack.c.b16 %v3810, %v3808
      %v3827 = vpack.c.b16 %v3813, %v3811
      %v3828 = vpack.c.b16 %v3814, %v3812
      %v3829 = vpack.c.b16 %v3817, %v3815
      %v3830 = vpack.c.b16 %v3818, %v3816
      %v3844 = vsel %vm352, %v3769, 0
      %3846 = vmatprep.subr.bf16.mxu0 %v3820
      %3847 = vmatpush1.bf16.msra.mxu0 %v3819
      %3848 = vmatprep.subr.bf16.mxu0 %v3822
      %3849 = vmatpush1.bf16.msra.mxu0 %v3821
      %3850 = vmatprep.subr.bf16.mxu0 %v3824
      %3851 = vmatpush1.bf16.msra.mxu0 %v3823
      %3852 = vmatprep.subr.bf16.mxu0 %v3826
      %3853 = vmatpush1.bf16.msra.mxu0 %v3825
      %3854 = vmatprep.subr.bf16.mxu0 %v3828
      %3855 = vmatpush1.bf16.msra.mxu0 %v3827
      %3856 = vmatprep.subr.bf16.mxu0 %v3830
      %3857 = vmatpush1.bf16.msra.mxu0 %v3829
      %3858 = vmatprep.subr.bf16.mxu0 0
      %3859 = vmatpush1.bf16.msra.mxu0 0
      %3860 = vmatprep.subr.bf16.mxu0 0
      %3861 = vmatpush1.bf16.msra.mxu0 0
      %3862 = vmatprep.subr.bf16.mxu0 0
      %3863 = vmatpush1.bf16.msra.mxu0 0
      %3864 = vmatprep.subr.bf16.mxu0 0
      %3865 = vmatpush1.bf16.msra.mxu0 0
      %3866 = vmatprep.subr.bf16.mxu0 0
      %3867 = vmatpush1.bf16.msra.mxu0 0
      %3868 = vmatprep.subr.bf16.mxu0 0
      %3869 = vmatpush1.bf16.msra.mxu0 0
      %3870 = vmatprep.subr.bf16.mxu0 0
      %3871 = vmatpush1.bf16.msra.mxu0 0
      %3872 = vmatprep.subr.bf16.mxu0 0
      %3873 = vmatpush1.bf16.msra.mxu0 0
      %3874 = vmatprep.subr.bf16.mxu0 0
      %3875 = vmatpush1.bf16.msra.mxu0 0
      %3876 = vmatprep.subr.bf16.mxu0 0
      %3877 = vmatpush1.bf16.msra.mxu0 0
      %3878 = vmatprep.mubr.bf16.mxu0 0
      %3879 = vmatmul.mubr.bf16.gmra.mrb[0].mxu0 %v3844
      %v3880 = vpop.f32.mrb[0].mxu0
      %v3881 = vadd.f32 0.0, %v3880
      %v3882 = vpop.f32.mrb[0].mxu0
      %v3883 = vadd.f32 0.0, %v3882
      %v3884 = vpop.f32.mrb[0].mxu0
      %v3885 = vpop.f32.mrb[0].mxu0
      %3886 = vdwg.mxu0
      %v3887 = vadd.f32 %v3766, %v3881
      %v3888 = vadd.f32 %v3767, %v3883
      %s3889 = scalar_lea.vmem %s237, 30
      %v3890 = vld [vmem:[%s3889] sm:$0x1]
      %s3891 = scalar_lea.vmem %s242, 2880
      %v3892 = vld [vmem:[%s3891] sm:$0xff]
      %v3893 = vld [vmem:[%s3891 + $0x8] sm:$0xff]
      %v3894 = vld [vmem:[%s3891 + $0x10] sm:$0xff]
      %v3895 = vld [vmem:[%s3891 + $0x18] sm:$0xff]
      %v3896 = vld [vmem:[%s3891 + $0x20] sm:$0xff]
      %v3897 = vld [vmem:[%s3891 + $0x28] sm:$0xff]
      %v3898 = vld [vmem:[%s3891 + $0x30] sm:$0xff]
      %v3899 = vld [vmem:[%s3891 + $0x38] sm:$0xff]
      %v3900 = vld [vmem:[%s3891 + $0x40] sm:$0xff]
      %v3901 = vld [vmem:[%s3891 + $0x48] sm:$0xff]
      %v3902 = vld [vmem:[%s3891 + $0x50] sm:$0xff]
      %v3903 = vld [vmem:[%s3891 + $0x58] sm:$0xff]
      %v3916 = vunpack.c.l.b16 %v3892
      %v3917 = vunpack.c.h.b16 %v3892
      %v3918 = vunpack.c.l.b16 %v3893
      %v3919 = vunpack.c.h.b16 %v3893
      %v3920 = vunpack.c.l.b16 %v3894
      %v3921 = vunpack.c.h.b16 %v3894
      %v3922 = vunpack.c.l.b16 %v3895
      %v3923 = vunpack.c.h.b16 %v3895
      %v3924 = vunpack.c.l.b16 %v3896
      %v3925 = vunpack.c.h.b16 %v3896
      %v3926 = vunpack.c.l.b16 %v3897
      %v3927 = vunpack.c.h.b16 %v3897
      %v3928 = vunpack.c.l.b16 %v3898
      %v3929 = vunpack.c.h.b16 %v3898
      %v3930 = vunpack.c.l.b16 %v3899
      %v3931 = vunpack.c.h.b16 %v3899
      %v3932 = vunpack.c.l.b16 %v3900
      %v3933 = vunpack.c.h.b16 %v3900
      %v3934 = vunpack.c.l.b16 %v3901
      %v3935 = vunpack.c.h.b16 %v3901
      %v3936 = vunpack.c.l.b16 %v3902
      %v3937 = vunpack.c.h.b16 %v3902
      %v3938 = vunpack.c.l.b16 %v3903
      %v3939 = vunpack.c.h.b16 %v3903
      %v3940 = vpack.c.b16 %v3918, %v3916
      %v3941 = vpack.c.b16 %v3919, %v3917
      %v3942 = vpack.c.b16 %v3922, %v3920
      %v3943 = vpack.c.b16 %v3923, %v3921
      %v3944 = vpack.c.b16 %v3926, %v3924
      %v3945 = vpack.c.b16 %v3927, %v3925
      %v3946 = vpack.c.b16 %v3930, %v3928
      %v3947 = vpack.c.b16 %v3931, %v3929
      %v3948 = vpack.c.b16 %v3934, %v3932
      %v3949 = vpack.c.b16 %v3935, %v3933
      %v3950 = vpack.c.b16 %v3938, %v3936
      %v3951 = vpack.c.b16 %v3939, %v3937
      %v3965 = vsel %vm352, %v3890, 0
      %3967 = vmatprep.subr.bf16.mxu0 %v3941
      %3968 = vmatpush1.bf16.msra.mxu0 %v3940
      %3969 = vmatprep.subr.bf16.mxu0 %v3943
      %3970 = vmatpush1.bf16.msra.mxu0 %v3942
      %3971 = vmatprep.subr.bf16.mxu0 %v3945
      %3972 = vmatpush1.bf16.msra.mxu0 %v3944
      %3973 = vmatprep.subr.bf16.mxu0 %v3947
      %3974 = vmatpush1.bf16.msra.mxu0 %v3946
      %3975 = vmatprep.subr.bf16.mxu0 %v3949
      %3976 = vmatpush1.bf16.msra.mxu0 %v3948
      %3977 = vmatprep.subr.bf16.mxu0 %v3951
      %3978 = vmatpush1.bf16.msra.mxu0 %v3950
      %3979 = vmatprep.subr.bf16.mxu0 0
      %3980 = vmatpush1.bf16.msra.mxu0 0
      %3981 = vmatprep.subr.bf16.mxu0 0
      %3982 = vmatpush1.bf16.msra.mxu0 0
      %3983 = vmatprep.subr.bf16.mxu0 0
      %3984 = vmatpush1.bf16.msra.mxu0 0
      %3985 = vmatprep.subr.bf16.mxu0 0
      %3986 = vmatpush1.bf16.msra.mxu0 0
      %3987 = vmatprep.subr.bf16.mxu0 0
      %3988 = vmatpush1.bf16.msra.mxu0 0
      %3989 = vmatprep.subr.bf16.mxu0 0
      %3990 = vmatpush1.bf16.msra.mxu0 0
      %3991 = vmatprep.subr.bf16.mxu0 0
      %3992 = vmatpush1.bf16.msra.mxu0 0
      %3993 = vmatprep.subr.bf16.mxu0 0
      %3994 = vmatpush1.bf16.msra.mxu0 0
      %3995 = vmatprep.subr.bf16.mxu0 0
      %3996 = vmatpush1.bf16.msra.mxu0 0
      %3997 = vmatprep.subr.bf16.mxu0 0
      %3998 = vmatpush1.bf16.msra.mxu0 0
      %3999 = vmatprep.mubr.bf16.mxu0 0
      %4000 = vmatmul.mubr.bf16.gmra.mrb[0].mxu0 %v3965
      %v4001 = vpop.f32.mrb[0].mxu0
      %v4002 = vadd.f32 0.0, %v4001
      %v4003 = vpop.f32.mrb[0].mxu0
      %v4004 = vadd.f32 0.0, %v4003
      %v4005 = vpop.f32.mrb[0].mxu0
      %v4006 = vpop.f32.mrb[0].mxu0
      %4007 = vdwg.mxu0
      %v4008 = vadd.f32 %v3887, %v4002
      %v4009 = vadd.f32 %v3888, %v4004
      %s4010 = scalar_lea.vmem %s237, 31
      %v4011 = vld [vmem:[%s4010] sm:$0x1]
      %s4012 = scalar_lea.vmem %s242, 2976
      %v4013 = vld [vmem:[%s4012] sm:$0xff]
      %v4014 = vld [vmem:[%s4012 + $0x8] sm:$0xff]
      %v4015 = vld [vmem:[%s4012 + $0x10] sm:$0xff]
      %v4016 = vld [vmem:[%s4012 + $0x18] sm:$0xff]
      %v4017 = vld [vmem:[%s4012 + $0x20] sm:$0xff]
      %v4018 = vld [vmem:[%s4012 + $0x28] sm:$0xff]
      %v4019 = vld [vmem:[%s4012 + $0x30] sm:$0xff]
      %v4020 = vld [vmem:[%s4012 + $0x38] sm:$0xff]
      %v4021 = vld [vmem:[%s4012 + $0x40] sm:$0xff]
      %v4022 = vld [vmem:[%s4012 + $0x48] sm:$0xff]
      %v4023 = vld [vmem:[%s4012 + $0x50] sm:$0xff]
      %v4024 = vld [vmem:[%s4012 + $0x58] sm:$0xff]
      %v4037 = vunpack.c.l.b16 %v4013
      %v4038 = vunpack.c.h.b16 %v4013
      %v4039 = vunpack.c.l.b16 %v4014
      %v4040 = vunpack.c.h.b16 %v4014
      %v4041 = vunpack.c.l.b16 %v4015
      %v4042 = vunpack.c.h.b16 %v4015
      %v4043 = vunpack.c.l.b16 %v4016
      %v4044 = vunpack.c.h.b16 %v4016
      %v4045 = vunpack.c.l.b16 %v4017
      %v4046 = vunpack.c.h.b16 %v4017
      %v4047 = vunpack.c.l.b16 %v4018
      %v4048 = vunpack.c.h.b16 %v4018
      %v4049 = vunpack.c.l.b16 %v4019
      %v4050 = vunpack.c.h.b16 %v4019
      %v4051 = vunpack.c.l.b16 %v4020
      %v4052 = vunpack.c.h.b16 %v4020
      %v4053 = vunpack.c.l.b16 %v4021
      %v4054 = vunpack.c.h.b16 %v4021
      %v4055 = vunpack.c.l.b16 %v4022
      %v4056 = vunpack.c.h.b16 %v4022
      %v4057 = vunpack.c.l.b16 %v4023
      %v4058 = vunpack.c.h.b16 %v4023
      %v4059 = vunpack.c.l.b16 %v4024
      %v4060 = vunpack.c.h.b16 %v4024
      %v4061 = vpack.c.b16 %v4039, %v4037
      %v4062 = vpack.c.b16 %v4040, %v4038
      %v4063 = vpack.c.b16 %v4043, %v4041
      %v4064 = vpack.c.b16 %v4044, %v4042
      %v4065 = vpack.c.b16 %v4047, %v4045
      %v4066 = vpack.c.b16 %v4048, %v4046
      %v4067 = vpack.c.b16 %v4051, %v4049
      %v4068 = vpack.c.b16 %v4052, %v4050
      %v4069 = vpack.c.b16 %v4055, %v4053
      %v4070 = vpack.c.b16 %v4056, %v4054
      %v4071 = vpack.c.b16 %v4059, %v4057
      %v4072 = vpack.c.b16 %v4060, %v4058
      %v4086 = vsel %vm352, %v4011, 0
      %4088 = vmatprep.subr.bf16.mxu0 %v4062
      %4089 = vmatpush1.bf16.msra.mxu0 %v4061
      %4090 = vmatprep.subr.bf16.mxu0 %v4064
      %4091 = vmatpush1.bf16.msra.mxu0 %v4063
      %4092 = vmatprep.subr.bf16.mxu0 %v4066
      %4093 = vmatpush1.bf16.msra.mxu0 %v4065
      %4094 = vmatprep.subr.bf16.mxu0 %v4068
      %4095 = vmatpush1.bf16.msra.mxu0 %v4067
      %4096 = vmatprep.subr.bf16.mxu0 %v4070
      %4097 = vmatpush1.bf16.msra.mxu0 %v4069
      %4098 = vmatprep.subr.bf16.mxu0 %v4072
      %4099 = vmatpush1.bf16.msra.mxu0 %v4071
      %4100 = vmatprep.subr.bf16.mxu0 0
      %4101 = vmatpush1.bf16.msra.mxu0 0
      %4102 = vmatprep.subr.bf16.mxu0 0
      %4103 = vmatpush1.bf16.msra.mxu0 0
      %4104 = vmatprep.subr.bf16.mxu0 0
      %4105 = vmatpush1.bf16.msra.mxu0 0
      %4106 = vmatprep.subr.bf16.mxu0 0
      %4107 = vmatpush1.bf16.msra.mxu0 0
      %4108 = vmatprep.subr.bf16.mxu0 0
      %4109 = vmatpush1.bf16.msra.mxu0 0
      %4110 = vmatprep.subr.bf16.mxu0 0
      %4111 = vmatpush1.bf16.msra.mxu0 0
      %4112 = vmatprep.subr.bf16.mxu0 0
      %4113 = vmatpush1.bf16.msra.mxu0 0
      %4114 = vmatprep.subr.bf16.mxu0 0
      %4115 = vmatpush1.bf16.msra.mxu0 0
      %4116 = vmatprep.subr.bf16.mxu0 0
      %4117 = vmatpush1.bf16.msra.mxu0 0
      %4118 = vmatprep.subr.bf16.mxu0 0
      %4119 = vmatpush1.bf16.msra.mxu0 0
      %4120 = vmatprep.mubr.bf16.mxu0 0
      %4121 = vmatmul.mubr.bf16.gmra.mrb[0].mxu0 %v4086
      %v4122 = vpop.f32.mrb[0].mxu0
      %v4123 = vadd.f32 0.0, %v4122
      %v4124 = vpop.f32.mrb[0].mxu0
      %v4125 = vadd.f32 0.0, %v4124
      %v4126 = vpop.f32.mrb[0].mxu0
      %v4127 = vpop.f32.mrb[0].mxu0
      %4128 = vdwg.mxu0
      %v4129 = vadd.f32 %v4008, %v4123
      %v4130 = vadd.f32 %v4009, %v4125
      %v4131 = vld [vmem:[%s247] sm:$0x3]
      %v4133 = vlaneseq
      %v4134 = vshrl.u32 %v4133, 7
      %v4135 = vsub.s32 0, %v4134
      %v4136 = vrot.slane %v4131, %v4135
      %v4137 = vlaneseq
      %v4138 = vshrl.u32 %v4137, 7
      %v4139 = vsub.s32 1, %v4138
      %v4140 = vrot.slane %v4131, %v4139
      %v4143 = vadd.f32 %v4129, %v4136
      %v4144 = vadd.f32 %v4130, %v4140
      %v4147 = vcombine.low %v4143, %v4144
      %v4149 = vunpack.c.l.s4 1983009808
      %v4150 = vunpack.c.0.s8 %v4149
      %v4151 = vlaneseq
      %v4152 = vshrl.u32 %v4151, 7
      %v4153 = vsub.s32 %v4150, %v4152
      %v4154 = vrot.slane %v4147, %v4153
      %4156 = vst [vmem:[%s261] sm:$0xf] %v4154
      %s4157 = smul.u32 2, %s19
      %p4158 = scmp.lt.s32.totalorder %s20, 1
      %s4159 = scalar_select %p4158, %s20, 1
      %p4160 = scmp.lt.s32.totalorder %s21, 1
      %s4161 = scalar_select %p4160, %s21, 1
      %p4162 = scmp.lt.s32.totalorder %s4157, 1
      %s4163 = scalar_select %p4162, %s4157, 1
      %s4164 = smul.addr %s4161, 2
      %s4165 = sadd.s32 %s4163, %s4164
      %s4166 = smul.addr %s4159, 4
      %s4167 = sadd.s32 %s4165, %s4166
      %s4168 = smul.addr %s4167, 2
      %s4169 = scalar_lea.vmem %s3, %s4168
      // Predicated region
      $region33: #{backbone_forward.1} parent=31 // pred_check
        %p4170 = pneg %p135
      $region34: #{backbone_forward.1} parent=31 // pred_check_branch
        %4172 = sbr.rel (%p4170) target = $region36
      $region35: #{backbone_forward.1} parent=31 // pred_region
        %s4173 = smul.u32 2, %s19
      $region36: #{backbone_forward.1} parent=31 // pred_fallthru
        _
    $region32: #{backbone_forward.1} parent=5 // pred_fallthru
      _
    %p4174 = scmp.le.s32.totalorder 2, %s9
    // Predicated region
    $region37: #{backbone_forward.1} parent=5 // pred_check
      %p4175 = pneg %p4174
    $region38: #{backbone_forward.1} parent=5 // pred_check_branch
      %4177 = sbr.rel (%p4175) target = $region40
    $region39: #{backbone_forward.1} parent=5 // pred_region
      %s4178 = ssub.s32 %s9, 2
      // Predicated region
      $region41: #{backbone_forward.1} parent=39 // pred_check
        %p4179 = pneg %p141
      $region42: #{backbone_forward.1} parent=39 // pred_check_branch
        %4181 = sbr.rel (%p4179) target = $region44
      $region43: #{backbone_forward.1} parent=39 // pred_region
        %s4182 = smul.u32 2, %s22
        %p4183 = scmp.lt.s32.totalorder %s23, 1
        %s4184 = scalar_select %p4183, %s23, 1
        %p4185 = scmp.lt.s32.totalorder %s24, 1
        %s4186 = scalar_select %p4185, %s24, 1
        %p4187 = scmp.lt.s32.totalorder %s4182, 1
        %s4188 = scalar_select %p4187, %s4182, 1
        %s4189 = smul.addr %s4186, 2
        %s4190 = sadd.s32 %s4188, %s4189
        %s4191 = smul.addr %s4184, 4
        %s4192 = sadd.s32 %s4190, %s4191
        %s4193 = smul.addr %s4192, 2
        %s4194 = scalar_lea.vmem %s3, %s4193
      $region44: #{backbone_forward.1} parent=39 // pred_fallthru
        _
    $region40: #{backbone_forward.1} parent=5 // pred_fallthru
      _
  $region6: #{backbone_forward.1} parent=0 // loop_footer
    %s13 = sadd.s32 1, %s9
  $region7: #{backbone_forward.1} parent=0 // loop_footer_branch
    %8 = sbr.rel target = $region3
  $region8: #{backbone_forward.1} parent=0 // loop_exit
    _

</llo_original>
